<compile_context>
chip_gen: v7x
topology: tpu7x:2x2x1
jax: 0.10.0
libtpu: 0.0.40
codegen_flags: <defaults>
</compile_context>

<pallas_src>
import functools

import jax
import jax.numpy as jnp
from jax import lax
from jax.experimental import pallas as pl
from jax.experimental.pallas import tpu as pltpu


# ----------------------------------------------------------------------------
# Fused DnCNN kernel: one (batch, row-tile) grid point does the whole network.
# ----------------------------------------------------------------------------
def _dncnn_fused_kernel(x_ref, w1_ref, sb1_ref, wm_ref, sbm_ref, wl_ref,
                        o_ref, h_ref, g_ref, acc_ref,
                        *, H, W, C, TH, R, depth, n_mid):
    # x_ref  : (1, H + 2*depth, W)   f32  input, rows pre-padded with zeros
    # w1_ref : (9, C)                f32  first conv taps (kh*3 + kw, cout)
    # sb1_ref: (2, C)                f32  [scale(=1), shift(=bias)] of layer 1
    # wm_ref : (n_mid, 3, 3*C, C)    bf16 middle convs, (kw, cin) folded into K
    # sbm_ref: (n_mid, 2, C)         f32  folded BN [scale, shift] per layer
    # wl_ref : (3, 3, C)             f32  last conv (cout = 1)
    # o_ref  : (1, TH, W)            f32  residual output  x - dncnn(x)
    # h_ref  : (R, W, C)             bf16 running activation, R = TH + 2*depth
    # g_ref  : (R + 2, W, 3*C)       bf16 kw-folded, row-padded matmul operand
    # acc_ref: (R, W, C)             f32  conv accumulator
    j = pl.program_id(1)
    row0 = j * TH
    if TH % 8 == 0:
        row0 = pl.multiple_of(row0, 8)

    # Row band of the (zero-row-padded) input covering this tile + halo.
    xt = x_ref[0, pl.ds(row0, R), :]                          # (R, W) f32

    # Rows of the working buffer outside the real image must be reset to zero
    # after every layer: that is exactly the per-layer zero padding of the
    # un-tiled network, so halo rows stay consistent across row tiles.
    ridx = lax.broadcasted_iota(jnp.int32, (R, 1, 1), 0) + (j * TH - depth)
    rowmask = ((ridx >= 0) & (ridx < H)).astype(jnp.float32)  # (R, 1, 1)

    # H-halo rows of the folded operand stay zero for every layer.
    zrow = jnp.zeros((1, W, 3 * C), jnp.bfloat16)
    g_ref[0:1] = zrow
    g_ref[R + 1:R + 2] = zrow

    # ------------------ layer 1: Cin=1 -> C, bias + ReLU (VPU) ---------------
    w1 = w1_ref[...]                                          # (9, C)
    sb1 = sb1_ref[...]                                        # (2, C)
    zc = jnp.zeros((R, 1), jnp.float32)
    zr = jnp.zeros((1, W + 2), jnp.float32)
    xp = jnp.concatenate(
        [zr, jnp.concatenate([zc, xt, zc], axis=1), zr], axis=0)  # (R+2, W+2)
    acc = jnp.zeros((R, W, C), jnp.float32)
    for a in range(3):
        for b in range(3):
            tap = w1[a * 3 + b:a * 3 + b + 1][None]           # (1, 1, C)
            acc = acc + xp[a:a + R, b:b + W][:, :, None] * tap
    y = jnp.maximum(acc * sb1[0:1] + sb1[1:2], 0.0) * rowmask
    h_ref[...] = y.astype(jnp.bfloat16)

    # ------ middle layers: conv + BN + ReLU, K = 3*C bf16 matmuls (MXU) ------
    zcol = jnp.zeros((R, 1, C), jnp.bfloat16)

    def _layer(l, carry):
        h = h_ref[...]                                                 # (R, W, C)
        # W-shifted copies (zero-padded at the true image left/right edges).
        left = jnp.concatenate([zcol, h[:, :W - 1, :]], axis=1)        # x[.., w-1]
        right = jnp.concatenate([h[:, 1:, :], zcol], axis=1)           # x[.., w+1]
        # Fold the 3 kw taps into the contraction dim -> (R, W, 3C).
        g_ref[pl.ds(1, R)] = jnp.concatenate([left, h, right], axis=-1)
        wm_l = wm_ref[l]                                               # (3, 3C, C)
        acc_ref[...] = jnp.zeros_like(acc_ref)
        for a in range(3):                                             # kh taps
            lhs = g_ref[pl.ds(a, R)].reshape(R * W, 3 * C)
            acc_ref[...] += jnp.dot(
                lhs, wm_l[a],
                preferred_element_type=jnp.float32).reshape(R, W, C)
        sb = sbm_ref[l]                                                # (2, C)
        yl = jnp.maximum(acc_ref[...] * sb[0:1] + sb[1:2], 0.0) * rowmask
        h_ref[...] = yl.astype(jnp.bfloat16)
        return carry

    lax.fori_loop(0, n_mid, _layer, 0)

    # ------ last layer: C -> 1 conv, fused with the residual x - dncnn(x) ----
    wl = wl_ref[...]                                          # (3, 3, C) f32
    h = h_ref[...]
    hw = jnp.concatenate([zcol, h, zcol], axis=1)             # (R, W + 2, C)
    out1 = jnp.zeros((TH, W), jnp.float32)
    for a in range(3):
        for b in range(3):
            sl = hw[depth - 1 + a:depth - 1 + a + TH, b:b + W, :]   # (TH, W, C)
            out1 = out1 + jnp.sum(sl * wl[a, b], axis=-1)
    o_ref[0] = xt[depth:depth + TH, :] - out1


# ----------------------------------------------------------------------------
# Wrapper
# ----------------------------------------------------------------------------
def _pick_row_tile(H, max_tile=64):
    if H % 8 != 0:
        return H
    best, t = 8, 8
    while t <= min(H, max_tile):
        if H % t == 0:
            best = t
        t += 8
    return best


def dncnn_forward(x_nchw, params, *, row_tile=None):
    """out = x - DnCNN(x).  x is PyTorch-style NCHW with image_channels == 1."""
    N, cin, H, W = x_nchw.shape
    assert cin == 1
    # TODO(synk): image_channels > 1 first/last layers are not implemented
    # (the CIDER DnCNN defense uses image_channels=1).
    C = int(params["b1"].shape[0])
    n_mid = int(params["wm_oihw"].shape[0])
    depth = n_mid + 2

    TH = int(row_tile) if row_tile is not None else _pick_row_tile(H)
    assert H % TH == 0 and (TH % 8 == 0 or TH == H)
    R = TH + 2 * depth
    Hp = H + 2 * depth

    x = x_nchw[:, 0].astype(jnp.float32)                      # (N, H, W)
    x_pad = jnp.pad(x, ((0, 0), (depth, depth), (0, 0)))      # 1-channel, once

    # Packed parameters (all weights stay VMEM-resident for the fused net).
    w1 = jnp.transpose(params["w1_oihw"], (2, 3, 1, 0)).reshape(9, C)
    w1 = w1.astype(jnp.float32)
    sb1 = jnp.stack([jnp.ones((C,), jnp.float32),
                     params["b1"].astype(jnp.float32)])       # (2, C)
    wm = jnp.transpose(params["wm_oihw"], (0, 3, 4, 2, 1))    # (n_mid,3,3,Ci,Co)
    wm = wm.reshape(n_mid, 3, 3 * C, C).astype(jnp.bfloat16)  # K = 3*C folded
    sbm = jnp.stack([params["scale_m"], params["shift_m"]],
                    axis=1).astype(jnp.float32)               # (n_mid, 2, C)
    wl = jnp.transpose(params["wl_oihw"][0], (1, 2, 0)).astype(jnp.float32)

    kern = functools.partial(_dncnn_fused_kernel, H=H, W=W, C=C, TH=TH, R=R,
                             depth=depth, n_mid=n_mid)
    out = pl.pallas_call(
        kern,
        out_shape=jax.ShapeDtypeStruct((N, H, W), jnp.float32),
        grid=(N, H // TH),
        in_specs=[
            pl.BlockSpec((1, Hp, W), lambda n, j: (n, 0, 0)),
            pl.BlockSpec((9, C), lambda n, j: (0, 0)),
            pl.BlockSpec((2, C), lambda n, j: (0, 0)),
            pl.BlockSpec((n_mid, 3, 3 * C, C), lambda n, j: (0, 0, 0, 0)),
            pl.BlockSpec((n_mid, 2, C), lambda n, j: (0, 0, 0)),
            pl.BlockSpec((3, 3, C), lambda n, j: (0, 0, 0)),
        ],
        out_specs=pl.BlockSpec((1, TH, W), lambda n, j: (n, j, 0)),
        scratch_shapes=[
            pltpu.VMEM((R, W, C), jnp.bfloat16),              # running activation
            pltpu.VMEM((R + 2, W, 3 * C), jnp.bfloat16),      # folded matmul lhs
            pltpu.VMEM((R, W, C), jnp.float32),               # f32 accumulator
        ],
        compiler_params=pltpu.CompilerParams(
            dimension_semantics=("parallel", "arbitrary"),
            # <= physical VMEM on v5e/v6e (128 MiB) and v7x (64 MiB); pick the
            # row tile so the scratch buffers + weights stay well below this.
            vmem_limit_bytes=64 * 1024 * 1024),
    )(x_pad, w1, sb1, wm, sbm, wl)

    return out[:, None].astype(x_nchw.dtype)                  # back to NCHW


# ----------------------------------------------------------------------------
# Deterministic parameter init mirroring DnCNN._initialize_weights
# ----------------------------------------------------------------------------
def _orthogonal_oihw(key, cout, cin, k=3):
    """PyTorch-style init.orthogonal_ on a (cout, cin, k, k) conv weight."""
    rows, cols = cout, cin * k * k
    a = jax.random.normal(key, (max(rows, cols), min(rows, cols)), jnp.float32)
    q, r = jnp.linalg.qr(a)
    q = q * jnp.sign(jnp.diagonal(r))[None, :]
    if rows < cols:
        q = q.T
    return q[:rows, :cols].reshape(cout, cin, k, k)


def init_dncnn_params(key, depth=17, n_channels=64, image_channels=1,
                      zero_last_weight=True):
    """Per-module init; BatchNorm is folded to (scale, shift) for inference."""
    assert depth >= 3
    eps = 0.0001
    n_mid = depth - 2
    keys = jax.random.split(key, depth)
    w1 = _orthogonal_oihw(keys[0], n_channels, image_channels)   # (C, Ci, 3, 3)
    b1 = jnp.zeros((n_channels,), jnp.float32)                   # bias -> 0
    wm = jnp.stack([_orthogonal_oihw(keys[1 + i], n_channels, n_channels)
                    for i in range(n_mid)])                      # (n_mid,C,C,3,3)
    # BN inference: gamma=1, beta=0, running mean=0, var=1.
    scale_m = jnp.full((n_mid, n_channels), 1.0 / (1.0 + eps) ** 0.5, jnp.float32)
    shift_m = jnp.zeros((n_mid, n_channels), jnp.float32)
    if zero_last_weight:          # faithful: init.constant_(lastcnn.weight, 0)
        wl = jnp.zeros((image_channels, n_channels, 3, 3), jnp.float32)
    else:
        wl = _orthogonal_oihw(keys[-1], image_channels, n_channels)
    return dict(w1_oihw=w1, b1=b1, wm_oihw=wm,
                scale_m=scale_m, shift_m=shift_m, wl_oihw=wl)


# ----------------------------------------------------------------------------
# Pure-JAX reference (mirrors the kernel's bf16 quantization points)
# ----------------------------------------------------------------------------
def _ref_conv(h, w_hwio):
    return lax.conv_general_dilated(
        h, w_hwio, window_strides=(1, 1), padding=((1, 1), (1, 1)),
        dimension_numbers=("NHWC", "HWIO", "NHWC"),
        preferred_element_type=jnp.float32, precision=lax.Precision.HIGHEST)


def dncnn_forward_ref(x_nchw, params):
    n_mid = int(params["wm_oihw"].shape[0])
    x = x_nchw[:, 0].astype(jnp.float32)[..., None]              # (N, H, W, 1)
    w1 = jnp.transpose(params["w1_oihw"], (2, 3, 1, 0)).astype(jnp.float32)
    h = jnp.maximum(_ref_conv(x, w1) + params["b1"], 0.0).astype(jnp.bfloat16)
    wm = jnp.transpose(params["wm_oihw"], (0, 3, 4, 2, 1)).astype(jnp.bfloat16)
    for i in range(n_mid):
        y = _ref_conv(h, wm[i]) * params["scale_m"][i] + params["shift_m"][i]
        h = jnp.maximum(y, 0.0).astype(jnp.bfloat16)
    wl = jnp.transpose(params["wl_oihw"], (2, 3, 1, 0)).astype(jnp.float32)
    out = _ref_conv(h.astype(jnp.float32), wl)[..., 0]           # (N, H, W)
    return (x_nchw.astype(jnp.float32) - out[:, None]).astype(x_nchw.dtype)


if __name__ == "__main__":
    # Small config consistent with the module (depth scaled down, C=64 as in
    # the module default, image_channels=1).
    depth, n_channels, image_channels = 5, 64, 1
    N, H, W = 2, 16, 16

    key = jax.random.PRNGKey(0)
    k_param, k_x = jax.random.split(key)
    # zero_last_weight=False gives a non-trivial network output so the
    # numerical check is meaningful (the faithful init zeroes the last conv,
    # in which case forward(x) == x exactly).
    params = init_dncnn_params(k_param, depth=depth, n_channels=n_channels,
                               image_channels=image_channels,
                               zero_last_weight=False)

    x = jax.random.normal(k_x, (N, image_channels, H, W), jnp.float32)  # NCHW

    # row_tile=8 -> two row tiles per image: exercises the halo + masking path.
    out = jax.block_until_ready(dncnn_forward(x, params, row_tile=8))
    ref = jax.block_until_ready(dncnn_forward_ref(x, params))

    assert out.shape == x.shape and out.dtype == x.dtype
    err = float(jnp.max(jnp.abs(out - ref)))
    assert err < 1e-2, f"max |err| = {err}"
    print("KERNEL_OK")
</pallas_src>

<mosaic_0001>
module attributes {stable_mosaic.version = 11 : i64} {
  func.func @_dncnn_fused_kernel(%arg0: i32, %arg1: i32, %arg2: memref<1x26x16xf32, #tpu.memory_space<vmem>>, %arg3: memref<9x64xf32, #tpu.memory_space<vmem>>, %arg4: memref<2x64xf32, #tpu.memory_space<vmem>>, %arg5: memref<3x3x192x64xbf16, #tpu.memory_space<vmem>>, %arg6: memref<3x2x64xf32, #tpu.memory_space<vmem>>, %arg7: memref<3x3x64xf32, #tpu.memory_space<vmem>>, %arg8: memref<1x8x16xf32, #tpu.memory_space<vmem>>, %arg9: memref<18x16x64xbf16, #tpu.memory_space<vmem>>, %arg10: memref<20x16x192xbf16, #tpu.memory_space<vmem>>, %arg11: memref<18x16x64xf32, #tpu.memory_space<vmem>>) attributes {dimension_semantics = [#tpu.dimension_semantics<parallel>, #tpu.dimension_semantics<arbitrary>], iteration_bounds = array<i64: 2, 2>, scalar_prefetch = 0 : i64, scratch_operands = 3 : i64, tpu.core_type = #tpu.core_type<tc>, window_params = [{transform_indices = @transform_0, window_bounds = array<i64: 1, 26, 16>}, {pipeline_mode = #tpu.pipeline_mode<synchronous>, transform_indices = @transform_1, window_bounds = array<i64: 9, 64>}, {pipeline_mode = #tpu.pipeline_mode<synchronous>, transform_indices = @transform_2, window_bounds = array<i64: 2, 64>}, {pipeline_mode = #tpu.pipeline_mode<synchronous>, transform_indices = @transform_3, window_bounds = array<i64: 3, 3, 192, 64>}, {pipeline_mode = #tpu.pipeline_mode<synchronous>, transform_indices = @transform_4, window_bounds = array<i64: 3, 2, 64>}, {pipeline_mode = #tpu.pipeline_mode<synchronous>, transform_indices = @transform_5, window_bounds = array<i64: 3, 3, 64>}, {transform_indices = @transform_6, window_bounds = array<i64: 1, 8, 16>}]} {
    %c8_i32 = arith.constant 8 : i32
    %0 = arith.muli %arg1, %c8_i32 : i32
    %1 = tpu.assume_multiple %0, 8 : i32
    %c0 = arith.constant 0 : index
    %2 = arith.index_cast %1 : i32 to index
    %c0_0 = arith.constant 0 : index
    %3 = vector.load %arg2[%c0, %2, %c0_0] : memref<1x26x16xf32, #tpu.memory_space<vmem>>, vector<1x18x16xf32>
    %4 = vector.shape_cast %3 : vector<1x18x16xf32> to vector<18x16xf32>
    %5 = tpu.iota {dimensions = array<i32: 0>} : vector<18x1x1xi32>
    %c8_i32_1 = arith.constant 8 : i32
    %6 = arith.muli %arg1, %c8_i32_1 : i32
    %c5_i32 = arith.constant 5 : i32
    %7 = arith.subi %6, %c5_i32 : i32
    %8 = vector.broadcast %7 : i32 to vector<18x1x1xi32>
    %9 = arith.addi %5, %8 : vector<18x1x1xi32>
    %c0_i32 = arith.constant 0 : i32
    %10 = vector.broadcast %c0_i32 : i32 to vector<18x1x1xi32>
    %11 = arith.cmpi sge, %9, %10 : vector<18x1x1xi32>
    %c16_i32 = arith.constant 16 : i32
    %12 = vector.broadcast %c16_i32 : i32 to vector<18x1x1xi32>
    %13 = arith.cmpi slt, %9, %12 : vector<18x1x1xi32>
    %14 = arith.andi %11, %13 : vector<18x1x1xi1>
    %15 = arith.extui %14 : vector<18x1x1xi1> to vector<18x1x1xi32>
    %16 = arith.sitofp %15 : vector<18x1x1xi32> to vector<18x1x1xf32>
    %cst = arith.constant 0.000000e+00 : bf16
    %17 = vector.broadcast %cst : bf16 to vector<1x16x192xbf16>
    %c0_2 = arith.constant 0 : index
    %c0_3 = arith.constant 0 : index
    %c0_4 = arith.constant 0 : index
    %18 = vector.load %arg10[%c0_2, %c0_3, %c0_4] : memref<20x16x192xbf16, #tpu.memory_space<vmem>>, vector<1x16x192xbf16>
    tpu.vector_store %arg10[%c0_2, %c0_3, %c0_4], %17 {strides = array<i32>} : memref<20x16x192xbf16, #tpu.memory_space<vmem>>, vector<1x16x192xbf16>,
    %c19 = arith.constant 19 : index
    %c0_5 = arith.constant 0 : index
    %c0_6 = arith.constant 0 : index
    %19 = vector.load %arg10[%c19, %c0_5, %c0_6] : memref<20x16x192xbf16, #tpu.memory_space<vmem>>, vector<1x16x192xbf16>
    tpu.vector_store %arg10[%c19, %c0_5, %c0_6], %17 {strides = array<i32>} : memref<20x16x192xbf16, #tpu.memory_space<vmem>>, vector<1x16x192xbf16>,
    %c0_7 = arith.constant 0 : index
    %c0_8 = arith.constant 0 : index
    %20 = vector.load %arg3[%c0_7, %c0_8] : memref<9x64xf32, #tpu.memory_space<vmem>>, vector<9x64xf32>
    %c0_9 = arith.constant 0 : index
    %c0_10 = arith.constant 0 : index
    %21 = vector.load %arg4[%c0_9, %c0_10] : memref<2x64xf32, #tpu.memory_space<vmem>>, vector<2x64xf32>
    %cst_11 = arith.constant 0.000000e+00 : f32
    %22 = vector.broadcast %cst_11 : f32 to vector<18x1xf32>
    %cst_12 = arith.constant 0.000000e+00 : f32
    %23 = vector.broadcast %cst_12 : f32 to vector<1x18xf32>
    %24 = tpu.concatenate %22, %4, %22 in 1 : vector<18x1xf32>, vector<18x16xf32>, vector<18x1xf32> -> vector<18x18xf32>
    %25 = tpu.concatenate %23, %24, %23 in 0 : vector<1x18xf32>, vector<18x18xf32>, vector<1x18xf32> -> vector<20x18xf32>
    %cst_13 = arith.constant 0.000000e+00 : f32
    %26 = vector.broadcast %cst_13 : f32 to vector<18x16x64xf32>
    %27 = vector.extract_strided_slice %20 {offsets = [0, 0], sizes = [1, 64], strides = [1, 1]} : vector<9x64xf32> to vector<1x64xf32>
    %28 = vector.shape_cast %27 : vector<1x64xf32> to vector<1x1x64xf32>
    %29 = vector.extract_strided_slice %25 {offsets = [0, 0], sizes = [18, 16], strides = [1, 1]} : vector<20x18xf32> to vector<18x16xf32>
    %30 = vector.shape_cast %29 : vector<18x16xf32> to vector<18x16x1xf32>
    %31 = vector.broadcast %30 : vector<18x16x1xf32> to vector<18x16x64xf32>
    %32 = vector.broadcast %28 : vector<1x1x64xf32> to vector<18x16x64xf32>
    %33 = arith.mulf %31, %32 : vector<18x16x64xf32>
    %34 = arith.addf %26, %33 : vector<18x16x64xf32>
    %35 = vector.extract_strided_slice %20 {offsets = [1, 0], sizes = [1, 64], strides = [1, 1]} : vector<9x64xf32> to vector<1x64xf32>
    %36 = vector.shape_cast %35 : vector<1x64xf32> to vector<1x1x64xf32>
    %37 = vector.extract_strided_slice %25 {offsets = [0, 1], sizes = [18, 16], strides = [1, 1]} : vector<20x18xf32> to vector<18x16xf32>
    %38 = vector.shape_cast %37 : vector<18x16xf32> to vector<18x16x1xf32>
    %39 = vector.broadcast %38 : vector<18x16x1xf32> to vector<18x16x64xf32>
    %40 = vector.broadcast %36 : vector<1x1x64xf32> to vector<18x16x64xf32>
    %41 = arith.mulf %39, %40 : vector<18x16x64xf32>
    %42 = arith.addf %34, %41 : vector<18x16x64xf32>
    %43 = vector.extract_strided_slice %20 {offsets = [2, 0], sizes = [1, 64], strides = [1, 1]} : vector<9x64xf32> to vector<1x64xf32>
    %44 = vector.shape_cast %43 : vector<1x64xf32> to vector<1x1x64xf32>
    %45 = vector.extract_strided_slice %25 {offsets = [0, 2], sizes = [18, 16], strides = [1, 1]} : vector<20x18xf32> to vector<18x16xf32>
    %46 = vector.shape_cast %45 : vector<18x16xf32> to vector<18x16x1xf32>
    %47 = vector.broadcast %46 : vector<18x16x1xf32> to vector<18x16x64xf32>
    %48 = vector.broadcast %44 : vector<1x1x64xf32> to vector<18x16x64xf32>
    %49 = arith.mulf %47, %48 : vector<18x16x64xf32>
    %50 = arith.addf %42, %49 : vector<18x16x64xf32>
    %51 = vector.extract_strided_slice %20 {offsets = [3, 0], sizes = [1, 64], strides = [1, 1]} : vector<9x64xf32> to vector<1x64xf32>
    %52 = vector.shape_cast %51 : vector<1x64xf32> to vector<1x1x64xf32>
    %53 = vector.extract_strided_slice %25 {offsets = [1, 0], sizes = [18, 16], strides = [1, 1]} : vector<20x18xf32> to vector<18x16xf32>
    %54 = vector.shape_cast %53 : vector<18x16xf32> to vector<18x16x1xf32>
    %55 = vector.broadcast %54 : vector<18x16x1xf32> to vector<18x16x64xf32>
    %56 = vector.broadcast %52 : vector<1x1x64xf32> to vector<18x16x64xf32>
    %57 = arith.mulf %55, %56 : vector<18x16x64xf32>
    %58 = arith.addf %50, %57 : vector<18x16x64xf32>
    %59 = vector.extract_strided_slice %20 {offsets = [4, 0], sizes = [1, 64], strides = [1, 1]} : vector<9x64xf32> to vector<1x64xf32>
    %60 = vector.shape_cast %59 : vector<1x64xf32> to vector<1x1x64xf32>
    %61 = vector.extract_strided_slice %25 {offsets = [1, 1], sizes = [18, 16], strides = [1, 1]} : vector<20x18xf32> to vector<18x16xf32>
    %62 = vector.shape_cast %61 : vector<18x16xf32> to vector<18x16x1xf32>
    %63 = vector.broadcast %62 : vector<18x16x1xf32> to vector<18x16x64xf32>
    %64 = vector.broadcast %60 : vector<1x1x64xf32> to vector<18x16x64xf32>
    %65 = arith.mulf %63, %64 : vector<18x16x64xf32>
    %66 = arith.addf %58, %65 : vector<18x16x64xf32>
    %67 = vector.extract_strided_slice %20 {offsets = [5, 0], sizes = [1, 64], strides = [1, 1]} : vector<9x64xf32> to vector<1x64xf32>
    %68 = vector.shape_cast %67 : vector<1x64xf32> to vector<1x1x64xf32>
    %69 = vector.extract_strided_slice %25 {offsets = [1, 2], sizes = [18, 16], strides = [1, 1]} : vector<20x18xf32> to vector<18x16xf32>
    %70 = vector.shape_cast %69 : vector<18x16xf32> to vector<18x16x1xf32>
    %71 = vector.broadcast %70 : vector<18x16x1xf32> to vector<18x16x64xf32>
    %72 = vector.broadcast %68 : vector<1x1x64xf32> to vector<18x16x64xf32>
    %73 = arith.mulf %71, %72 : vector<18x16x64xf32>
    %74 = arith.addf %66, %73 : vector<18x16x64xf32>
    %75 = vector.extract_strided_slice %20 {offsets = [6, 0], sizes = [1, 64], strides = [1, 1]} : vector<9x64xf32> to vector<1x64xf32>
    %76 = vector.shape_cast %75 : vector<1x64xf32> to vector<1x1x64xf32>
    %77 = vector.extract_strided_slice %25 {offsets = [2, 0], sizes = [18, 16], strides = [1, 1]} : vector<20x18xf32> to vector<18x16xf32>
    %78 = vector.shape_cast %77 : vector<18x16xf32> to vector<18x16x1xf32>
    %79 = vector.broadcast %78 : vector<18x16x1xf32> to vector<18x16x64xf32>
    %80 = vector.broadcast %76 : vector<1x1x64xf32> to vector<18x16x64xf32>
    %81 = arith.mulf %79, %80 : vector<18x16x64xf32>
    %82 = arith.addf %74, %81 : vector<18x16x64xf32>
    %83 = vector.extract_strided_slice %20 {offsets = [7, 0], sizes = [1, 64], strides = [1, 1]} : vector<9x64xf32> to vector<1x64xf32>
    %84 = vector.shape_cast %83 : vector<1x64xf32> to vector<1x1x64xf32>
    %85 = vector.extract_strided_slice %25 {offsets = [2, 1], sizes = [18, 16], strides = [1, 1]} : vector<20x18xf32> to vector<18x16xf32>
    %86 = vector.shape_cast %85 : vector<18x16xf32> to vector<18x16x1xf32>
    %87 = vector.broadcast %86 : vector<18x16x1xf32> to vector<18x16x64xf32>
    %88 = vector.broadcast %84 : vector<1x1x64xf32> to vector<18x16x64xf32>
    %89 = arith.mulf %87, %88 : vector<18x16x64xf32>
    %90 = arith.addf %82, %89 : vector<18x16x64xf32>
    %91 = vector.extract_strided_slice %20 {offsets = [8, 0], sizes = [1, 64], strides = [1, 1]} : vector<9x64xf32> to vector<1x64xf32>
    %92 = vector.shape_cast %91 : vector<1x64xf32> to vector<1x1x64xf32>
    %93 = vector.extract_strided_slice %25 {offsets = [2, 2], sizes = [18, 16], strides = [1, 1]} : vector<20x18xf32> to vector<18x16xf32>
    %94 = vector.shape_cast %93 : vector<18x16xf32> to vector<18x16x1xf32>
    %95 = vector.broadcast %94 : vector<18x16x1xf32> to vector<18x16x64xf32>
    %96 = vector.broadcast %92 : vector<1x1x64xf32> to vector<18x16x64xf32>
    %97 = arith.mulf %95, %96 : vector<18x16x64xf32>
    %98 = arith.addf %90, %97 : vector<18x16x64xf32>
    %99 = vector.extract_strided_slice %21 {offsets = [0, 0], sizes = [1, 64], strides = [1, 1]} : vector<2x64xf32> to vector<1x64xf32>
    %100 = vector.shape_cast %99 : vector<1x64xf32> to vector<1x1x64xf32>
    %101 = vector.broadcast %100 : vector<1x1x64xf32> to vector<18x16x64xf32>
    %102 = arith.mulf %98, %101 : vector<18x16x64xf32>
    %103 = vector.extract_strided_slice %21 {offsets = [1, 0], sizes = [1, 64], strides = [1, 1]} : vector<2x64xf32> to vector<1x64xf32>
    %104 = vector.shape_cast %103 : vector<1x64xf32> to vector<1x1x64xf32>
    %105 = vector.broadcast %104 : vector<1x1x64xf32> to vector<18x16x64xf32>
    %106 = arith.addf %102, %105 : vector<18x16x64xf32>
    %cst_14 = arith.constant 0.000000e+00 : f32
    %107 = vector.broadcast %cst_14 : f32 to vector<18x16x64xf32>
    %108 = arith.maximumf %106, %107 : vector<18x16x64xf32>
    %109 = vector.broadcast %16 : vector<18x1x1xf32> to vector<18x16x64xf32>
    %110 = arith.mulf %108, %109 : vector<18x16x64xf32>
    %111 = arith.truncf %110 : vector<18x16x64xf32> to vector<18x16x64xbf16>
    %c0_15 = arith.constant 0 : index
    %c0_16 = arith.constant 0 : index
    %c0_17 = arith.constant 0 : index
    %112 = vector.load %arg9[%c0_15, %c0_16, %c0_17] : memref<18x16x64xbf16, #tpu.memory_space<vmem>>, vector<18x16x64xbf16>
    tpu.vector_store %arg9[%c0_15, %c0_16, %c0_17], %111 {strides = array<i32>} : memref<18x16x64xbf16, #tpu.memory_space<vmem>>, vector<18x16x64xbf16>,
    %cst_18 = arith.constant 0.000000e+00 : bf16
    %113 = vector.broadcast %cst_18 : bf16 to vector<18x1x64xbf16>
    %c0_i32_19 = arith.constant 0 : i32
    %c3_i32 = arith.constant 3 : i32
    %114 = arith.addi %c0_i32_19, %c3_i32 : i32
    %c1_i32 = arith.constant 1 : i32
    scf.for %arg12 = %c0_i32_19 to %114 step %c1_i32  : i32 {
      %c0_40 = arith.constant 0 : index
      %c0_41 = arith.constant 0 : index
      %c0_42 = arith.constant 0 : index
      %205 = vector.load %arg9[%c0_40, %c0_41, %c0_42] : memref<18x16x64xbf16, #tpu.memory_space<vmem>>, vector<18x16x64xbf16>
      %206 = vector.extract_strided_slice %205 {offsets = [0, 0, 0], sizes = [18, 15, 64], strides = [1, 1, 1]} : vector<18x16x64xbf16> to vector<18x15x64xbf16>
      %207 = tpu.concatenate %113, %206 in 1 : vector<18x1x64xbf16>, vector<18x15x64xbf16> -> vector<18x16x64xbf16>
      %208 = vector.extract_strided_slice %205 {offsets = [0, 1, 0], sizes = [18, 15, 64], strides = [1, 1, 1]} : vector<18x16x64xbf16> to vector<18x15x64xbf16>
      %209 = tpu.concatenate %208, %113 in 1 : vector<18x15x64xbf16>, vector<18x1x64xbf16> -> vector<18x16x64xbf16>
      %210 = tpu.concatenate %207, %205, %209 in 2 : vector<18x16x64xbf16>, vector<18x16x64xbf16>, vector<18x16x64xbf16> -> vector<18x16x192xbf16>
      %c1 = arith.constant 1 : index
      %c0_43 = arith.constant 0 : index
      %c0_44 = arith.constant 0 : index
      %211 = vector.load %arg10[%c1, %c0_43, %c0_44] : memref<20x16x192xbf16, #tpu.memory_space<vmem>>, vector<18x16x192xbf16>
      tpu.vector_store %arg10[%c1, %c0_43, %c0_44], %210 {strides = array<i32>} : memref<20x16x192xbf16, #tpu.memory_space<vmem>>, vector<18x16x192xbf16>,
      %212 = arith.index_cast %arg12 : i32 to index
      %c0_45 = arith.constant 0 : index
      %c0_46 = arith.constant 0 : index
      %c0_47 = arith.constant 0 : index
      %213 = vector.load %arg5[%212, %c0_45, %c0_46, %c0_47] : memref<3x3x192x64xbf16, #tpu.memory_space<vmem>>, vector<1x3x192x64xbf16>
      %214 = vector.shape_cast %213 : vector<1x3x192x64xbf16> to vector<3x192x64xbf16>
      %cst_48 = arith.constant 0.000000e+00 : f32
      %215 = vector.broadcast %cst_48 : f32 to vector<18x16x64xf32>
      %c0_49 = arith.constant 0 : index
      %c0_50 = arith.constant 0 : index
      %c0_51 = arith.constant 0 : index
      %216 = vector.load %arg11[%c0_49, %c0_50, %c0_51] : memref<18x16x64xf32, #tpu.memory_space<vmem>>, vector<18x16x64xf32>
      tpu.vector_store %arg11[%c0_49, %c0_50, %c0_51], %215 {strides = array<i32>} : memref<18x16x64xf32, #tpu.memory_space<vmem>>, vector<18x16x64xf32>,
      %c0_52 = arith.constant 0 : index
      %c0_53 = arith.constant 0 : index
      %c0_54 = arith.constant 0 : index
      %217 = vector.load %arg10[%c0_52, %c0_53, %c0_54] : memref<20x16x192xbf16, #tpu.memory_space<vmem>>, vector<18x16x192xbf16>
      %218 = vector.shape_cast %217 : vector<18x16x192xbf16> to vector<288x192xbf16>
      %c0_55 = arith.constant 0 : index
      %c0_56 = arith.constant 0 : index
      %c0_57 = arith.constant 0 : index
      %219 = vector.load %arg11[%c0_55, %c0_56, %c0_57] : memref<18x16x64xf32, #tpu.memory_space<vmem>>, vector<18x16x64xf32>
      %220 = vector.extract_strided_slice %214 {offsets = [0, 0, 0], sizes = [1, 192, 64], strides = [1, 1, 1]} : vector<3x192x64xbf16> to vector<1x192x64xbf16>
      %221 = vector.shape_cast %220 : vector<1x192x64xbf16> to vector<192x64xbf16>
      %cst_58 = arith.constant dense<0.000000e+00> : vector<288x64xf32>
      %222 = tpu.matmul %218, %221, %cst_58 {dimension_numbers = #tpu.dot_dimension_numbers<[1], [0], [0], [1], [0, 0, 1, 1], [], []>} : vector<288x192xbf16>, vector<192x64xbf16>, vector<288x64xf32> -> vector<288x64xf32>
      %223 = vector.shape_cast %222 : vector<288x64xf32> to vector<18x16x64xf32>
      %224 = arith.addf %219, %223 : vector<18x16x64xf32>
      %c0_59 = arith.constant 0 : index
      %c0_60 = arith.constant 0 : index
      %c0_61 = arith.constant 0 : index
      %225 = vector.load %arg11[%c0_59, %c0_60, %c0_61] : memref<18x16x64xf32, #tpu.memory_space<vmem>>, vector<18x16x64xf32>
      tpu.vector_store %arg11[%c0_59, %c0_60, %c0_61], %224 {strides = array<i32>} : memref<18x16x64xf32, #tpu.memory_space<vmem>>, vector<18x16x64xf32>,
      %c1_62 = arith.constant 1 : index
      %c0_63 = arith.constant 0 : index
      %c0_64 = arith.constant 0 : index
      %226 = vector.load %arg10[%c1_62, %c0_63, %c0_64] : memref<20x16x192xbf16, #tpu.memory_space<vmem>>, vector<18x16x192xbf16>
      %227 = vector.shape_cast %226 : vector<18x16x192xbf16> to vector<288x192xbf16>
      %c0_65 = arith.constant 0 : index
      %c0_66 = arith.constant 0 : index
      %c0_67 = arith.constant 0 : index
      %228 = vector.load %arg11[%c0_65, %c0_66, %c0_67] : memref<18x16x64xf32, #tpu.memory_space<vmem>>, vector<18x16x64xf32>
      %229 = vector.extract_strided_slice %214 {offsets = [1, 0, 0], sizes = [1, 192, 64], strides = [1, 1, 1]} : vector<3x192x64xbf16> to vector<1x192x64xbf16>
      %230 = vector.shape_cast %229 : vector<1x192x64xbf16> to vector<192x64xbf16>
      %cst_68 = arith.constant dense<0.000000e+00> : vector<288x64xf32>
      %231 = tpu.matmul %227, %230, %cst_68 {dimension_numbers = #tpu.dot_dimension_numbers<[1], [0], [0], [1], [0, 0, 1, 1], [], []>} : vector<288x192xbf16>, vector<192x64xbf16>, vector<288x64xf32> -> vector<288x64xf32>
      %232 = vector.shape_cast %231 : vector<288x64xf32> to vector<18x16x64xf32>
      %233 = arith.addf %228, %232 : vector<18x16x64xf32>
      %c0_69 = arith.constant 0 : index
      %c0_70 = arith.constant 0 : index
      %c0_71 = arith.constant 0 : index
      %234 = vector.load %arg11[%c0_69, %c0_70, %c0_71] : memref<18x16x64xf32, #tpu.memory_space<vmem>>, vector<18x16x64xf32>
      tpu.vector_store %arg11[%c0_69, %c0_70, %c0_71], %233 {strides = array<i32>} : memref<18x16x64xf32, #tpu.memory_space<vmem>>, vector<18x16x64xf32>,
      %c2 = arith.constant 2 : index
      %c0_72 = arith.constant 0 : index
      %c0_73 = arith.constant 0 : index
      %235 = vector.load %arg10[%c2, %c0_72, %c0_73] : memref<20x16x192xbf16, #tpu.memory_space<vmem>>, vector<18x16x192xbf16>
      %236 = vector.shape_cast %235 : vector<18x16x192xbf16> to vector<288x192xbf16>
      %c0_74 = arith.constant 0 : index
      %c0_75 = arith.constant 0 : index
      %c0_76 = arith.constant 0 : index
      %237 = vector.load %arg11[%c0_74, %c0_75, %c0_76] : memref<18x16x64xf32, #tpu.memory_space<vmem>>, vector<18x16x64xf32>
      %238 = vector.extract_strided_slice %214 {offsets = [2, 0, 0], sizes = [1, 192, 64], strides = [1, 1, 1]} : vector<3x192x64xbf16> to vector<1x192x64xbf16>
      %239 = vector.shape_cast %238 : vector<1x192x64xbf16> to vector<192x64xbf16>
      %cst_77 = arith.constant dense<0.000000e+00> : vector<288x64xf32>
      %240 = tpu.matmul %236, %239, %cst_77 {dimension_numbers = #tpu.dot_dimension_numbers<[1], [0], [0], [1], [0, 0, 1, 1], [], []>} : vector<288x192xbf16>, vector<192x64xbf16>, vector<288x64xf32> -> vector<288x64xf32>
      %241 = vector.shape_cast %240 : vector<288x64xf32> to vector<18x16x64xf32>
      %242 = arith.addf %237, %241 : vector<18x16x64xf32>
      %c0_78 = arith.constant 0 : index
      %c0_79 = arith.constant 0 : index
      %c0_80 = arith.constant 0 : index
      %243 = vector.load %arg11[%c0_78, %c0_79, %c0_80] : memref<18x16x64xf32, #tpu.memory_space<vmem>>, vector<18x16x64xf32>
      tpu.vector_store %arg11[%c0_78, %c0_79, %c0_80], %242 {strides = array<i32>} : memref<18x16x64xf32, #tpu.memory_space<vmem>>, vector<18x16x64xf32>,
      %244 = arith.index_cast %arg12 : i32 to index
      %c0_81 = arith.constant 0 : index
      %c0_82 = arith.constant 0 : index
      %245 = vector.load %arg6[%244, %c0_81, %c0_82] : memref<3x2x64xf32, #tpu.memory_space<vmem>>, vector<1x2x64xf32>
      %246 = vector.shape_cast %245 : vector<1x2x64xf32> to vector<2x64xf32>
      %c0_83 = arith.constant 0 : index
      %c0_84 = arith.constant 0 : index
      %c0_85 = arith.constant 0 : index
      %247 = vector.load %arg11[%c0_83, %c0_84, %c0_85] : memref<18x16x64xf32, #tpu.memory_space<vmem>>, vector<18x16x64xf32>
      %248 = vector.extract_strided_slice %246 {offsets = [0, 0], sizes = [1, 64], strides = [1, 1]} : vector<2x64xf32> to vector<1x64xf32>
      %249 = vector.shape_cast %248 : vector<1x64xf32> to vector<1x1x64xf32>
      %250 = vector.broadcast %249 : vector<1x1x64xf32> to vector<18x16x64xf32>
      %251 = arith.mulf %247, %250 : vector<18x16x64xf32>
      %252 = vector.extract_strided_slice %246 {offsets = [1, 0], sizes = [1, 64], strides = [1, 1]} : vector<2x64xf32> to vector<1x64xf32>
      %253 = vector.shape_cast %252 : vector<1x64xf32> to vector<1x1x64xf32>
      %254 = vector.broadcast %253 : vector<1x1x64xf32> to vector<18x16x64xf32>
      %255 = arith.addf %251, %254 : vector<18x16x64xf32>
      %cst_86 = arith.constant 0.000000e+00 : f32
      %256 = vector.broadcast %cst_86 : f32 to vector<18x16x64xf32>
      %257 = arith.maximumf %255, %256 : vector<18x16x64xf32>
      %258 = vector.broadcast %16 : vector<18x1x1xf32> to vector<18x16x64xf32>
      %259 = arith.mulf %257, %258 : vector<18x16x64xf32>
      %260 = arith.truncf %259 : vector<18x16x64xf32> to vector<18x16x64xbf16>
      %c0_87 = arith.constant 0 : index
      %c0_88 = arith.constant 0 : index
      %c0_89 = arith.constant 0 : index
      %261 = vector.load %arg9[%c0_87, %c0_88, %c0_89] : memref<18x16x64xbf16, #tpu.memory_space<vmem>>, vector<18x16x64xbf16>
      tpu.vector_store %arg9[%c0_87, %c0_88, %c0_89], %260 {strides = array<i32>} : memref<18x16x64xbf16, #tpu.memory_space<vmem>>, vector<18x16x64xbf16>,
    }
    %c3_i32_20 = arith.constant 3 : i32
    %c0_21 = arith.constant 0 : index
    %c0_22 = arith.constant 0 : index
    %c0_23 = arith.constant 0 : index
    %115 = vector.load %arg7[%c0_21, %c0_22, %c0_23] : memref<3x3x64xf32, #tpu.memory_space<vmem>>, vector<3x3x64xf32>
    %c0_24 = arith.constant 0 : index
    %c0_25 = arith.constant 0 : index
    %c0_26 = arith.constant 0 : index
    %116 = vector.load %arg9[%c0_24, %c0_25, %c0_26] : memref<18x16x64xbf16, #tpu.memory_space<vmem>>, vector<18x16x64xbf16>
    %117 = tpu.concatenate %113, %116, %113 in 1 : vector<18x1x64xbf16>, vector<18x16x64xbf16>, vector<18x1x64xbf16> -> vector<18x18x64xbf16>
    %cst_27 = arith.constant 0.000000e+00 : f32
    %118 = vector.broadcast %cst_27 : f32 to vector<8x16xf32>
    %119 = vector.extract_strided_slice %117 {offsets = [4, 0, 0], sizes = [8, 16, 64], strides = [1, 1, 1]} : vector<18x18x64xbf16> to vector<8x16x64xbf16>
    %120 = vector.extract_strided_slice %115 {offsets = [0, 0, 0], sizes = [1, 1, 64], strides = [1, 1, 1]} : vector<3x3x64xf32> to vector<1x1x64xf32>
    %121 = vector.shape_cast %120 : vector<1x1x64xf32> to vector<64xf32>
    %122 = arith.extf %119 : vector<8x16x64xbf16> to vector<8x16x64xf32>
    %123 = vector.shape_cast %121 : vector<64xf32> to vector<1x1x64xf32>
    %124 = vector.broadcast %123 : vector<1x1x64xf32> to vector<8x16x64xf32>
    %125 = arith.mulf %122, %124 : vector<8x16x64xf32>
    %cst_28 = arith.constant dense<0.000000e+00> : vector<8x16xf32>
    %126 = vector.multi_reduction <add>, %125, %cst_28 [2] : vector<8x16x64xf32> to vector<8x16xf32>
    %127 = arith.addf %118, %126 : vector<8x16xf32>
    %128 = vector.extract_strided_slice %117 {offsets = [4, 1, 0], sizes = [8, 16, 64], strides = [1, 1, 1]} : vector<18x18x64xbf16> to vector<8x16x64xbf16>
    %129 = vector.extract_strided_slice %115 {offsets = [0, 1, 0], sizes = [1, 1, 64], strides = [1, 1, 1]} : vector<3x3x64xf32> to vector<1x1x64xf32>
    %130 = vector.shape_cast %129 : vector<1x1x64xf32> to vector<64xf32>
    %131 = arith.extf %128 : vector<8x16x64xbf16> to vector<8x16x64xf32>
    %132 = vector.shape_cast %130 : vector<64xf32> to vector<1x1x64xf32>
    %133 = vector.broadcast %132 : vector<1x1x64xf32> to vector<8x16x64xf32>
    %134 = arith.mulf %131, %133 : vector<8x16x64xf32>
    %cst_29 = arith.constant dense<0.000000e+00> : vector<8x16xf32>
    %135 = vector.multi_reduction <add>, %134, %cst_29 [2] : vector<8x16x64xf32> to vector<8x16xf32>
    %136 = arith.addf %127, %135 : vector<8x16xf32>
    %137 = vector.extract_strided_slice %117 {offsets = [4, 2, 0], sizes = [8, 16, 64], strides = [1, 1, 1]} : vector<18x18x64xbf16> to vector<8x16x64xbf16>
    %138 = vector.extract_strided_slice %115 {offsets = [0, 2, 0], sizes = [1, 1, 64], strides = [1, 1, 1]} : vector<3x3x64xf32> to vector<1x1x64xf32>
    %139 = vector.shape_cast %138 : vector<1x1x64xf32> to vector<64xf32>
    %140 = arith.extf %137 : vector<8x16x64xbf16> to vector<8x16x64xf32>
    %141 = vector.shape_cast %139 : vector<64xf32> to vector<1x1x64xf32>
    %142 = vector.broadcast %141 : vector<1x1x64xf32> to vector<8x16x64xf32>
    %143 = arith.mulf %140, %142 : vector<8x16x64xf32>
    %cst_30 = arith.constant dense<0.000000e+00> : vector<8x16xf32>
    %144 = vector.multi_reduction <add>, %143, %cst_30 [2] : vector<8x16x64xf32> to vector<8x16xf32>
    %145 = arith.addf %136, %144 : vector<8x16xf32>
    %146 = vector.extract_strided_slice %117 {offsets = [5, 0, 0], sizes = [8, 16, 64], strides = [1, 1, 1]} : vector<18x18x64xbf16> to vector<8x16x64xbf16>
    %147 = vector.extract_strided_slice %115 {offsets = [1, 0, 0], sizes = [1, 1, 64], strides = [1, 1, 1]} : vector<3x3x64xf32> to vector<1x1x64xf32>
    %148 = vector.shape_cast %147 : vector<1x1x64xf32> to vector<64xf32>
    %149 = arith.extf %146 : vector<8x16x64xbf16> to vector<8x16x64xf32>
    %150 = vector.shape_cast %148 : vector<64xf32> to vector<1x1x64xf32>
    %151 = vector.broadcast %150 : vector<1x1x64xf32> to vector<8x16x64xf32>
    %152 = arith.mulf %149, %151 : vector<8x16x64xf32>
    %cst_31 = arith.constant dense<0.000000e+00> : vector<8x16xf32>
    %153 = vector.multi_reduction <add>, %152, %cst_31 [2] : vector<8x16x64xf32> to vector<8x16xf32>
    %154 = arith.addf %145, %153 : vector<8x16xf32>
    %155 = vector.extract_strided_slice %117 {offsets = [5, 1, 0], sizes = [8, 16, 64], strides = [1, 1, 1]} : vector<18x18x64xbf16> to vector<8x16x64xbf16>
    %156 = vector.extract_strided_slice %115 {offsets = [1, 1, 0], sizes = [1, 1, 64], strides = [1, 1, 1]} : vector<3x3x64xf32> to vector<1x1x64xf32>
    %157 = vector.shape_cast %156 : vector<1x1x64xf32> to vector<64xf32>
    %158 = arith.extf %155 : vector<8x16x64xbf16> to vector<8x16x64xf32>
    %159 = vector.shape_cast %157 : vector<64xf32> to vector<1x1x64xf32>
    %160 = vector.broadcast %159 : vector<1x1x64xf32> to vector<8x16x64xf32>
    %161 = arith.mulf %158, %160 : vector<8x16x64xf32>
    %cst_32 = arith.constant dense<0.000000e+00> : vector<8x16xf32>
    %162 = vector.multi_reduction <add>, %161, %cst_32 [2] : vector<8x16x64xf32> to vector<8x16xf32>
    %163 = arith.addf %154, %162 : vector<8x16xf32>
    %164 = vector.extract_strided_slice %117 {offsets = [5, 2, 0], sizes = [8, 16, 64], strides = [1, 1, 1]} : vector<18x18x64xbf16> to vector<8x16x64xbf16>
    %165 = vector.extract_strided_slice %115 {offsets = [1, 2, 0], sizes = [1, 1, 64], strides = [1, 1, 1]} : vector<3x3x64xf32> to vector<1x1x64xf32>
    %166 = vector.shape_cast %165 : vector<1x1x64xf32> to vector<64xf32>
    %167 = arith.extf %164 : vector<8x16x64xbf16> to vector<8x16x64xf32>
    %168 = vector.shape_cast %166 : vector<64xf32> to vector<1x1x64xf32>
    %169 = vector.broadcast %168 : vector<1x1x64xf32> to vector<8x16x64xf32>
    %170 = arith.mulf %167, %169 : vector<8x16x64xf32>
    %cst_33 = arith.constant dense<0.000000e+00> : vector<8x16xf32>
    %171 = vector.multi_reduction <add>, %170, %cst_33 [2] : vector<8x16x64xf32> to vector<8x16xf32>
    %172 = arith.addf %163, %171 : vector<8x16xf32>
    %173 = vector.extract_strided_slice %117 {offsets = [6, 0, 0], sizes = [8, 16, 64], strides = [1, 1, 1]} : vector<18x18x64xbf16> to vector<8x16x64xbf16>
    %174 = vector.extract_strided_slice %115 {offsets = [2, 0, 0], sizes = [1, 1, 64], strides = [1, 1, 1]} : vector<3x3x64xf32> to vector<1x1x64xf32>
    %175 = vector.shape_cast %174 : vector<1x1x64xf32> to vector<64xf32>
    %176 = arith.extf %173 : vector<8x16x64xbf16> to vector<8x16x64xf32>
    %177 = vector.shape_cast %175 : vector<64xf32> to vector<1x1x64xf32>
    %178 = vector.broadcast %177 : vector<1x1x64xf32> to vector<8x16x64xf32>
    %179 = arith.mulf %176, %178 : vector<8x16x64xf32>
    %cst_34 = arith.constant dense<0.000000e+00> : vector<8x16xf32>
    %180 = vector.multi_reduction <add>, %179, %cst_34 [2] : vector<8x16x64xf32> to vector<8x16xf32>
    %181 = arith.addf %172, %180 : vector<8x16xf32>
    %182 = vector.extract_strided_slice %117 {offsets = [6, 1, 0], sizes = [8, 16, 64], strides = [1, 1, 1]} : vector<18x18x64xbf16> to vector<8x16x64xbf16>
    %183 = vector.extract_strided_slice %115 {offsets = [2, 1, 0], sizes = [1, 1, 64], strides = [1, 1, 1]} : vector<3x3x64xf32> to vector<1x1x64xf32>
    %184 = vector.shape_cast %183 : vector<1x1x64xf32> to vector<64xf32>
    %185 = arith.extf %182 : vector<8x16x64xbf16> to vector<8x16x64xf32>
    %186 = vector.shape_cast %184 : vector<64xf32> to vector<1x1x64xf32>
    %187 = vector.broadcast %186 : vector<1x1x64xf32> to vector<8x16x64xf32>
    %188 = arith.mulf %185, %187 : vector<8x16x64xf32>
    %cst_35 = arith.constant dense<0.000000e+00> : vector<8x16xf32>
    %189 = vector.multi_reduction <add>, %188, %cst_35 [2] : vector<8x16x64xf32> to vector<8x16xf32>
    %190 = arith.addf %181, %189 : vector<8x16xf32>
    %191 = vector.extract_strided_slice %117 {offsets = [6, 2, 0], sizes = [8, 16, 64], strides = [1, 1, 1]} : vector<18x18x64xbf16> to vector<8x16x64xbf16>
    %192 = vector.extract_strided_slice %115 {offsets = [2, 2, 0], sizes = [1, 1, 64], strides = [1, 1, 1]} : vector<3x3x64xf32> to vector<1x1x64xf32>
    %193 = vector.shape_cast %192 : vector<1x1x64xf32> to vector<64xf32>
    %194 = arith.extf %191 : vector<8x16x64xbf16> to vector<8x16x64xf32>
    %195 = vector.shape_cast %193 : vector<64xf32> to vector<1x1x64xf32>
    %196 = vector.broadcast %195 : vector<1x1x64xf32> to vector<8x16x64xf32>
    %197 = arith.mulf %194, %196 : vector<8x16x64xf32>
    %cst_36 = arith.constant dense<0.000000e+00> : vector<8x16xf32>
    %198 = vector.multi_reduction <add>, %197, %cst_36 [2] : vector<8x16x64xf32> to vector<8x16xf32>
    %199 = arith.addf %190, %198 : vector<8x16xf32>
    %200 = vector.extract_strided_slice %4 {offsets = [5, 0], sizes = [8, 16], strides = [1, 1]} : vector<18x16xf32> to vector<8x16xf32>
    %201 = arith.subf %200, %199 : vector<8x16xf32>
    %c0_37 = arith.constant 0 : index
    %c0_38 = arith.constant 0 : index
    %c0_39 = arith.constant 0 : index
    %202 = vector.load %arg8[%c0_37, %c0_38, %c0_39] : memref<1x8x16xf32, #tpu.memory_space<vmem>>, vector<1x8x16xf32>
    %203 = vector.shape_cast %202 : vector<1x8x16xf32> to vector<8x16xf32>
    %204 = vector.shape_cast %201 : vector<8x16xf32> to vector<1x8x16xf32>
    tpu.vector_store %arg8[%c0_37, %c0_38, %c0_39], %204 {strides = array<i32>} : memref<1x8x16xf32, #tpu.memory_space<vmem>>, vector<1x8x16xf32>,
    return
  }
  func.func @transform_0(%arg0: i32, %arg1: i32) -> (i32, i32, i32) {
    %c0_i32 = arith.constant 0 : i32
    %c0_i32_0 = arith.constant 0 : i32
    %c0_i32_1 = arith.constant 0 : i32
    return %arg0, %c0_i32, %c0_i32_0 : i32, i32, i32
  }
  func.func @transform_1(%arg0: i32, %arg1: i32) -> (i32, i32) {
    %c0_i32 = arith.constant 0 : i32
    %c0_i32_0 = arith.constant 0 : i32
    %c0_i32_1 = arith.constant 0 : i32
    return %c0_i32, %c0_i32_0 : i32, i32
  }
  func.func @transform_2(%arg0: i32, %arg1: i32) -> (i32, i32) {
    %c0_i32 = arith.constant 0 : i32
    %c0_i32_0 = arith.constant 0 : i32
    %c0_i32_1 = arith.constant 0 : i32
    return %c0_i32, %c0_i32_0 : i32, i32
  }
  func.func @transform_3(%arg0: i32, %arg1: i32) -> (i32, i32, i32, i32) {
    %c0_i32 = arith.constant 0 : i32
    %c0_i32_0 = arith.constant 0 : i32
    %c0_i32_1 = arith.constant 0 : i32
    %c0_i32_2 = arith.constant 0 : i32
    %c0_i32_3 = arith.constant 0 : i32
    return %c0_i32, %c0_i32_0, %c0_i32_1, %c0_i32_2 : i32, i32, i32, i32
  }
  func.func @transform_4(%arg0: i32, %arg1: i32) -> (i32, i32, i32) {
    %c0_i32 = arith.constant 0 : i32
    %c0_i32_0 = arith.constant 0 : i32
    %c0_i32_1 = arith.constant 0 : i32
    %c0_i32_2 = arith.constant 0 : i32
    return %c0_i32, %c0_i32_0, %c0_i32_1 : i32, i32, i32
  }
  func.func @transform_5(%arg0: i32, %arg1: i32) -> (i32, i32, i32) {
    %c0_i32 = arith.constant 0 : i32
    %c0_i32_0 = arith.constant 0 : i32
    %c0_i32_1 = arith.constant 0 : i32
    %c0_i32_2 = arith.constant 0 : i32
    return %c0_i32, %c0_i32_0, %c0_i32_1 : i32, i32, i32
  }
  func.func @transform_6(%arg0: i32, %arg1: i32) -> (i32, i32, i32) {
    %c0_i32 = arith.constant 0 : i32
    %c0_i32_0 = arith.constant 0 : i32
    return %arg0, %arg1, %c0_i32 : i32, i32, i32
  }
}

</mosaic_0001>

<llo_original>
// kernel: tpu_custom_call.1
$region0: #{tpu_custom_call.1}
  #allocation0 [shape = 'u32[]', space=smem, size = 0x4, offset = 0x4, fixed_abs, tag = 'smem constant byte address 0x4 - core index']
  #allocation1 [shape = 'u32[144,128]{1,0:T(1,128)}', space=vmem, size = 0x12000, scoped, tag = 'internal scratch']
  #allocation2 [shape = 'bf16[18,16,64]{2,1,0:T(16,128)(2,1)}', space=vmem, size = 0x12000, scoped, tag = 'scratch operand']
  #allocation3 [shape = 'bf16[20,16,192]{2,1,0:T(16,128)(2,1)}', space=vmem, size = 0x28000, scoped, tag = 'scratch operand']
  #allocation4 [shape = 'f32[18,16,64]{2,1,0:T(8,128)}', space=vmem, size = 0x24000, scoped, tag = 'scratch operand']
  %s0 = inlined_call_operand.hbm [shape: f32[2,26,16], index: 0, kind: input, shape index: {}]
  %s1 = inlined_call_operand.hbm [shape: f32[9,64], index: 1, kind: input, shape index: {}]
  %s2 = inlined_call_operand.hbm [shape: f32[2,64], index: 2, kind: input, shape index: {}]
  %s3 = inlined_call_operand.hbm [shape: bf16[3,3,192,64], index: 3, kind: input, shape index: {}]
  %s4 = inlined_call_operand.hbm [shape: f32[3,2,64], index: 4, kind: input, shape index: {}]
  %s5 = inlined_call_operand.hbm [shape: f32[3,3,64], index: 5, kind: input, shape index: {}]
  %s6 = inlined_call_operand.hbm [shape: f32[2,16,16], index: 6, kind: output, shape index: {}]
  %s7 = sld [smem:[#allocation0]]
  $region88: #{tpu_custom_call.1} parent=0
    _
  %s9 = ssub.s32 1, %s7
  %s10 = scalar_select 0, %s9, %s7
  $region1: #{tpu_custom_call.1} parent=0
    #allocation5 [shape = 'u8[32768]{0}', space=vmem, size = 0x8000, scoped, tag = 'input window, operand 0']
    #allocation6 [shape = 's32[2]{0}', space=sflag, size = 0x8, scoped, tag = 'scoped memory for tpu_custom_call.1']
    #allocation7 [shape = 's32[2]{0}', space=sflag, size = 0x8, scoped, tag = 'scoped memory for tpu_custom_call.1']
    #allocation8 [shape = 'u8[8192]{0}', space=vmem, size = 0x2000, scoped, tag = 'input window, operand 1, single buffered']
    #allocation9 [shape = 's32[1]{0}', space=sflag, size = 0x4, scoped, tag = 'scoped memory for tpu_custom_call.1']
    #allocation10 [shape = 'u8[1024]{0}', space=vmem, size = 0x400, scoped, tag = 'input window, operand 2, single buffered']
    #allocation11 [shape = 'u8[442368]{0}', space=vmem, size = 0x6c000, scoped, tag = 'input window, operand 3, single buffered']
    #allocation12 [shape = 's32[1]{0}', space=sflag, size = 0x4, scoped, tag = 'scoped memory for tpu_custom_call.1']
    #allocation13 [shape = 'u8[3072]{0}', space=vmem, size = 0xc00, scoped, tag = 'input window, operand 4, single buffered']
    #allocation14 [shape = 'u8[6144]{0}', space=vmem, size = 0x1800, scoped, tag = 'input window, operand 5, single buffered']
    #allocation15 [shape = 's32[1]{0}', space=sflag, size = 0x4, scoped, tag = 'scoped memory for tpu_custom_call.1']
    #allocation16 [shape = 'u8[8192]{0}', space=vmem, size = 0x2000, scoped, tag = 'output window, operand 0']
    %11 = vsyncpa [#allocation6], 0
    %s12 = scalar_lea.sflag [#allocation6], 1
    %13 = vsyncpa %s12, 0
    %14 = vsyncpa [#allocation9], 0
    %15 = vsyncpa [#allocation12], 0
    %16 = vsyncpa [#allocation15], 0
    %17 = vsyncpa [#allocation7], 0
    %s18 = scalar_lea.sflag [#allocation7], 1
    %19 = vsyncpa %s18, 0
    loop: start=0, step=1, limit=6
    $region2: #{tpu_custom_call.1} parent=1 // loop_pre_header
      _
    $region3: #{tpu_custom_call.1} parent=1 // loop_header
      %s21 = sphi 0, %s25
      %p22 = scmp.ge.s32.totalorder %s21, 6
      %s28 = sphi 0, %s40
      %s29 = sphi 0, %s36
      %s30 = sphi 0, %s28
      %s31 = sphi 0, %s29
      %s32 = sphi 0, %s30
      %s33 = sphi 0, %s31
      %s43 = sphi 0, %s45
      %s46 = sphi 0, %s43
      %s47 = sphi 0, %s46
      %s63 = sphi 0, %s47
      %s67 = sphi 0, %s67
      %s69 = sphi 0, %s67
      %s70 = sphi 0, %s69
      %s84 = sphi 0, %s70
      %s88 = sphi 0, %s88
      %s90 = sphi 0, %s88
      %s91 = sphi 0, %s90
      %s105 = sphi 0, %s91
      %s109 = sphi 0, %s109
      %s111 = sphi 0, %s109
      %s112 = sphi 0, %s111
      %s126 = sphi 0, %s112
      %s130 = sphi 0, %s130
      %s132 = sphi 0, %s130
      %s133 = sphi 0, %s132
      %s147 = sphi 0, %s133
      %s151 = sphi 0, %s151
      %s153 = sphi 0, %s151
      %s154 = sphi 0, %s153
      %s168 = sphi 0, %s154
      %s176 = sphi 0, %s178
      %s179 = sphi 0, %s176
      %s180 = sphi 0, %s179
      %s196 = sphi 0, %s180
    $region4: #{tpu_custom_call.1} parent=1 // loop_header_branch
      %24 = sbr.rel (%p22) target = $region8
    $region5: #{tpu_custom_call.1} parent=1 // loop_body
      %s26 = ssub.s32 %s21, 1
      %s27 = ssub.s32 %s21, 2
      %s34 = sadd.s32 1, %s29
      %p35 = scmp.ge.s32.totalorder %s34, 2
      %s36 = scalar_select %p35, 0, %s34
      %s37 = sadd.s32 1, %s28
      %s38 = scalar_select %p35, %s37, %s28
      %p39 = scmp.ge.s32.totalorder %s38, 2
      %s40 = scalar_select %p39, 0, %s38
      %s41 = ssub.s32 %s28, %s40
      %p42 = scmp.eq.s32.totalorder %s41, 0
      %s44 = sadd.s32 %s43, 1
      %s45 = scalar_select %p42, %s43, %s44
      %p48 = pneg %p42
      %p49 = scmp.eq.s32.totalorder %s21, 3
      %p50 = por %p48, %p49
      %p51 = scmp.ne.s32.totalorder %s43, %s46
      %p52 = scmp.eq.s32.totalorder %s21, 0
      %p53 = por %p51, %p52
      %p54 = scmp.ne.s32.totalorder %s43, %s46
      %p55 = scmp.eq.s32.totalorder %s26, 3
      %p56 = por %p54, %p55
      %p57 = scmp.ne.s32.totalorder %s46, %s47
      %p58 = scmp.eq.s32.totalorder %s26, 0
      %p59 = por %p57, %p58
      %p60 = scmp.ne.s32.totalorder %s46, %s47
      %p61 = scmp.eq.s32.totalorder %s27, 3
      %p62 = por %p60, %p61
      %p64 = scmp.ne.s32.totalorder %s47, %s63
      %p65 = scmp.eq.s32.totalorder %s27, 0
      %p66 = por %p64, %p65
      %s68 = sadd.s32 %s67, 1
      %p71 = scmp.eq.s32.totalorder %s21, 3
      %p72 = scmp.ne.s32.totalorder %s67, %s69
      %p73 = scmp.eq.s32.totalorder %s21, 0
      %p74 = por %p72, %p73
      %p75 = scmp.ne.s32.totalorder %s67, %s69
      %p76 = scmp.eq.s32.totalorder %s26, 3
      %p77 = por %p75, %p76
      %p78 = scmp.ne.s32.totalorder %s69, %s70
      %p79 = scmp.eq.s32.totalorder %s26, 0
      %p80 = por %p78, %p79
      %p81 = scmp.ne.s32.totalorder %s69, %s70
      %p82 = scmp.eq.s32.totalorder %s27, 3
      %p83 = por %p81, %p82
      %p85 = scmp.ne.s32.totalorder %s70, %s84
      %p86 = scmp.eq.s32.totalorder %s27, 0
      %p87 = por %p85, %p86
      %s89 = sadd.s32 %s88, 1
      %p92 = scmp.eq.s32.totalorder %s21, 3
      %p93 = scmp.ne.s32.totalorder %s88, %s90
      %p94 = scmp.eq.s32.totalorder %s21, 0
      %p95 = por %p93, %p94
      %p96 = scmp.ne.s32.totalorder %s88, %s90
      %p97 = scmp.eq.s32.totalorder %s26, 3
      %p98 = por %p96, %p97
      %p99 = scmp.ne.s32.totalorder %s90, %s91
      %p100 = scmp.eq.s32.totalorder %s26, 0
      %p101 = por %p99, %p100
      %p102 = scmp.ne.s32.totalorder %s90, %s91
      %p103 = scmp.eq.s32.totalorder %s27, 3
      %p104 = por %p102, %p103
      %p106 = scmp.ne.s32.totalorder %s91, %s105
      %p107 = scmp.eq.s32.totalorder %s27, 0
      %p108 = por %p106, %p107
      %s110 = sadd.s32 %s109, 1
      %p113 = scmp.eq.s32.totalorder %s21, 3
      %p114 = scmp.ne.s32.totalorder %s109, %s111
      %p115 = scmp.eq.s32.totalorder %s21, 0
      %p116 = por %p114, %p115
      %p117 = scmp.ne.s32.totalorder %s109, %s111
      %p118 = scmp.eq.s32.totalorder %s26, 3
      %p119 = por %p117, %p118
      %p120 = scmp.ne.s32.totalorder %s111, %s112
      %p121 = scmp.eq.s32.totalorder %s26, 0
      %p122 = por %p120, %p121
      %p123 = scmp.ne.s32.totalorder %s111, %s112
      %p124 = scmp.eq.s32.totalorder %s27, 3
      %p125 = por %p123, %p124
      %p127 = scmp.ne.s32.totalorder %s112, %s126
      %p128 = scmp.eq.s32.totalorder %s27, 0
      %p129 = por %p127, %p128
      %s131 = sadd.s32 %s130, 1
      %p134 = scmp.eq.s32.totalorder %s21, 3
      %p135 = scmp.ne.s32.totalorder %s130, %s132
      %p136 = scmp.eq.s32.totalorder %s21, 0
      %p137 = por %p135, %p136
      %p138 = scmp.ne.s32.totalorder %s130, %s132
      %p139 = scmp.eq.s32.totalorder %s26, 3
      %p140 = por %p138, %p139
      %p141 = scmp.ne.s32.totalorder %s132, %s133
      %p142 = scmp.eq.s32.totalorder %s26, 0
      %p143 = por %p141, %p142
      %p144 = scmp.ne.s32.totalorder %s132, %s133
      %p145 = scmp.eq.s32.totalorder %s27, 3
      %p146 = por %p144, %p145
      %p148 = scmp.ne.s32.totalorder %s133, %s147
      %p149 = scmp.eq.s32.totalorder %s27, 0
      %p150 = por %p148, %p149
      %s152 = sadd.s32 %s151, 1
      %p155 = scmp.eq.s32.totalorder %s21, 3
      %p156 = scmp.ne.s32.totalorder %s151, %s153
      %p157 = scmp.eq.s32.totalorder %s21, 0
      %p158 = por %p156, %p157
      %p159 = scmp.ne.s32.totalorder %s151, %s153
      %p160 = scmp.eq.s32.totalorder %s26, 3
      %p161 = por %p159, %p160
      %p162 = scmp.ne.s32.totalorder %s153, %s154
      %p163 = scmp.eq.s32.totalorder %s26, 0
      %p164 = por %p162, %p163
      %p165 = scmp.ne.s32.totalorder %s153, %s154
      %p166 = scmp.eq.s32.totalorder %s27, 3
      %p167 = por %p165, %p166
      %p169 = scmp.ne.s32.totalorder %s154, %s168
      %p170 = scmp.eq.s32.totalorder %s27, 0
      %p171 = por %p169, %p170
      %s172 = ssub.s32 %s28, %s40
      %s173 = ssub.s32 %s29, %s36
      %s174 = sor.u32 %s172, %s173
      %p175 = scmp.eq.s32.totalorder %s174, 0
      %s177 = sadd.s32 %s176, 1
      %s178 = scalar_select %p175, %s176, %s177
      %p181 = pneg %p175
      %p182 = scmp.eq.s32.totalorder %s21, 3
      %p183 = por %p181, %p182
      %p184 = scmp.ne.s32.totalorder %s176, %s179
      %p185 = scmp.eq.s32.totalorder %s21, 0
      %p186 = por %p184, %p185
      %p187 = scmp.ne.s32.totalorder %s176, %s179
      %p188 = scmp.eq.s32.totalorder %s26, 3
      %p189 = por %p187, %p188
      %p190 = scmp.ne.s32.totalorder %s179, %s180
      %p191 = scmp.eq.s32.totalorder %s26, 0
      %p192 = por %p190, %p191
      %p193 = scmp.ne.s32.totalorder %s179, %s180
      %p194 = scmp.eq.s32.totalorder %s27, 3
      %p195 = por %p193, %p194
      %p197 = scmp.ne.s32.totalorder %s180, %s196
      %p198 = scmp.eq.s32.totalorder %s27, 0
      %p199 = por %p197, %p198
      %p200 = scmp.le.s32.totalorder 1, %s21
      %p201 = scmp.lt.s32.totalorder %s21, 5
      %p202 = pnand %p200, %p201
      %p203 = pneg %p202
      // Predicated region
      $region9: #{tpu_custom_call.1} parent=5 // pred_check
        _
      $region10: #{tpu_custom_call.1} parent=5 // pred_check_branch
        %205 = sbr.rel (%p202) target = $region12
      $region11: #{tpu_custom_call.1} parent=5 // pred_region
        %s206 = ssub.s32 %s21, 1
        // Predicated region
        $region13: #{tpu_custom_call.1} parent=11 // pred_check
          %p207 = pneg %p80
        $region14: #{tpu_custom_call.1} parent=11 // pred_check_branch
          %209 = sbr.rel (%p207) target = $region16
        $region15: #{tpu_custom_call.1} parent=11 // pred_region
          %s211 = ssub.s32 256, 256
          %212 = vsyncadd [#allocation9], %s211
          %s213 = sshll.u32 [#allocation8], 4
          %s214 = int_to_ptr.vmem [resolvable:$true] %s213
          %219 = dma.hbm_to_vmem [thread:$0]  %s1, 256, %s214, [#allocation9], 128, 128, 8
        $region16: #{tpu_custom_call.1} parent=11 // pred_fallthru
          _
        // Predicated region
        $region17: #{tpu_custom_call.1} parent=11 // pred_check
          %p220 = pneg %p101
        $region18: #{tpu_custom_call.1} parent=11 // pred_check_branch
          %222 = sbr.rel (%p220) target = $region20
        $region19: #{tpu_custom_call.1} parent=11 // pred_region
          %s224 = ssub.s32 32, 32
          %225 = vsyncadd [#allocation9], %s224
          %s227 = sshll.u32 [#allocation10], 4
          %s228 = int_to_ptr.vmem [resolvable:$true] %s227
          %230 = dma.hbm_to_vmem [thread:$0]  %s2, 32, %s228, [#allocation9]
        $region20: #{tpu_custom_call.1} parent=11 // pred_fallthru
          _
        // Predicated region
        $region21: #{tpu_custom_call.1} parent=11 // pred_check
          %p231 = pneg %p122
        $region22: #{tpu_custom_call.1} parent=11 // pred_check_branch
          %233 = sbr.rel (%p231) target = $region24
        $region23: #{tpu_custom_call.1} parent=11 // pred_region
          %s235 = ssub.s32 13824, 13824
          %236 = vsyncadd [#allocation12], %s235
          %s237 = sshll.u32 [#allocation11], 4
          %s238 = int_to_ptr.vmem [resolvable:$true] %s237
          %243 = dma.hbm_to_vmem [thread:$0]  %s3, 13824, %s238, [#allocation12], 64, 64, 4
        $region24: #{tpu_custom_call.1} parent=11 // pred_fallthru
          _
        // Predicated region
        $region25: #{tpu_custom_call.1} parent=11 // pred_check
          %p244 = pneg %p143
        $region26: #{tpu_custom_call.1} parent=11 // pred_check_branch
          %246 = sbr.rel (%p244) target = $region28
        $region27: #{tpu_custom_call.1} parent=11 // pred_region
          %s248 = ssub.s32 96, 96
          %249 = vsyncadd [#allocation12], %s248
          %s250 = sshll.u32 [#allocation13], 4
          %s251 = int_to_ptr.vmem [resolvable:$true] %s250
          %256 = dma.hbm_to_vmem [thread:$0]  %s4, 96, %s251, [#allocation12], 32, 32, 2
        $region28: #{tpu_custom_call.1} parent=11 // pred_fallthru
          _
        // Predicated region
        $region29: #{tpu_custom_call.1} parent=11 // pred_check
          %p257 = pneg %p164
        $region30: #{tpu_custom_call.1} parent=11 // pred_check_branch
          %259 = sbr.rel (%p257) target = $region32
        $region31: #{tpu_custom_call.1} parent=11 // pred_region
          %s261 = ssub.s32 192, 192
          %262 = vsyncadd [#allocation15], %s261
          %s263 = sshll.u32 [#allocation14], 4
          %s264 = int_to_ptr.vmem [resolvable:$true] %s263
          %269 = dma.hbm_to_vmem [thread:$0]  %s5, 192, %s264, [#allocation15], 64, 64, 4
        $region32: #{tpu_custom_call.1} parent=11 // pred_fallthru
          _
      $region12: #{tpu_custom_call.1} parent=5 // pred_fallthru
        _
      %p270 = scmp.lt.s32.totalorder %s21, 4
      // Predicated region
      $region33: #{tpu_custom_call.1} parent=5 // pred_check
        %p271 = pneg %p270
      $region34: #{tpu_custom_call.1} parent=5 // pred_check_branch
        %273 = sbr.rel (%p271) target = $region36
      $region35: #{tpu_custom_call.1} parent=5 // pred_region
        // Predicated region
        $region37: #{tpu_custom_call.1} parent=35 // pred_check
          %p274 = pneg %p53
        $region38: #{tpu_custom_call.1} parent=35 // pred_check_branch
          %276 = sbr.rel (%p274) target = $region40
        $region39: #{tpu_custom_call.1} parent=35 // pred_region
          %s277 = sand.u32 %s43, 1
          %s278 = scalar_lea.sflag [#allocation6], %s277
          %s279 = sand.u32 %s43, 1
          %s280 = smul.addr %s279, 32
          %s281 = scalar_lea.vmem [#allocation5], %s280
          %s283 = ssub.s32 512, 512
          %284 = vsyncadd %s278, %s283
          %s285 = smul.addr %s28, 4
          %s286 = smul.addr %s285, 128
          %s287 = scalar_lea.hbm %s0, %s286
          %s288 = sshll.u32 %s281, 4
          %s289 = int_to_ptr.vmem [resolvable:$true] %s288
          %294 = dma.hbm_to_vmem [thread:$0]  %s287, 512, %s289, %s278, 128, 128, 8
        $region40: #{tpu_custom_call.1} parent=35 // pred_fallthru
          _
      $region36: #{tpu_custom_call.1} parent=5 // pred_fallthru
        _
      %p295 = scmp.le.s32.totalorder 1, %s21
      %p296 = scmp.lt.s32.totalorder %s21, 5
      %p297 = pnand %p295, %p296
      %p298 = pneg %p297
      // Predicated region
      $region41: #{tpu_custom_call.1} parent=5 // pred_check
        _
      $region42: #{tpu_custom_call.1} parent=5 // pred_check_branch
        %300 = sbr.rel (%p297) target = $region44
      $region43: #{tpu_custom_call.1} parent=5 // pred_region
        %s301 = ssub.s32 %s21, 1
        %s302 = sand.u32 %s46, 1
        %s303 = scalar_lea.sflag [#allocation6], %s302
        %s304 = sand.u32 %s46, 1
        %s305 = smul.addr %s304, 32
        %s306 = scalar_lea.vmem [#allocation5], %s305
        // Predicated region
        $region45: #{tpu_custom_call.1} parent=43 // pred_check
          %p307 = pneg %p59
        $region46: #{tpu_custom_call.1} parent=43 // pred_check_branch
          %309 = sbr.rel (%p307) target = $region48
        $region47: #{tpu_custom_call.1} parent=43 // pred_region
          %310 = dma.done %s303, 512
        $region48: #{tpu_custom_call.1} parent=43 // pred_fallthru
          _
        // Predicated region
        $region49: #{tpu_custom_call.1} parent=43 // pred_check
          %p311 = pneg %p80
        $region50: #{tpu_custom_call.1} parent=43 // pred_check_branch
          %313 = sbr.rel (%p311) target = $region52
        $region51: #{tpu_custom_call.1} parent=43 // pred_region
          %314 = dma.done [#allocation9], 256
        $region52: #{tpu_custom_call.1} parent=43 // pred_fallthru
          _
        // Predicated region
        $region53: #{tpu_custom_call.1} parent=43 // pred_check
          %p315 = pneg %p101
        $region54: #{tpu_custom_call.1} parent=43 // pred_check_branch
          %317 = sbr.rel (%p315) target = $region56
        $region55: #{tpu_custom_call.1} parent=43 // pred_region
          %318 = dma.done [#allocation9], 32
        $region56: #{tpu_custom_call.1} parent=43 // pred_fallthru
          _
        // Predicated region
        $region57: #{tpu_custom_call.1} parent=43 // pred_check
          %p319 = pneg %p122
        $region58: #{tpu_custom_call.1} parent=43 // pred_check_branch
          %321 = sbr.rel (%p319) target = $region60
        $region59: #{tpu_custom_call.1} parent=43 // pred_region
          %322 = dma.done [#allocation12], 13824
        $region60: #{tpu_custom_call.1} parent=43 // pred_fallthru
          _
        // Predicated region
        $region61: #{tpu_custom_call.1} parent=43 // pred_check
          %p323 = pneg %p143
        $region62: #{tpu_custom_call.1} parent=43 // pred_check_branch
          %325 = sbr.rel (%p323) target = $region64
        $region63: #{tpu_custom_call.1} parent=43 // pred_region
          %326 = dma.done [#allocation12], 96
        $region64: #{tpu_custom_call.1} parent=43 // pred_fallthru
          _
        // Predicated region
        $region65: #{tpu_custom_call.1} parent=43 // pred_check
          %p327 = pneg %p164
        $region66: #{tpu_custom_call.1} parent=43 // pred_check_branch
          %329 = sbr.rel (%p327) target = $region68
        $region67: #{tpu_custom_call.1} parent=43 // pred_region
          %330 = dma.done [#allocation15], 192
        $region68: #{tpu_custom_call.1} parent=43 // pred_fallthru
          _
        %s331 = sand.u32 %s46, 1
        %s332 = scalar_lea.sflag [#allocation6], %s331
        %s333 = sand.u32 %s46, 1
        %s334 = smul.addr %s333, 32
        %s335 = scalar_lea.vmem [#allocation5], %s334
        %p336 = pneg %p59
        %p337 = pneg %p56
        %p338 = pneg %p80
        %p339 = pneg %p77
        %p340 = pneg %p101
        %p341 = pneg %p98
        %p342 = pneg %p122
        %p343 = pneg %p119
        %p344 = pneg %p143
        %p345 = pneg %p140
        %p346 = pneg %p164
        %p347 = pneg %p161
        %p348 = pneg %p192
        %p349 = pneg %p189
        %s350 = sand.u32 %s179, 1
        %s351 = scalar_lea.sflag [#allocation7], %s350
        %s352 = sand.u32 %s179, 1
        %s353 = smul.addr %s352, 8
        %s354 = scalar_lea.vmem [#allocation16], %s353
        %s356 = smul.u32 %s31, 8
        %s357 = scalar_lea.vmem %s306, %s356 [#allocation5]
        %v358 = vld [vmem:[%s357] sm:$0xff]
        %v359 = vld [vmem:[%s357 + $0x8] sm:$0xff]
        %v360 = vld [vmem:[%s357 + $0x10] sm:$0x3]
        %s361 = ssub.s32 %s356, 5
        %v362 = vstv %s361
        %v363 = vadd.s32 %v362, 1
        %v364 = vadd.s32 %v362, 2
        %v365 = vadd.s32 %v362, 3
        %v366 = vadd.s32 %v362, 4
        %v367 = vadd.s32 %v362, 5
        %v368 = vadd.s32 %v362, 6
        %v369 = vadd.s32 %v362, 7
        %v370 = vadd.s32 %v362, 8
        %v371 = vadd.s32 %v362, 9
        %v372 = vadd.s32 %v362, 10
        %v373 = vadd.s32 %v362, 11
        %v374 = vadd.s32 %v362, 12
        %v375 = vadd.s32 %v362, 13
        %v376 = vadd.s32 %v362, 14
        %v377 = vadd.s32 %v362, 15
        %v378 = vadd.s32 %v362, 16
        %v379 = vadd.s32 %v362, 17
        %vm380 = vcmp.ge.s32.totalorder %v362, 0
        %vm381 = vcmp.ge.s32.totalorder %v363, 0
        %vm382 = vcmp.ge.s32.totalorder %v364, 0
        %vm383 = vcmp.ge.s32.totalorder %v365, 0
        %vm384 = vcmp.ge.s32.totalorder %v366, 0
        %vm385 = vcmp.ge.s32.totalorder %v367, 0
        %vm386 = vcmp.ge.s32.totalorder %v368, 0
        %vm387 = vcmp.ge.s32.totalorder %v369, 0
        %vm388 = vcmp.ge.s32.totalorder %v370, 0
        %vm389 = vcmp.ge.s32.totalorder %v371, 0
        %vm390 = vcmp.ge.s32.totalorder %v372, 0
        %vm391 = vcmp.ge.s32.totalorder %v373, 0
        %vm392 = vcmp.ge.s32.totalorder %v374, 0
        %vm393 = vcmp.ge.s32.totalorder %v375, 0
        %vm394 = vcmp.ge.s32.totalorder %v376, 0
        %vm395 = vcmp.ge.s32.totalorder %v377, 0
        %vm396 = vcmp.ge.s32.totalorder %v378, 0
        %vm397 = vcmp.ge.s32.totalorder %v379, 0
        %vm398 = vcmp.lt.s32.totalorder %v362, 16
        %vm399 = vcmp.lt.s32.totalorder %v363, 16
        %vm400 = vcmp.lt.s32.totalorder %v364, 16
        %vm401 = vcmp.lt.s32.totalorder %v365, 16
        %vm402 = vcmp.lt.s32.totalorder %v366, 16
        %vm403 = vcmp.lt.s32.totalorder %v367, 16
        %vm404 = vcmp.lt.s32.totalorder %v368, 16
        %vm405 = vcmp.lt.s32.totalorder %v369, 16
        %vm406 = vcmp.lt.s32.totalorder %v370, 16
        %vm407 = vcmp.lt.s32.totalorder %v371, 16
        %vm408 = vcmp.lt.s32.totalorder %v372, 16
        %vm409 = vcmp.lt.s32.totalorder %v373, 16
        %vm410 = vcmp.lt.s32.totalorder %v374, 16
        %vm411 = vcmp.lt.s32.totalorder %v375, 16
        %vm412 = vcmp.lt.s32.totalorder %v376, 16
        %vm413 = vcmp.lt.s32.totalorder %v377, 16
        %vm414 = vcmp.lt.s32.totalorder %v378, 16
        %vm415 = vcmp.lt.s32.totalorder %v379, 16
        %vm416 = vmand %vm380, %vm398
        %vm417 = vmand %vm381, %vm399
        %vm418 = vmand %vm382, %vm400
        %vm419 = vmand %vm383, %vm401
        %vm420 = vmand %vm384, %vm402
        %vm421 = vmand %vm385, %vm403
        %vm422 = vmand %vm386, %vm404
        %vm423 = vmand %vm387, %vm405
        %vm424 = vmand %vm388, %vm406
        %vm425 = vmand %vm389, %vm407
        %vm426 = vmand %vm390, %vm408
        %vm427 = vmand %vm391, %vm409
        %vm428 = vmand %vm392, %vm410
        %vm429 = vmand %vm393, %vm411
        %vm430 = vmand %vm394, %vm412
        %vm431 = vmand %vm395, %vm413
        %vm432 = vmand %vm396, %vm414
        %vm433 = vmand %vm397, %vm415
        %v434 = vsel %vm416, 1, 0
        %v435 = vsel %vm417, 1, 0
        %v436 = vsel %vm418, 1, 0
        %v437 = vsel %vm419, 1, 0
        %v438 = vsel %vm420, 1, 0
        %v439 = vsel %vm421, 1, 0
        %v440 = vsel %vm422, 1, 0
        %v441 = vsel %vm423, 1, 0
        %v442 = vsel %vm424, 1, 0
        %v443 = vsel %vm425, 1, 0
        %v444 = vsel %vm426, 1, 0
        %v445 = vsel %vm427, 1, 0
        %v446 = vsel %vm428, 1, 0
        %v447 = vsel %vm429, 1, 0
        %v448 = vsel %vm430, 1, 0
        %v449 = vsel %vm431, 1, 0
        %v450 = vsel %vm432, 1, 0
        %v451 = vsel %vm433, 1, 0
        %v452 = vcvt.s32.f32 %v434
        %v453 = vcvt.s32.f32 %v435
        %v454 = vcvt.s32.f32 %v436
        %v455 = vcvt.s32.f32 %v437
        %v456 = vcvt.s32.f32 %v438
        %v457 = vcvt.s32.f32 %v439
        %v458 = vcvt.s32.f32 %v440
        %v459 = vcvt.s32.f32 %v441
        %v460 = vcvt.s32.f32 %v442
        %v461 = vcvt.s32.f32 %v443
        %v462 = vcvt.s32.f32 %v444
        %v463 = vcvt.s32.f32 %v445
        %v464 = vcvt.s32.f32 %v446
        %v465 = vcvt.s32.f32 %v447
        %v466 = vcvt.s32.f32 %v448
        %v467 = vcvt.s32.f32 %v449
        %v468 = vcvt.s32.f32 %v450
        %v469 = vcvt.s32.f32 %v451
        %470 = vst [vmem:[#allocation3] sm:$0xff] 0
        %vm471 = vcmask 523264
        %472 = vst.msk [vmem:[#allocation3 + $0x8] sm:$0xff] %vm471, 0
        %s473 = scalar_lea.vmem [#allocation3], 304
        %474 = vst [vmem:[%s473] sm:$0xff] 0
        %475 = vst.msk [vmem:[%s473 + $0x8] sm:$0xff] %vm471, 0
        %v476 = vld [vmem:[#allocation8] sm:$0xff]
        %v477 = vld [vmem:[#allocation8 + $0x8] sm:$0x1]
        %v478 = vld [vmem:[#allocation10] sm:$0x3]
        %482 = vrot.lane.b32.xlu0 %v358, 1
        %v483 = vpop.permute.xlu0 %482
        %484 = vrot.lane.b32.xlu0 %v359, 1
        %v485 = vpop.permute.xlu0 %484
        %486 = vrot.lane.b32.xlu0 %v360, 1
        %v487 = vpop.permute.xlu0 %486
        %vm491 = vcmask 7168
        %v492 = vsel %vm491, 0.0, %v483
        %v493 = vsel %vm491, 0.0, %v485
        %v494 = vsel %vm491, 0.0, %v487
        %vm495 = vcmask 138240
        %v496 = vsel %vm495, %v492, 0.0
        %v497 = vsel %vm495, %v493, 0.0
        %v498 = vsel %vm495, %v494, 0.0
        %vm502 = vcmask 1040384
        %v503 = vrot.slane %v496, 7
        %v504 = vrot.slane %v497, 7
        %v505 = vsel %vm502, %v503, %v504
        %v506 = vrot.slane %v498, 7
        %v507 = vsel %vm502, %v504, %v506
        %v511 = vsel %vm502, 0.0, %v503
        %vm512 = vcmask 1042432
        %v513 = vsel %vm512, %v507, 0.0
        %v514 = vlaneseq
        %v515 = vshrl.u32 %v514, 7
        %v516 = vsub.s32 0, %v515
        %v517 = vrot.slane %v511, %v516
        %519 = vbcast.lane.b32.xlu0 %v517, 256
        %v520 = vpop.permute.xlu0 %519
        %s522 = sor.u32 256, 8
        %523 = vbcast.lane.b32.xlu0 %v517, %s522
        %v524 = vpop.permute.xlu0 %523
        %v525 = vlaneseq
        %v526 = vshrl.u32 %v525, 7
        %v527 = vsub.s32 1, %v526
        %v528 = vrot.slane %v511, %v527
        %530 = vbcast.lane.b32.xlu0 %v528, 256
        %v531 = vpop.permute.xlu0 %530
        %s533 = sor.u32 256, 8
        %534 = vbcast.lane.b32.xlu0 %v528, %s533
        %v535 = vpop.permute.xlu0 %534
        %v536 = vlaneseq
        %v537 = vshrl.u32 %v536, 7
        %v538 = vsub.s32 2, %v537
        %v539 = vrot.slane %v511, %v538
        %541 = vbcast.lane.b32.xlu0 %v539, 256
        %v542 = vpop.permute.xlu0 %541
        %s544 = sor.u32 256, 8
        %545 = vbcast.lane.b32.xlu0 %v539, %s544
        %v546 = vpop.permute.xlu0 %545
        %v547 = vlaneseq
        %v548 = vshrl.u32 %v547, 7
        %v549 = vsub.s32 3, %v548
        %v550 = vrot.slane %v511, %v549
        %552 = vbcast.lane.b32.xlu0 %v550, 256
        %v553 = vpop.permute.xlu0 %552
        %s555 = sor.u32 256, 8
        %556 = vbcast.lane.b32.xlu0 %v550, %s555
        %v557 = vpop.permute.xlu0 %556
        %v558 = vlaneseq
        %v559 = vshrl.u32 %v558, 7
        %v560 = vsub.s32 4, %v559
        %v561 = vrot.slane %v511, %v560
        %563 = vbcast.lane.b32.xlu0 %v561, 256
        %v564 = vpop.permute.xlu0 %563
        %s566 = sor.u32 256, 8
        %567 = vbcast.lane.b32.xlu0 %v561, %s566
        %v568 = vpop.permute.xlu0 %567
        %v569 = vlaneseq
        %v570 = vshrl.u32 %v569, 7
        %v571 = vsub.s32 5, %v570
        %v572 = vrot.slane %v511, %v571
        %574 = vbcast.lane.b32.xlu0 %v572, 256
        %v575 = vpop.permute.xlu0 %574
        %s577 = sor.u32 256, 8
        %578 = vbcast.lane.b32.xlu0 %v572, %s577
        %v579 = vpop.permute.xlu0 %578
        %v580 = vlaneseq
        %v581 = vshrl.u32 %v580, 7
        %v582 = vsub.s32 6, %v581
        %v583 = vrot.slane %v511, %v582
        %585 = vbcast.lane.b32.xlu0 %v583, 256
        %v586 = vpop.permute.xlu0 %585
        %s588 = sor.u32 256, 8
        %589 = vbcast.lane.b32.xlu0 %v583, %s588
        %v590 = vpop.permute.xlu0 %589
        %v591 = vlaneseq
        %v592 = vshrl.u32 %v591, 7
        %v593 = vsub.s32 7, %v592
        %v594 = vrot.slane %v511, %v593
        %596 = vbcast.lane.b32.xlu0 %v594, 256
        %v597 = vpop.permute.xlu0 %596
        %s599 = sor.u32 256, 8
        %600 = vbcast.lane.b32.xlu0 %v594, %s599
        %v601 = vpop.permute.xlu0 %600
        %v602 = vlaneseq
        %v603 = vshrl.u32 %v602, 7
        %v604 = vsub.s32 0, %v603
        %v605 = vrot.slane %v505, %v604
        %607 = vbcast.lane.b32.xlu0 %v605, 256
        %v608 = vpop.permute.xlu0 %607
        %s610 = sor.u32 256, 8
        %611 = vbcast.lane.b32.xlu0 %v605, %s610
        %v612 = vpop.permute.xlu0 %611
        %v613 = vlaneseq
        %v614 = vshrl.u32 %v613, 7
        %v615 = vsub.s32 1, %v614
        %v616 = vrot.slane %v505, %v615
        %618 = vbcast.lane.b32.xlu0 %v616, 256
        %v619 = vpop.permute.xlu0 %618
        %s621 = sor.u32 256, 8
        %622 = vbcast.lane.b32.xlu0 %v616, %s621
        %v623 = vpop.permute.xlu0 %622
        %v624 = vlaneseq
        %v625 = vshrl.u32 %v624, 7
        %v626 = vsub.s32 2, %v625
        %v627 = vrot.slane %v505, %v626
        %629 = vbcast.lane.b32.xlu0 %v627, 256
        %v630 = vpop.permute.xlu0 %629
        %s632 = sor.u32 256, 8
        %633 = vbcast.lane.b32.xlu0 %v627, %s632
        %v634 = vpop.permute.xlu0 %633
        %v635 = vlaneseq
        %v636 = vshrl.u32 %v635, 7
        %v637 = vsub.s32 3, %v636
        %v638 = vrot.slane %v505, %v637
        %640 = vbcast.lane.b32.xlu0 %v638, 256
        %v641 = vpop.permute.xlu0 %640
        %s643 = sor.u32 256, 8
        %644 = vbcast.lane.b32.xlu0 %v638, %s643
        %v645 = vpop.permute.xlu0 %644
        %v646 = vlaneseq
        %v647 = vshrl.u32 %v646, 7
        %v648 = vsub.s32 4, %v647
        %v649 = vrot.slane %v505, %v648
        %651 = vbcast.lane.b32.xlu0 %v649, 256
        %v652 = vpop.permute.xlu0 %651
        %s654 = sor.u32 256, 8
        %655 = vbcast.lane.b32.xlu0 %v649, %s654
        %v656 = vpop.permute.xlu0 %655
        %v657 = vlaneseq
        %v658 = vshrl.u32 %v657, 7
        %v659 = vsub.s32 5, %v658
        %v660 = vrot.slane %v505, %v659
        %662 = vbcast.lane.b32.xlu0 %v660, 256
        %v663 = vpop.permute.xlu0 %662
        %s665 = sor.u32 256, 8
        %666 = vbcast.lane.b32.xlu0 %v660, %s665
        %v667 = vpop.permute.xlu0 %666
        %v668 = vlaneseq
        %v669 = vshrl.u32 %v668, 7
        %v670 = vsub.s32 6, %v669
        %v671 = vrot.slane %v505, %v670
        %673 = vbcast.lane.b32.xlu0 %v671, 256
        %v674 = vpop.permute.xlu0 %673
        %s676 = sor.u32 256, 8
        %677 = vbcast.lane.b32.xlu0 %v671, %s676
        %v678 = vpop.permute.xlu0 %677
        %v679 = vlaneseq
        %v680 = vshrl.u32 %v679, 7
        %v681 = vsub.s32 7, %v680
        %v682 = vrot.slane %v505, %v681
        %684 = vbcast.lane.b32.xlu0 %v682, 256
        %v685 = vpop.permute.xlu0 %684
        %s687 = sor.u32 256, 8
        %688 = vbcast.lane.b32.xlu0 %v682, %s687
        %v689 = vpop.permute.xlu0 %688
        %v690 = vlaneseq
        %v691 = vshrl.u32 %v690, 7
        %v692 = vsub.s32 0, %v691
        %v693 = vrot.slane %v513, %v692
        %695 = vbcast.lane.b32.xlu0 %v693, 256
        %v696 = vpop.permute.xlu0 %695
        %s698 = sor.u32 256, 8
        %699 = vbcast.lane.b32.xlu0 %v693, %s698
        %v700 = vpop.permute.xlu0 %699
        %v701 = vlaneseq
        %v702 = vshrl.u32 %v701, 7
        %v703 = vsub.s32 1, %v702
        %v704 = vrot.slane %v513, %v703
        %706 = vbcast.lane.b32.xlu0 %v704, 256
        %v707 = vpop.permute.xlu0 %706
        %s709 = sor.u32 256, 8
        %710 = vbcast.lane.b32.xlu0 %v704, %s709
        %v711 = vpop.permute.xlu0 %710
        %v712 = vlaneseq
        %v713 = vshrl.u32 %v712, 7
        %v714 = vsub.s32 0, %v713
        %v715 = vrot.slane %v476, %v714
        %v716 = vmul.f32 %v520, %v715
        %v717 = vmul.f32 %v524, %v715
        %v718 = vmul.f32 %v531, %v715
        %v719 = vmul.f32 %v535, %v715
        %v720 = vmul.f32 %v542, %v715
        %v721 = vmul.f32 %v546, %v715
        %v722 = vmul.f32 %v553, %v715
        %v723 = vmul.f32 %v557, %v715
        %v724 = vmul.f32 %v564, %v715
        %v725 = vmul.f32 %v568, %v715
        %v726 = vmul.f32 %v575, %v715
        %v727 = vmul.f32 %v579, %v715
        %v728 = vmul.f32 %v586, %v715
        %v729 = vmul.f32 %v590, %v715
        %v730 = vmul.f32 %v597, %v715
        %v731 = vmul.f32 %v601, %v715
        %v732 = vmul.f32 %v608, %v715
        %v733 = vmul.f32 %v612, %v715
        %v734 = vmul.f32 %v619, %v715
        %v735 = vmul.f32 %v623, %v715
        %v736 = vmul.f32 %v630, %v715
        %v737 = vmul.f32 %v634, %v715
        %v738 = vmul.f32 %v641, %v715
        %v739 = vmul.f32 %v645, %v715
        %v740 = vmul.f32 %v652, %v715
        %v741 = vmul.f32 %v656, %v715
        %v742 = vmul.f32 %v663, %v715
        %v743 = vmul.f32 %v667, %v715
        %v744 = vmul.f32 %v674, %v715
        %v745 = vmul.f32 %v678, %v715
        %v746 = vmul.f32 %v685, %v715
        %v747 = vmul.f32 %v689, %v715
        %v748 = vmul.f32 %v696, %v715
        %v749 = vmul.f32 %v700, %v715
        %v750 = vmul.f32 %v707, %v715
        %v751 = vmul.f32 %v711, %v715
        %v752 = vadd.f32 %v716, 0.0
        %v753 = vadd.f32 %v717, 0.0
        %v754 = vadd.f32 %v718, 0.0
        %v755 = vadd.f32 %v719, 0.0
        %v756 = vadd.f32 %v720, 0.0
        %v757 = vadd.f32 %v721, 0.0
        %v758 = vadd.f32 %v722, 0.0
        %v759 = vadd.f32 %v723, 0.0
        %v760 = vadd.f32 %v724, 0.0
        %v761 = vadd.f32 %v725, 0.0
        %v762 = vadd.f32 %v726, 0.0
        %v763 = vadd.f32 %v727, 0.0
        %v764 = vadd.f32 %v728, 0.0
        %v765 = vadd.f32 %v729, 0.0
        %v766 = vadd.f32 %v730, 0.0
        %v767 = vadd.f32 %v731, 0.0
        %v768 = vadd.f32 %v732, 0.0
        %v769 = vadd.f32 %v733, 0.0
        %v770 = vadd.f32 %v734, 0.0
        %v771 = vadd.f32 %v735, 0.0
        %v772 = vadd.f32 %v736, 0.0
        %v773 = vadd.f32 %v737, 0.0
        %v774 = vadd.f32 %v738, 0.0
        %v775 = vadd.f32 %v739, 0.0
        %v776 = vadd.f32 %v740, 0.0
        %v777 = vadd.f32 %v741, 0.0
        %v778 = vadd.f32 %v742, 0.0
        %v779 = vadd.f32 %v743, 0.0
        %v780 = vadd.f32 %v744, 0.0
        %v781 = vadd.f32 %v745, 0.0
        %v782 = vadd.f32 %v746, 0.0
        %v783 = vadd.f32 %v747, 0.0
        %v784 = vadd.f32 %v748, 0.0
        %v785 = vadd.f32 %v749, 0.0
        %v786 = vadd.f32 %v750, 0.0
        %v787 = vadd.f32 %v751, 0.0
        %s789 = sor.u32 256, 1
        %790 = vbcast.lane.b32.xlu0 %v517, %s789
        %v791 = vpop.permute.xlu0 %790
        %s793 = sor.u32 256, 9
        %794 = vbcast.lane.b32.xlu0 %v517, %s793
        %v795 = vpop.permute.xlu0 %794
        %s797 = sor.u32 256, 1
        %798 = vbcast.lane.b32.xlu0 %v528, %s797
        %v799 = vpop.permute.xlu0 %798
        %s801 = sor.u32 256, 9
        %802 = vbcast.lane.b32.xlu0 %v528, %s801
        %v803 = vpop.permute.xlu0 %802
        %s805 = sor.u32 256, 1
        %806 = vbcast.lane.b32.xlu0 %v539, %s805
        %v807 = vpop.permute.xlu0 %806
        %s809 = sor.u32 256, 9
        %810 = vbcast.lane.b32.xlu0 %v539, %s809
        %v811 = vpop.permute.xlu0 %810
        %s813 = sor.u32 256, 1
        %814 = vbcast.lane.b32.xlu0 %v550, %s813
        %v815 = vpop.permute.xlu0 %814
        %s817 = sor.u32 256, 9
        %818 = vbcast.lane.b32.xlu0 %v550, %s817
        %v819 = vpop.permute.xlu0 %818
        %s821 = sor.u32 256, 1
        %822 = vbcast.lane.b32.xlu0 %v561, %s821
        %v823 = vpop.permute.xlu0 %822
        %s825 = sor.u32 256, 9
        %826 = vbcast.lane.b32.xlu0 %v561, %s825
        %v827 = vpop.permute.xlu0 %826
        %s829 = sor.u32 256, 1
        %830 = vbcast.lane.b32.xlu0 %v572, %s829
        %v831 = vpop.permute.xlu0 %830
        %s833 = sor.u32 256, 9
        %834 = vbcast.lane.b32.xlu0 %v572, %s833
        %v835 = vpop.permute.xlu0 %834
        %s837 = sor.u32 256, 1
        %838 = vbcast.lane.b32.xlu0 %v583, %s837
        %v839 = vpop.permute.xlu0 %838
        %s841 = sor.u32 256, 9
        %842 = vbcast.lane.b32.xlu0 %v583, %s841
        %v843 = vpop.permute.xlu0 %842
        %s845 = sor.u32 256, 1
        %846 = vbcast.lane.b32.xlu0 %v594, %s845
        %v847 = vpop.permute.xlu0 %846
        %s849 = sor.u32 256, 9
        %850 = vbcast.lane.b32.xlu0 %v594, %s849
        %v851 = vpop.permute.xlu0 %850
        %s853 = sor.u32 256, 1
        %854 = vbcast.lane.b32.xlu0 %v605, %s853
        %v855 = vpop.permute.xlu0 %854
        %s857 = sor.u32 256, 9
        %858 = vbcast.lane.b32.xlu0 %v605, %s857
        %v859 = vpop.permute.xlu0 %858
        %s861 = sor.u32 256, 1
        %862 = vbcast.lane.b32.xlu0 %v616, %s861
        %v863 = vpop.permute.xlu0 %862
        %s865 = sor.u32 256, 9
        %866 = vbcast.lane.b32.xlu0 %v616, %s865
        %v867 = vpop.permute.xlu0 %866
        %s869 = sor.u32 256, 1
        %870 = vbcast.lane.b32.xlu0 %v627, %s869
        %v871 = vpop.permute.xlu0 %870
        %s873 = sor.u32 256, 9
        %874 = vbcast.lane.b32.xlu0 %v627, %s873
        %v875 = vpop.permute.xlu0 %874
        %s877 = sor.u32 256, 1
        %878 = vbcast.lane.b32.xlu0 %v638, %s877
        %v879 = vpop.permute.xlu0 %878
        %s881 = sor.u32 256, 9
        %882 = vbcast.lane.b32.xlu0 %v638, %s881
        %v883 = vpop.permute.xlu0 %882
        %s885 = sor.u32 256, 1
        %886 = vbcast.lane.b32.xlu0 %v649, %s885
        %v887 = vpop.permute.xlu0 %886
        %s889 = sor.u32 256, 9
        %890 = vbcast.lane.b32.xlu0 %v649, %s889
        %v891 = vpop.permute.xlu0 %890
        %s893 = sor.u32 256, 1
        %894 = vbcast.lane.b32.xlu0 %v660, %s893
        %v895 = vpop.permute.xlu0 %894
        %s897 = sor.u32 256, 9
        %898 = vbcast.lane.b32.xlu0 %v660, %s897
        %v899 = vpop.permute.xlu0 %898
        %s901 = sor.u32 256, 1
        %902 = vbcast.lane.b32.xlu0 %v671, %s901
        %v903 = vpop.permute.xlu0 %902
        %s905 = sor.u32 256, 9
        %906 = vbcast.lane.b32.xlu0 %v671, %s905
        %v907 = vpop.permute.xlu0 %906
        %s909 = sor.u32 256, 1
        %910 = vbcast.lane.b32.xlu0 %v682, %s909
        %v911 = vpop.permute.xlu0 %910
        %s913 = sor.u32 256, 9
        %914 = vbcast.lane.b32.xlu0 %v682, %s913
        %v915 = vpop.permute.xlu0 %914
        %s917 = sor.u32 256, 1
        %918 = vbcast.lane.b32.xlu0 %v693, %s917
        %v919 = vpop.permute.xlu0 %918
        %s921 = sor.u32 256, 9
        %922 = vbcast.lane.b32.xlu0 %v693, %s921
        %v923 = vpop.permute.xlu0 %922
        %s925 = sor.u32 256, 1
        %926 = vbcast.lane.b32.xlu0 %v704, %s925
        %v927 = vpop.permute.xlu0 %926
        %s929 = sor.u32 256, 9
        %930 = vbcast.lane.b32.xlu0 %v704, %s929
        %v931 = vpop.permute.xlu0 %930
        %v932 = vlaneseq
        %v933 = vshrl.u32 %v932, 7
        %v934 = vsub.s32 1, %v933
        %v935 = vrot.slane %v476, %v934
        %v936 = vmul.f32 %v791, %v935
        %v937 = vmul.f32 %v795, %v935
        %v938 = vmul.f32 %v799, %v935
        %v939 = vmul.f32 %v803, %v935
        %v940 = vmul.f32 %v807, %v935
        %v941 = vmul.f32 %v811, %v935
        %v942 = vmul.f32 %v815, %v935
        %v943 = vmul.f32 %v819, %v935
        %v944 = vmul.f32 %v823, %v935
        %v945 = vmul.f32 %v827, %v935
        %v946 = vmul.f32 %v831, %v935
        %v947 = vmul.f32 %v835, %v935
        %v948 = vmul.f32 %v839, %v935
        %v949 = vmul.f32 %v843, %v935
        %v950 = vmul.f32 %v847, %v935
        %v951 = vmul.f32 %v851, %v935
        %v952 = vmul.f32 %v855, %v935
        %v953 = vmul.f32 %v859, %v935
        %v954 = vmul.f32 %v863, %v935
        %v955 = vmul.f32 %v867, %v935
        %v956 = vmul.f32 %v871, %v935
        %v957 = vmul.f32 %v875, %v935
        %v958 = vmul.f32 %v879, %v935
        %v959 = vmul.f32 %v883, %v935
        %v960 = vmul.f32 %v887, %v935
        %v961 = vmul.f32 %v891, %v935
        %v962 = vmul.f32 %v895, %v935
        %v963 = vmul.f32 %v899, %v935
        %v964 = vmul.f32 %v903, %v935
        %v965 = vmul.f32 %v907, %v935
        %v966 = vmul.f32 %v911, %v935
        %v967 = vmul.f32 %v915, %v935
        %v968 = vmul.f32 %v919, %v935
        %v969 = vmul.f32 %v923, %v935
        %v970 = vmul.f32 %v927, %v935
        %v971 = vmul.f32 %v931, %v935
        %v972 = vadd.f32 %v752, %v936
        %v973 = vadd.f32 %v753, %v937
        %v974 = vadd.f32 %v754, %v938
        %v975 = vadd.f32 %v755, %v939
        %v976 = vadd.f32 %v756, %v940
        %v977 = vadd.f32 %v757, %v941
        %v978 = vadd.f32 %v758, %v942
        %v979 = vadd.f32 %v759, %v943
        %v980 = vadd.f32 %v760, %v944
        %v981 = vadd.f32 %v761, %v945
        %v982 = vadd.f32 %v762, %v946
        %v983 = vadd.f32 %v763, %v947
        %v984 = vadd.f32 %v764, %v948
        %v985 = vadd.f32 %v765, %v949
        %v986 = vadd.f32 %v766, %v950
        %v987 = vadd.f32 %v767, %v951
        %v988 = vadd.f32 %v768, %v952
        %v989 = vadd.f32 %v769, %v953
        %v990 = vadd.f32 %v770, %v954
        %v991 = vadd.f32 %v771, %v955
        %v992 = vadd.f32 %v772, %v956
        %v993 = vadd.f32 %v773, %v957
        %v994 = vadd.f32 %v774, %v958
        %v995 = vadd.f32 %v775, %v959
        %v996 = vadd.f32 %v776, %v960
        %v997 = vadd.f32 %v777, %v961
        %v998 = vadd.f32 %v778, %v962
        %v999 = vadd.f32 %v779, %v963
        %v1000 = vadd.f32 %v780, %v964
        %v1001 = vadd.f32 %v781, %v965
        %v1002 = vadd.f32 %v782, %v966
        %v1003 = vadd.f32 %v783, %v967
        %v1004 = vadd.f32 %v784, %v968
        %v1005 = vadd.f32 %v785, %v969
        %v1006 = vadd.f32 %v786, %v970
        %v1007 = vadd.f32 %v787, %v971
        %s1009 = sor.u32 256, 2
        %1010 = vbcast.lane.b32.xlu0 %v517, %s1009
        %v1011 = vpop.permute.xlu0 %1010
        %s1013 = sor.u32 256, 10
        %1014 = vbcast.lane.b32.xlu0 %v517, %s1013
        %v1015 = vpop.permute.xlu0 %1014
        %s1017 = sor.u32 256, 2
        %1018 = vbcast.lane.b32.xlu0 %v528, %s1017
        %v1019 = vpop.permute.xlu0 %1018
        %s1021 = sor.u32 256, 10
        %1022 = vbcast.lane.b32.xlu0 %v528, %s1021
        %v1023 = vpop.permute.xlu0 %1022
        %s1025 = sor.u32 256, 2
        %1026 = vbcast.lane.b32.xlu0 %v539, %s1025
        %v1027 = vpop.permute.xlu0 %1026
        %s1029 = sor.u32 256, 10
        %1030 = vbcast.lane.b32.xlu0 %v539, %s1029
        %v1031 = vpop.permute.xlu0 %1030
        %s1033 = sor.u32 256, 2
        %1034 = vbcast.lane.b32.xlu0 %v550, %s1033
        %v1035 = vpop.permute.xlu0 %1034
        %s1037 = sor.u32 256, 10
        %1038 = vbcast.lane.b32.xlu0 %v550, %s1037
        %v1039 = vpop.permute.xlu0 %1038
        %s1041 = sor.u32 256, 2
        %1042 = vbcast.lane.b32.xlu0 %v561, %s1041
        %v1043 = vpop.permute.xlu0 %1042
        %s1045 = sor.u32 256, 10
        %1046 = vbcast.lane.b32.xlu0 %v561, %s1045
        %v1047 = vpop.permute.xlu0 %1046
        %s1049 = sor.u32 256, 2
        %1050 = vbcast.lane.b32.xlu0 %v572, %s1049
        %v1051 = vpop.permute.xlu0 %1050
        %s1053 = sor.u32 256, 10
        %1054 = vbcast.lane.b32.xlu0 %v572, %s1053
        %v1055 = vpop.permute.xlu0 %1054
        %s1057 = sor.u32 256, 2
        %1058 = vbcast.lane.b32.xlu0 %v583, %s1057
        %v1059 = vpop.permute.xlu0 %1058
        %s1061 = sor.u32 256, 10
        %1062 = vbcast.lane.b32.xlu0 %v583, %s1061
        %v1063 = vpop.permute.xlu0 %1062
        %s1065 = sor.u32 256, 2
        %1066 = vbcast.lane.b32.xlu0 %v594, %s1065
        %v1067 = vpop.permute.xlu0 %1066
        %s1069 = sor.u32 256, 10
        %1070 = vbcast.lane.b32.xlu0 %v594, %s1069
        %v1071 = vpop.permute.xlu0 %1070
        %s1073 = sor.u32 256, 2
        %1074 = vbcast.lane.b32.xlu0 %v605, %s1073
        %v1075 = vpop.permute.xlu0 %1074
        %s1077 = sor.u32 256, 10
        %1078 = vbcast.lane.b32.xlu0 %v605, %s1077
        %v1079 = vpop.permute.xlu0 %1078
        %s1081 = sor.u32 256, 2
        %1082 = vbcast.lane.b32.xlu0 %v616, %s1081
        %v1083 = vpop.permute.xlu0 %1082
        %s1085 = sor.u32 256, 10
        %1086 = vbcast.lane.b32.xlu0 %v616, %s1085
        %v1087 = vpop.permute.xlu0 %1086
        %s1089 = sor.u32 256, 2
        %1090 = vbcast.lane.b32.xlu0 %v627, %s1089
        %v1091 = vpop.permute.xlu0 %1090
        %s1093 = sor.u32 256, 10
        %1094 = vbcast.lane.b32.xlu0 %v627, %s1093
        %v1095 = vpop.permute.xlu0 %1094
        %s1097 = sor.u32 256, 2
        %1098 = vbcast.lane.b32.xlu0 %v638, %s1097
        %v1099 = vpop.permute.xlu0 %1098
        %s1101 = sor.u32 256, 10
        %1102 = vbcast.lane.b32.xlu0 %v638, %s1101
        %v1103 = vpop.permute.xlu0 %1102
        %s1105 = sor.u32 256, 2
        %1106 = vbcast.lane.b32.xlu0 %v649, %s1105
        %v1107 = vpop.permute.xlu0 %1106
        %s1109 = sor.u32 256, 10
        %1110 = vbcast.lane.b32.xlu0 %v649, %s1109
        %v1111 = vpop.permute.xlu0 %1110
        %s1113 = sor.u32 256, 2
        %1114 = vbcast.lane.b32.xlu0 %v660, %s1113
        %v1115 = vpop.permute.xlu0 %1114
        %s1117 = sor.u32 256, 10
        %1118 = vbcast.lane.b32.xlu0 %v660, %s1117
        %v1119 = vpop.permute.xlu0 %1118
        %s1121 = sor.u32 256, 2
        %1122 = vbcast.lane.b32.xlu0 %v671, %s1121
        %v1123 = vpop.permute.xlu0 %1122
        %s1125 = sor.u32 256, 10
        %1126 = vbcast.lane.b32.xlu0 %v671, %s1125
        %v1127 = vpop.permute.xlu0 %1126
        %s1129 = sor.u32 256, 2
        %1130 = vbcast.lane.b32.xlu0 %v682, %s1129
        %v1131 = vpop.permute.xlu0 %1130
        %s1133 = sor.u32 256, 10
        %1134 = vbcast.lane.b32.xlu0 %v682, %s1133
        %v1135 = vpop.permute.xlu0 %1134
        %s1137 = sor.u32 256, 2
        %1138 = vbcast.lane.b32.xlu0 %v693, %s1137
        %v1139 = vpop.permute.xlu0 %1138
        %s1141 = sor.u32 256, 10
        %1142 = vbcast.lane.b32.xlu0 %v693, %s1141
        %v1143 = vpop.permute.xlu0 %1142
        %s1145 = sor.u32 256, 2
        %1146 = vbcast.lane.b32.xlu0 %v704, %s1145
        %v1147 = vpop.permute.xlu0 %1146
        %s1149 = sor.u32 256, 10
        %1150 = vbcast.lane.b32.xlu0 %v704, %s1149
        %v1151 = vpop.permute.xlu0 %1150
        %v1152 = vlaneseq
        %v1153 = vshrl.u32 %v1152, 7
        %v1154 = vsub.s32 2, %v1153
        %v1155 = vrot.slane %v476, %v1154
        %v1156 = vmul.f32 %v1011, %v1155
        %v1157 = vmul.f32 %v1015, %v1155
        %v1158 = vmul.f32 %v1019, %v1155
        %v1159 = vmul.f32 %v1023, %v1155
        %v1160 = vmul.f32 %v1027, %v1155
        %v1161 = vmul.f32 %v1031, %v1155
        %v1162 = vmul.f32 %v1035, %v1155
        %v1163 = vmul.f32 %v1039, %v1155
        %v1164 = vmul.f32 %v1043, %v1155
        %v1165 = vmul.f32 %v1047, %v1155
        %v1166 = vmul.f32 %v1051, %v1155
        %v1167 = vmul.f32 %v1055, %v1155
        %v1168 = vmul.f32 %v1059, %v1155
        %v1169 = vmul.f32 %v1063, %v1155
        %v1170 = vmul.f32 %v1067, %v1155
        %v1171 = vmul.f32 %v1071, %v1155
        %v1172 = vmul.f32 %v1075, %v1155
        %v1173 = vmul.f32 %v1079, %v1155
        %v1174 = vmul.f32 %v1083, %v1155
        %v1175 = vmul.f32 %v1087, %v1155
        %v1176 = vmul.f32 %v1091, %v1155
        %v1177 = vmul.f32 %v1095, %v1155
        %v1178 = vmul.f32 %v1099, %v1155
        %v1179 = vmul.f32 %v1103, %v1155
        %v1180 = vmul.f32 %v1107, %v1155
        %v1181 = vmul.f32 %v1111, %v1155
        %v1182 = vmul.f32 %v1115, %v1155
        %v1183 = vmul.f32 %v1119, %v1155
        %v1184 = vmul.f32 %v1123, %v1155
        %v1185 = vmul.f32 %v1127, %v1155
        %v1186 = vmul.f32 %v1131, %v1155
        %v1187 = vmul.f32 %v1135, %v1155
        %v1188 = vmul.f32 %v1139, %v1155
        %v1189 = vmul.f32 %v1143, %v1155
        %v1190 = vmul.f32 %v1147, %v1155
        %v1191 = vmul.f32 %v1151, %v1155
        %v1192 = vadd.f32 %v972, %v1156
        %v1193 = vadd.f32 %v973, %v1157
        %v1194 = vadd.f32 %v974, %v1158
        %v1195 = vadd.f32 %v975, %v1159
        %v1196 = vadd.f32 %v976, %v1160
        %v1197 = vadd.f32 %v977, %v1161
        %v1198 = vadd.f32 %v978, %v1162
        %v1199 = vadd.f32 %v979, %v1163
        %v1200 = vadd.f32 %v980, %v1164
        %v1201 = vadd.f32 %v981, %v1165
        %v1202 = vadd.f32 %v982, %v1166
        %v1203 = vadd.f32 %v983, %v1167
        %v1204 = vadd.f32 %v984, %v1168
        %v1205 = vadd.f32 %v985, %v1169
        %v1206 = vadd.f32 %v986, %v1170
        %v1207 = vadd.f32 %v987, %v1171
        %v1208 = vadd.f32 %v988, %v1172
        %v1209 = vadd.f32 %v989, %v1173
        %v1210 = vadd.f32 %v990, %v1174
        %v1211 = vadd.f32 %v991, %v1175
        %v1212 = vadd.f32 %v992, %v1176
        %v1213 = vadd.f32 %v993, %v1177
        %v1214 = vadd.f32 %v994, %v1178
        %v1215 = vadd.f32 %v995, %v1179
        %v1216 = vadd.f32 %v996, %v1180
        %v1217 = vadd.f32 %v997, %v1181
        %v1218 = vadd.f32 %v998, %v1182
        %v1219 = vadd.f32 %v999, %v1183
        %v1220 = vadd.f32 %v1000, %v1184
        %v1221 = vadd.f32 %v1001, %v1185
        %v1222 = vadd.f32 %v1002, %v1186
        %v1223 = vadd.f32 %v1003, %v1187
        %v1224 = vadd.f32 %v1004, %v1188
        %v1225 = vadd.f32 %v1005, %v1189
        %v1226 = vadd.f32 %v1006, %v1190
        %v1227 = vadd.f32 %v1007, %v1191
        %v1228 = vlaneseq
        %v1229 = vshrl.u32 %v1228, 7
        %v1230 = vsub.s32 2, %v1229
        %v1231 = vrot.slane %v513, %v1230
        %1233 = vbcast.lane.b32.xlu0 %v1231, 256
        %v1234 = vpop.permute.xlu0 %1233
        %s1236 = sor.u32 256, 8
        %1237 = vbcast.lane.b32.xlu0 %v1231, %s1236
        %v1238 = vpop.permute.xlu0 %1237
        %v1239 = vlaneseq
        %v1240 = vshrl.u32 %v1239, 7
        %v1241 = vsub.s32 3, %v1240
        %v1242 = vrot.slane %v476, %v1241
        %v1243 = vmul.f32 %v531, %v1242
        %v1244 = vmul.f32 %v535, %v1242
        %v1245 = vmul.f32 %v542, %v1242
        %v1246 = vmul.f32 %v546, %v1242
        %v1247 = vmul.f32 %v553, %v1242
        %v1248 = vmul.f32 %v557, %v1242
        %v1249 = vmul.f32 %v564, %v1242
        %v1250 = vmul.f32 %v568, %v1242
        %v1251 = vmul.f32 %v575, %v1242
        %v1252 = vmul.f32 %v579, %v1242
        %v1253 = vmul.f32 %v586, %v1242
        %v1254 = vmul.f32 %v590, %v1242
        %v1255 = vmul.f32 %v597, %v1242
        %v1256 = vmul.f32 %v601, %v1242
        %v1257 = vmul.f32 %v608, %v1242
        %v1258 = vmul.f32 %v612, %v1242
        %v1259 = vmul.f32 %v619, %v1242
        %v1260 = vmul.f32 %v623, %v1242
        %v1261 = vmul.f32 %v630, %v1242
        %v1262 = vmul.f32 %v634, %v1242
        %v1263 = vmul.f32 %v641, %v1242
        %v1264 = vmul.f32 %v645, %v1242
        %v1265 = vmul.f32 %v652, %v1242
        %v1266 = vmul.f32 %v656, %v1242
        %v1267 = vmul.f32 %v663, %v1242
        %v1268 = vmul.f32 %v667, %v1242
        %v1269 = vmul.f32 %v674, %v1242
        %v1270 = vmul.f32 %v678, %v1242
        %v1271 = vmul.f32 %v685, %v1242
        %v1272 = vmul.f32 %v689, %v1242
        %v1273 = vmul.f32 %v696, %v1242
        %v1274 = vmul.f32 %v700, %v1242
        %v1275 = vmul.f32 %v707, %v1242
        %v1276 = vmul.f32 %v711, %v1242
        %v1277 = vmul.f32 %v1234, %v1242
        %v1278 = vmul.f32 %v1238, %v1242
        %v1279 = vadd.f32 %v1192, %v1243
        %v1280 = vadd.f32 %v1193, %v1244
        %v1281 = vadd.f32 %v1194, %v1245
        %v1282 = vadd.f32 %v1195, %v1246
        %v1283 = vadd.f32 %v1196, %v1247
        %v1284 = vadd.f32 %v1197, %v1248
        %v1285 = vadd.f32 %v1198, %v1249
        %v1286 = vadd.f32 %v1199, %v1250
        %v1287 = vadd.f32 %v1200, %v1251
        %v1288 = vadd.f32 %v1201, %v1252
        %v1289 = vadd.f32 %v1202, %v1253
        %v1290 = vadd.f32 %v1203, %v1254
        %v1291 = vadd.f32 %v1204, %v1255
        %v1292 = vadd.f32 %v1205, %v1256
        %v1293 = vadd.f32 %v1206, %v1257
        %v1294 = vadd.f32 %v1207, %v1258
        %v1295 = vadd.f32 %v1208, %v1259
        %v1296 = vadd.f32 %v1209, %v1260
        %v1297 = vadd.f32 %v1210, %v1261
        %v1298 = vadd.f32 %v1211, %v1262
        %v1299 = vadd.f32 %v1212, %v1263
        %v1300 = vadd.f32 %v1213, %v1264
        %v1301 = vadd.f32 %v1214, %v1265
        %v1302 = vadd.f32 %v1215, %v1266
        %v1303 = vadd.f32 %v1216, %v1267
        %v1304 = vadd.f32 %v1217, %v1268
        %v1305 = vadd.f32 %v1218, %v1269
        %v1306 = vadd.f32 %v1219, %v1270
        %v1307 = vadd.f32 %v1220, %v1271
        %v1308 = vadd.f32 %v1221, %v1272
        %v1309 = vadd.f32 %v1222, %v1273
        %v1310 = vadd.f32 %v1223, %v1274
        %v1311 = vadd.f32 %v1224, %v1275
        %v1312 = vadd.f32 %v1225, %v1276
        %v1313 = vadd.f32 %v1226, %v1277
        %v1314 = vadd.f32 %v1227, %v1278
        %s1316 = sor.u32 256, 1
        %1317 = vbcast.lane.b32.xlu0 %v1231, %s1316
        %v1318 = vpop.permute.xlu0 %1317
        %s1320 = sor.u32 256, 9
        %1321 = vbcast.lane.b32.xlu0 %v1231, %s1320
        %v1322 = vpop.permute.xlu0 %1321
        %v1323 = vlaneseq
        %v1324 = vshrl.u32 %v1323, 7
        %v1325 = vsub.s32 4, %v1324
        %v1326 = vrot.slane %v476, %v1325
        %v1327 = vmul.f32 %v799, %v1326
        %v1328 = vmul.f32 %v803, %v1326
        %v1329 = vmul.f32 %v807, %v1326
        %v1330 = vmul.f32 %v811, %v1326
        %v1331 = vmul.f32 %v815, %v1326
        %v1332 = vmul.f32 %v819, %v1326
        %v1333 = vmul.f32 %v823, %v1326
        %v1334 = vmul.f32 %v827, %v1326
        %v1335 = vmul.f32 %v831, %v1326
        %v1336 = vmul.f32 %v835, %v1326
        %v1337 = vmul.f32 %v839, %v1326
        %v1338 = vmul.f32 %v843, %v1326
        %v1339 = vmul.f32 %v847, %v1326
        %v1340 = vmul.f32 %v851, %v1326
        %v1341 = vmul.f32 %v855, %v1326
        %v1342 = vmul.f32 %v859, %v1326
        %v1343 = vmul.f32 %v863, %v1326
        %v1344 = vmul.f32 %v867, %v1326
        %v1345 = vmul.f32 %v871, %v1326
        %v1346 = vmul.f32 %v875, %v1326
        %v1347 = vmul.f32 %v879, %v1326
        %v1348 = vmul.f32 %v883, %v1326
        %v1349 = vmul.f32 %v887, %v1326
        %v1350 = vmul.f32 %v891, %v1326
        %v1351 = vmul.f32 %v895, %v1326
        %v1352 = vmul.f32 %v899, %v1326
        %v1353 = vmul.f32 %v903, %v1326
        %v1354 = vmul.f32 %v907, %v1326
        %v1355 = vmul.f32 %v911, %v1326
        %v1356 = vmul.f32 %v915, %v1326
        %v1357 = vmul.f32 %v919, %v1326
        %v1358 = vmul.f32 %v923, %v1326
        %v1359 = vmul.f32 %v927, %v1326
        %v1360 = vmul.f32 %v931, %v1326
        %v1361 = vmul.f32 %v1318, %v1326
        %v1362 = vmul.f32 %v1322, %v1326
        %v1363 = vadd.f32 %v1279, %v1327
        %v1364 = vadd.f32 %v1280, %v1328
        %v1365 = vadd.f32 %v1281, %v1329
        %v1366 = vadd.f32 %v1282, %v1330
        %v1367 = vadd.f32 %v1283, %v1331
        %v1368 = vadd.f32 %v1284, %v1332
        %v1369 = vadd.f32 %v1285, %v1333
        %v1370 = vadd.f32 %v1286, %v1334
        %v1371 = vadd.f32 %v1287, %v1335
        %v1372 = vadd.f32 %v1288, %v1336
        %v1373 = vadd.f32 %v1289, %v1337
        %v1374 = vadd.f32 %v1290, %v1338
        %v1375 = vadd.f32 %v1291, %v1339
        %v1376 = vadd.f32 %v1292, %v1340
        %v1377 = vadd.f32 %v1293, %v1341
        %v1378 = vadd.f32 %v1294, %v1342
        %v1379 = vadd.f32 %v1295, %v1343
        %v1380 = vadd.f32 %v1296, %v1344
        %v1381 = vadd.f32 %v1297, %v1345
        %v1382 = vadd.f32 %v1298, %v1346
        %v1383 = vadd.f32 %v1299, %v1347
        %v1384 = vadd.f32 %v1300, %v1348
        %v1385 = vadd.f32 %v1301, %v1349
        %v1386 = vadd.f32 %v1302, %v1350
        %v1387 = vadd.f32 %v1303, %v1351
        %v1388 = vadd.f32 %v1304, %v1352
        %v1389 = vadd.f32 %v1305, %v1353
        %v1390 = vadd.f32 %v1306, %v1354
        %v1391 = vadd.f32 %v1307, %v1355
        %v1392 = vadd.f32 %v1308, %v1356
        %v1393 = vadd.f32 %v1309, %v1357
        %v1394 = vadd.f32 %v1310, %v1358
        %v1395 = vadd.f32 %v1311, %v1359
        %v1396 = vadd.f32 %v1312, %v1360
        %v1397 = vadd.f32 %v1313, %v1361
        %v1398 = vadd.f32 %v1314, %v1362
        %s1400 = sor.u32 256, 2
        %1401 = vbcast.lane.b32.xlu0 %v1231, %s1400
        %v1402 = vpop.permute.xlu0 %1401
        %s1404 = sor.u32 256, 10
        %1405 = vbcast.lane.b32.xlu0 %v1231, %s1404
        %v1406 = vpop.permute.xlu0 %1405
        %v1407 = vlaneseq
        %v1408 = vshrl.u32 %v1407, 7
        %v1409 = vsub.s32 5, %v1408
        %v1410 = vrot.slane %v476, %v1409
        %v1411 = vmul.f32 %v1019, %v1410
        %v1412 = vmul.f32 %v1023, %v1410
        %v1413 = vmul.f32 %v1027, %v1410
        %v1414 = vmul.f32 %v1031, %v1410
        %v1415 = vmul.f32 %v1035, %v1410
        %v1416 = vmul.f32 %v1039, %v1410
        %v1417 = vmul.f32 %v1043, %v1410
        %v1418 = vmul.f32 %v1047, %v1410
        %v1419 = vmul.f32 %v1051, %v1410
        %v1420 = vmul.f32 %v1055, %v1410
        %v1421 = vmul.f32 %v1059, %v1410
        %v1422 = vmul.f32 %v1063, %v1410
        %v1423 = vmul.f32 %v1067, %v1410
        %v1424 = vmul.f32 %v1071, %v1410
        %v1425 = vmul.f32 %v1075, %v1410
        %v1426 = vmul.f32 %v1079, %v1410
        %v1427 = vmul.f32 %v1083, %v1410
        %v1428 = vmul.f32 %v1087, %v1410
        %v1429 = vmul.f32 %v1091, %v1410
        %v1430 = vmul.f32 %v1095, %v1410
        %v1431 = vmul.f32 %v1099, %v1410
        %v1432 = vmul.f32 %v1103, %v1410
        %v1433 = vmul.f32 %v1107, %v1410
        %v1434 = vmul.f32 %v1111, %v1410
        %v1435 = vmul.f32 %v1115, %v1410
        %v1436 = vmul.f32 %v1119, %v1410
        %v1437 = vmul.f32 %v1123, %v1410
        %v1438 = vmul.f32 %v1127, %v1410
        %v1439 = vmul.f32 %v1131, %v1410
        %v1440 = vmul.f32 %v1135, %v1410
        %v1441 = vmul.f32 %v1139, %v1410
        %v1442 = vmul.f32 %v1143, %v1410
        %v1443 = vmul.f32 %v1147, %v1410
        %v1444 = vmul.f32 %v1151, %v1410
        %v1445 = vmul.f32 %v1402, %v1410
        %v1446 = vmul.f32 %v1406, %v1410
        %v1447 = vadd.f32 %v1363, %v1411
        %v1448 = vadd.f32 %v1364, %v1412
        %v1449 = vadd.f32 %v1365, %v1413
        %v1450 = vadd.f32 %v1366, %v1414
        %v1451 = vadd.f32 %v1367, %v1415
        %v1452 = vadd.f32 %v1368, %v1416
        %v1453 = vadd.f32 %v1369, %v1417
        %v1454 = vadd.f32 %v1370, %v1418
        %v1455 = vadd.f32 %v1371, %v1419
        %v1456 = vadd.f32 %v1372, %v1420
        %v1457 = vadd.f32 %v1373, %v1421
        %v1458 = vadd.f32 %v1374, %v1422
        %v1459 = vadd.f32 %v1375, %v1423
        %v1460 = vadd.f32 %v1376, %v1424
        %v1461 = vadd.f32 %v1377, %v1425
        %v1462 = vadd.f32 %v1378, %v1426
        %v1463 = vadd.f32 %v1379, %v1427
        %v1464 = vadd.f32 %v1380, %v1428
        %v1465 = vadd.f32 %v1381, %v1429
        %v1466 = vadd.f32 %v1382, %v1430
        %v1467 = vadd.f32 %v1383, %v1431
        %v1468 = vadd.f32 %v1384, %v1432
        %v1469 = vadd.f32 %v1385, %v1433
        %v1470 = vadd.f32 %v1386, %v1434
        %v1471 = vadd.f32 %v1387, %v1435
        %v1472 = vadd.f32 %v1388, %v1436
        %v1473 = vadd.f32 %v1389, %v1437
        %v1474 = vadd.f32 %v1390, %v1438
        %v1475 = vadd.f32 %v1391, %v1439
        %v1476 = vadd.f32 %v1392, %v1440
        %v1477 = vadd.f32 %v1393, %v1441
        %v1478 = vadd.f32 %v1394, %v1442
        %v1479 = vadd.f32 %v1395, %v1443
        %v1480 = vadd.f32 %v1396, %v1444
        %v1481 = vadd.f32 %v1397, %v1445
        %v1482 = vadd.f32 %v1398, %v1446
        %v1483 = vlaneseq
        %v1484 = vshrl.u32 %v1483, 7
        %v1485 = vsub.s32 3, %v1484
        %v1486 = vrot.slane %v513, %v1485
        %1488 = vbcast.lane.b32.xlu0 %v1486, 256
        %v1489 = vpop.permute.xlu0 %1488
        %s1491 = sor.u32 256, 8
        %1492 = vbcast.lane.b32.xlu0 %v1486, %s1491
        %v1493 = vpop.permute.xlu0 %1492
        %v1494 = vlaneseq
        %v1495 = vshrl.u32 %v1494, 7
        %v1496 = vsub.s32 6, %v1495
        %v1497 = vrot.slane %v476, %v1496
        %v1498 = vmul.f32 %v542, %v1497
        %v1499 = vmul.f32 %v546, %v1497
        %v1500 = vmul.f32 %v553, %v1497
        %v1501 = vmul.f32 %v557, %v1497
        %v1502 = vmul.f32 %v564, %v1497
        %v1503 = vmul.f32 %v568, %v1497
        %v1504 = vmul.f32 %v575, %v1497
        %v1505 = vmul.f32 %v579, %v1497
        %v1506 = vmul.f32 %v586, %v1497
        %v1507 = vmul.f32 %v590, %v1497
        %v1508 = vmul.f32 %v597, %v1497
        %v1509 = vmul.f32 %v601, %v1497
        %v1510 = vmul.f32 %v608, %v1497
        %v1511 = vmul.f32 %v612, %v1497
        %v1512 = vmul.f32 %v619, %v1497
        %v1513 = vmul.f32 %v623, %v1497
        %v1514 = vmul.f32 %v630, %v1497
        %v1515 = vmul.f32 %v634, %v1497
        %v1516 = vmul.f32 %v641, %v1497
        %v1517 = vmul.f32 %v645, %v1497
        %v1518 = vmul.f32 %v652, %v1497
        %v1519 = vmul.f32 %v656, %v1497
        %v1520 = vmul.f32 %v663, %v1497
        %v1521 = vmul.f32 %v667, %v1497
        %v1522 = vmul.f32 %v674, %v1497
        %v1523 = vmul.f32 %v678, %v1497
        %v1524 = vmul.f32 %v685, %v1497
        %v1525 = vmul.f32 %v689, %v1497
        %v1526 = vmul.f32 %v696, %v1497
        %v1527 = vmul.f32 %v700, %v1497
        %v1528 = vmul.f32 %v707, %v1497
        %v1529 = vmul.f32 %v711, %v1497
        %v1530 = vmul.f32 %v1234, %v1497
        %v1531 = vmul.f32 %v1238, %v1497
        %v1532 = vmul.f32 %v1489, %v1497
        %v1533 = vmul.f32 %v1493, %v1497
        %v1534 = vadd.f32 %v1447, %v1498
        %v1535 = vadd.f32 %v1448, %v1499
        %v1536 = vadd.f32 %v1449, %v1500
        %v1537 = vadd.f32 %v1450, %v1501
        %v1538 = vadd.f32 %v1451, %v1502
        %v1539 = vadd.f32 %v1452, %v1503
        %v1540 = vadd.f32 %v1453, %v1504
        %v1541 = vadd.f32 %v1454, %v1505
        %v1542 = vadd.f32 %v1455, %v1506
        %v1543 = vadd.f32 %v1456, %v1507
        %v1544 = vadd.f32 %v1457, %v1508
        %v1545 = vadd.f32 %v1458, %v1509
        %v1546 = vadd.f32 %v1459, %v1510
        %v1547 = vadd.f32 %v1460, %v1511
        %v1548 = vadd.f32 %v1461, %v1512
        %v1549 = vadd.f32 %v1462, %v1513
        %v1550 = vadd.f32 %v1463, %v1514
        %v1551 = vadd.f32 %v1464, %v1515
        %v1552 = vadd.f32 %v1465, %v1516
        %v1553 = vadd.f32 %v1466, %v1517
        %v1554 = vadd.f32 %v1467, %v1518
        %v1555 = vadd.f32 %v1468, %v1519
        %v1556 = vadd.f32 %v1469, %v1520
        %v1557 = vadd.f32 %v1470, %v1521
        %v1558 = vadd.f32 %v1471, %v1522
        %v1559 = vadd.f32 %v1472, %v1523
        %v1560 = vadd.f32 %v1473, %v1524
        %v1561 = vadd.f32 %v1474, %v1525
        %v1562 = vadd.f32 %v1475, %v1526
        %v1563 = vadd.f32 %v1476, %v1527
        %v1564 = vadd.f32 %v1477, %v1528
        %v1565 = vadd.f32 %v1478, %v1529
        %v1566 = vadd.f32 %v1479, %v1530
        %v1567 = vadd.f32 %v1480, %v1531
        %v1568 = vadd.f32 %v1481, %v1532
        %v1569 = vadd.f32 %v1482, %v1533
        %s1571 = sor.u32 256, 1
        %1572 = vbcast.lane.b32.xlu0 %v1486, %s1571
        %v1573 = vpop.permute.xlu0 %1572
        %s1575 = sor.u32 256, 9
        %1576 = vbcast.lane.b32.xlu0 %v1486, %s1575
        %v1577 = vpop.permute.xlu0 %1576
        %v1578 = vlaneseq
        %v1579 = vshrl.u32 %v1578, 7
        %v1580 = vsub.s32 7, %v1579
        %v1581 = vrot.slane %v476, %v1580
        %v1582 = vmul.f32 %v807, %v1581
        %v1583 = vmul.f32 %v811, %v1581
        %v1584 = vmul.f32 %v815, %v1581
        %v1585 = vmul.f32 %v819, %v1581
        %v1586 = vmul.f32 %v823, %v1581
        %v1587 = vmul.f32 %v827, %v1581
        %v1588 = vmul.f32 %v831, %v1581
        %v1589 = vmul.f32 %v835, %v1581
        %v1590 = vmul.f32 %v839, %v1581
        %v1591 = vmul.f32 %v843, %v1581
        %v1592 = vmul.f32 %v847, %v1581
        %v1593 = vmul.f32 %v851, %v1581
        %v1594 = vmul.f32 %v855, %v1581
        %v1595 = vmul.f32 %v859, %v1581
        %v1596 = vmul.f32 %v863, %v1581
        %v1597 = vmul.f32 %v867, %v1581
        %v1598 = vmul.f32 %v871, %v1581
        %v1599 = vmul.f32 %v875, %v1581
        %v1600 = vmul.f32 %v879, %v1581
        %v1601 = vmul.f32 %v883, %v1581
        %v1602 = vmul.f32 %v887, %v1581
        %v1603 = vmul.f32 %v891, %v1581
        %v1604 = vmul.f32 %v895, %v1581
        %v1605 = vmul.f32 %v899, %v1581
        %v1606 = vmul.f32 %v903, %v1581
        %v1607 = vmul.f32 %v907, %v1581
        %v1608 = vmul.f32 %v911, %v1581
        %v1609 = vmul.f32 %v915, %v1581
        %v1610 = vmul.f32 %v919, %v1581
        %v1611 = vmul.f32 %v923, %v1581
        %v1612 = vmul.f32 %v927, %v1581
        %v1613 = vmul.f32 %v931, %v1581
        %v1614 = vmul.f32 %v1318, %v1581
        %v1615 = vmul.f32 %v1322, %v1581
        %v1616 = vmul.f32 %v1573, %v1581
        %v1617 = vmul.f32 %v1577, %v1581
        %v1618 = vadd.f32 %v1534, %v1582
        %v1619 = vadd.f32 %v1535, %v1583
        %v1620 = vadd.f32 %v1536, %v1584
        %v1621 = vadd.f32 %v1537, %v1585
        %v1622 = vadd.f32 %v1538, %v1586
        %v1623 = vadd.f32 %v1539, %v1587
        %v1624 = vadd.f32 %v1540, %v1588
        %v1625 = vadd.f32 %v1541, %v1589
        %v1626 = vadd.f32 %v1542, %v1590
        %v1627 = vadd.f32 %v1543, %v1591
        %v1628 = vadd.f32 %v1544, %v1592
        %v1629 = vadd.f32 %v1545, %v1593
        %v1630 = vadd.f32 %v1546, %v1594
        %v1631 = vadd.f32 %v1547, %v1595
        %v1632 = vadd.f32 %v1548, %v1596
        %v1633 = vadd.f32 %v1549, %v1597
        %v1634 = vadd.f32 %v1550, %v1598
        %v1635 = vadd.f32 %v1551, %v1599
        %v1636 = vadd.f32 %v1552, %v1600
        %v1637 = vadd.f32 %v1553, %v1601
        %v1638 = vadd.f32 %v1554, %v1602
        %v1639 = vadd.f32 %v1555, %v1603
        %v1640 = vadd.f32 %v1556, %v1604
        %v1641 = vadd.f32 %v1557, %v1605
        %v1642 = vadd.f32 %v1558, %v1606
        %v1643 = vadd.f32 %v1559, %v1607
        %v1644 = vadd.f32 %v1560, %v1608
        %v1645 = vadd.f32 %v1561, %v1609
        %v1646 = vadd.f32 %v1562, %v1610
        %v1647 = vadd.f32 %v1563, %v1611
        %v1648 = vadd.f32 %v1564, %v1612
        %v1649 = vadd.f32 %v1565, %v1613
        %v1650 = vadd.f32 %v1566, %v1614
        %v1651 = vadd.f32 %v1567, %v1615
        %v1652 = vadd.f32 %v1568, %v1616
        %v1653 = vadd.f32 %v1569, %v1617
        %s1655 = sor.u32 256, 2
        %1656 = vbcast.lane.b32.xlu0 %v1486, %s1655
        %v1657 = vpop.permute.xlu0 %1656
        %s1659 = sor.u32 256, 10
        %1660 = vbcast.lane.b32.xlu0 %v1486, %s1659
        %v1661 = vpop.permute.xlu0 %1660
        %v1662 = vlaneseq
        %v1663 = vshrl.u32 %v1662, 7
        %v1664 = vsub.s32 0, %v1663
        %v1665 = vrot.slane %v477, %v1664
        %v1666 = vmul.f32 %v1027, %v1665
        %v1667 = vmul.f32 %v1031, %v1665
        %v1668 = vmul.f32 %v1035, %v1665
        %v1669 = vmul.f32 %v1039, %v1665
        %v1670 = vmul.f32 %v1043, %v1665
        %v1671 = vmul.f32 %v1047, %v1665
        %v1672 = vmul.f32 %v1051, %v1665
        %v1673 = vmul.f32 %v1055, %v1665
        %v1674 = vmul.f32 %v1059, %v1665
        %v1675 = vmul.f32 %v1063, %v1665
        %v1676 = vmul.f32 %v1067, %v1665
        %v1677 = vmul.f32 %v1071, %v1665
        %v1678 = vmul.f32 %v1075, %v1665
        %v1679 = vmul.f32 %v1079, %v1665
        %v1680 = vmul.f32 %v1083, %v1665
        %v1681 = vmul.f32 %v1087, %v1665
        %v1682 = vmul.f32 %v1091, %v1665
        %v1683 = vmul.f32 %v1095, %v1665
        %v1684 = vmul.f32 %v1099, %v1665
        %v1685 = vmul.f32 %v1103, %v1665
        %v1686 = vmul.f32 %v1107, %v1665
        %v1687 = vmul.f32 %v1111, %v1665
        %v1688 = vmul.f32 %v1115, %v1665
        %v1689 = vmul.f32 %v1119, %v1665
        %v1690 = vmul.f32 %v1123, %v1665
        %v1691 = vmul.f32 %v1127, %v1665
        %v1692 = vmul.f32 %v1131, %v1665
        %v1693 = vmul.f32 %v1135, %v1665
        %v1694 = vmul.f32 %v1139, %v1665
        %v1695 = vmul.f32 %v1143, %v1665
        %v1696 = vmul.f32 %v1147, %v1665
        %v1697 = vmul.f32 %v1151, %v1665
        %v1698 = vmul.f32 %v1402, %v1665
        %v1699 = vmul.f32 %v1406, %v1665
        %v1700 = vmul.f32 %v1657, %v1665
        %v1701 = vmul.f32 %v1661, %v1665
        %v1702 = vadd.f32 %v1618, %v1666
        %v1703 = vadd.f32 %v1619, %v1667
        %v1704 = vadd.f32 %v1620, %v1668
        %v1705 = vadd.f32 %v1621, %v1669
        %v1706 = vadd.f32 %v1622, %v1670
        %v1707 = vadd.f32 %v1623, %v1671
        %v1708 = vadd.f32 %v1624, %v1672
        %v1709 = vadd.f32 %v1625, %v1673
        %v1710 = vadd.f32 %v1626, %v1674
        %v1711 = vadd.f32 %v1627, %v1675
        %v1712 = vadd.f32 %v1628, %v1676
        %v1713 = vadd.f32 %v1629, %v1677
        %v1714 = vadd.f32 %v1630, %v1678
        %v1715 = vadd.f32 %v1631, %v1679
        %v1716 = vadd.f32 %v1632, %v1680
        %v1717 = vadd.f32 %v1633, %v1681
        %v1718 = vadd.f32 %v1634, %v1682
        %v1719 = vadd.f32 %v1635, %v1683
        %v1720 = vadd.f32 %v1636, %v1684
        %v1721 = vadd.f32 %v1637, %v1685
        %v1722 = vadd.f32 %v1638, %v1686
        %v1723 = vadd.f32 %v1639, %v1687
        %v1724 = vadd.f32 %v1640, %v1688
        %v1725 = vadd.f32 %v1641, %v1689
        %v1726 = vadd.f32 %v1642, %v1690
        %v1727 = vadd.f32 %v1643, %v1691
        %v1728 = vadd.f32 %v1644, %v1692
        %v1729 = vadd.f32 %v1645, %v1693
        %v1730 = vadd.f32 %v1646, %v1694
        %v1731 = vadd.f32 %v1647, %v1695
        %v1732 = vadd.f32 %v1648, %v1696
        %v1733 = vadd.f32 %v1649, %v1697
        %v1734 = vadd.f32 %v1650, %v1698
        %v1735 = vadd.f32 %v1651, %v1699
        %v1736 = vadd.f32 %v1652, %v1700
        %v1737 = vadd.f32 %v1653, %v1701
        %v1738 = vlaneseq
        %v1739 = vshrl.u32 %v1738, 7
        %v1740 = vsub.s32 0, %v1739
        %v1741 = vrot.slane %v478, %v1740
        %v1742 = vmul.f32 %v1702, %v1741
        %v1743 = vmul.f32 %v1703, %v1741
        %v1744 = vmul.f32 %v1704, %v1741
        %v1745 = vmul.f32 %v1705, %v1741
        %v1746 = vmul.f32 %v1706, %v1741
        %v1747 = vmul.f32 %v1707, %v1741
        %v1748 = vmul.f32 %v1708, %v1741
        %v1749 = vmul.f32 %v1709, %v1741
        %v1750 = vmul.f32 %v1710, %v1741
        %v1751 = vmul.f32 %v1711, %v1741
        %v1752 = vmul.f32 %v1712, %v1741
        %v1753 = vmul.f32 %v1713, %v1741
        %v1754 = vmul.f32 %v1714, %v1741
        %v1755 = vmul.f32 %v1715, %v1741
        %v1756 = vmul.f32 %v1716, %v1741
        %v1757 = vmul.f32 %v1717, %v1741
        %v1758 = vmul.f32 %v1718, %v1741
        %v1759 = vmul.f32 %v1719, %v1741
        %v1760 = vmul.f32 %v1720, %v1741
        %v1761 = vmul.f32 %v1721, %v1741
        %v1762 = vmul.f32 %v1722, %v1741
        %v1763 = vmul.f32 %v1723, %v1741
        %v1764 = vmul.f32 %v1724, %v1741
        %v1765 = vmul.f32 %v1725, %v1741
        %v1766 = vmul.f32 %v1726, %v1741
        %v1767 = vmul.f32 %v1727, %v1741
        %v1768 = vmul.f32 %v1728, %v1741
        %v1769 = vmul.f32 %v1729, %v1741
        %v1770 = vmul.f32 %v1730, %v1741
        %v1771 = vmul.f32 %v1731, %v1741
        %v1772 = vmul.f32 %v1732, %v1741
        %v1773 = vmul.f32 %v1733, %v1741
        %v1774 = vmul.f32 %v1734, %v1741
        %v1775 = vmul.f32 %v1735, %v1741
        %v1776 = vmul.f32 %v1736, %v1741
        %v1777 = vmul.f32 %v1737, %v1741
        %v1778 = vlaneseq
        %v1779 = vshrl.u32 %v1778, 7
        %v1780 = vsub.s32 1, %v1779
        %v1781 = vrot.slane %v478, %v1780
        %v1782 = vadd.f32 %v1742, %v1781
        %v1783 = vadd.f32 %v1743, %v1781
        %v1784 = vadd.f32 %v1744, %v1781
        %v1785 = vadd.f32 %v1745, %v1781
        %v1786 = vadd.f32 %v1746, %v1781
        %v1787 = vadd.f32 %v1747, %v1781
        %v1788 = vadd.f32 %v1748, %v1781
        %v1789 = vadd.f32 %v1749, %v1781
        %v1790 = vadd.f32 %v1750, %v1781
        %v1791 = vadd.f32 %v1751, %v1781
        %v1792 = vadd.f32 %v1752, %v1781
        %v1793 = vadd.f32 %v1753, %v1781
        %v1794 = vadd.f32 %v1754, %v1781
        %v1795 = vadd.f32 %v1755, %v1781
        %v1796 = vadd.f32 %v1756, %v1781
        %v1797 = vadd.f32 %v1757, %v1781
        %v1798 = vadd.f32 %v1758, %v1781
        %v1799 = vadd.f32 %v1759, %v1781
        %v1800 = vadd.f32 %v1760, %v1781
        %v1801 = vadd.f32 %v1761, %v1781
        %v1802 = vadd.f32 %v1762, %v1781
        %v1803 = vadd.f32 %v1763, %v1781
        %v1804 = vadd.f32 %v1764, %v1781
        %v1805 = vadd.f32 %v1765, %v1781
        %v1806 = vadd.f32 %v1766, %v1781
        %v1807 = vadd.f32 %v1767, %v1781
        %v1808 = vadd.f32 %v1768, %v1781
        %v1809 = vadd.f32 %v1769, %v1781
        %v1810 = vadd.f32 %v1770, %v1781
        %v1811 = vadd.f32 %v1771, %v1781
        %v1812 = vadd.f32 %v1772, %v1781
        %v1813 = vadd.f32 %v1773, %v1781
        %v1814 = vadd.f32 %v1774, %v1781
        %v1815 = vadd.f32 %v1775, %v1781
        %v1816 = vadd.f32 %v1776, %v1781
        %v1817 = vadd.f32 %v1777, %v1781
        %v1818 = vmax.f32 %v1782, 0.0
        %v1819 = vmax.f32 %v1783, 0.0
        %v1820 = vmax.f32 %v1784, 0.0
        %v1821 = vmax.f32 %v1785, 0.0
        %v1822 = vmax.f32 %v1786, 0.0
        %v1823 = vmax.f32 %v1787, 0.0
        %v1824 = vmax.f32 %v1788, 0.0
        %v1825 = vmax.f32 %v1789, 0.0
        %v1826 = vmax.f32 %v1790, 0.0
        %v1827 = vmax.f32 %v1791, 0.0
        %v1828 = vmax.f32 %v1792, 0.0
        %v1829 = vmax.f32 %v1793, 0.0
        %v1830 = vmax.f32 %v1794, 0.0
        %v1831 = vmax.f32 %v1795, 0.0
        %v1832 = vmax.f32 %v1796, 0.0
        %v1833 = vmax.f32 %v1797, 0.0
        %v1834 = vmax.f32 %v1798, 0.0
        %v1835 = vmax.f32 %v1799, 0.0
        %v1836 = vmax.f32 %v1800, 0.0
        %v1837 = vmax.f32 %v1801, 0.0
        %v1838 = vmax.f32 %v1802, 0.0
        %v1839 = vmax.f32 %v1803, 0.0
        %v1840 = vmax.f32 %v1804, 0.0
        %v1841 = vmax.f32 %v1805, 0.0
        %v1842 = vmax.f32 %v1806, 0.0
        %v1843 = vmax.f32 %v1807, 0.0
        %v1844 = vmax.f32 %v1808, 0.0
        %v1845 = vmax.f32 %v1809, 0.0
        %v1846 = vmax.f32 %v1810, 0.0
        %v1847 = vmax.f32 %v1811, 0.0
        %v1848 = vmax.f32 %v1812, 0.0
        %v1849 = vmax.f32 %v1813, 0.0
        %v1850 = vmax.f32 %v1814, 0.0
        %v1851 = vmax.f32 %v1815, 0.0
        %v1852 = vmax.f32 %v1816, 0.0
        %v1853 = vmax.f32 %v1817, 0.0
        %v1854 = vmul.f32 %v1818, %v452
        %v1855 = vmul.f32 %v1819, %v452
        %v1856 = vmul.f32 %v1820, %v453
        %v1857 = vmul.f32 %v1821, %v453
        %v1858 = vmul.f32 %v1822, %v454
        %v1859 = vmul.f32 %v1823, %v454
        %v1860 = vmul.f32 %v1824, %v455
        %v1861 = vmul.f32 %v1825, %v455
        %v1862 = vmul.f32 %v1826, %v456
        %v1863 = vmul.f32 %v1827, %v456
        %v1864 = vmul.f32 %v1828, %v457
        %v1865 = vmul.f32 %v1829, %v457
        %v1866 = vmul.f32 %v1830, %v458
        %v1867 = vmul.f32 %v1831, %v458
        %v1868 = vmul.f32 %v1832, %v459
        %v1869 = vmul.f32 %v1833, %v459
        %v1870 = vmul.f32 %v1834, %v460
        %v1871 = vmul.f32 %v1835, %v460
        %v1872 = vmul.f32 %v1836, %v461
        %v1873 = vmul.f32 %v1837, %v461
        %v1874 = vmul.f32 %v1838, %v462
        %v1875 = vmul.f32 %v1839, %v462
        %v1876 = vmul.f32 %v1840, %v463
        %v1877 = vmul.f32 %v1841, %v463
        %v1878 = vmul.f32 %v1842, %v464
        %v1879 = vmul.f32 %v1843, %v464
        %v1880 = vmul.f32 %v1844, %v465
        %v1881 = vmul.f32 %v1845, %v465
        %v1882 = vmul.f32 %v1846, %v466
        %v1883 = vmul.f32 %v1847, %v466
        %v1884 = vmul.f32 %v1848, %v467
        %v1885 = vmul.f32 %v1849, %v467
        %v1886 = vmul.f32 %v1850, %v468
        %v1887 = vmul.f32 %v1851, %v468
        %v1888 = vmul.f32 %v1852, %v469
        %v1889 = vmul.f32 %v1853, %v469
        %v1890 = vpack.c.bf16 %v1855, %v1854
        %v1891 = vpack.c.bf16 %v1857, %v1856
        %v1892 = vpack.c.bf16 %v1859, %v1858
        %v1893 = vpack.c.bf16 %v1861, %v1860
        %v1894 = vpack.c.bf16 %v1863, %v1862
        %v1895 = vpack.c.bf16 %v1865, %v1864
        %v1896 = vpack.c.bf16 %v1867, %v1866
        %v1897 = vpack.c.bf16 %v1869, %v1868
        %v1898 = vpack.c.bf16 %v1871, %v1870
        %v1899 = vpack.c.bf16 %v1873, %v1872
        %v1900 = vpack.c.bf16 %v1875, %v1874
        %v1901 = vpack.c.bf16 %v1877, %v1876
        %v1902 = vpack.c.bf16 %v1879, %v1878
        %v1903 = vpack.c.bf16 %v1881, %v1880
        %v1904 = vpack.c.bf16 %v1883, %v1882
        %v1905 = vpack.c.bf16 %v1885, %v1884
        %v1906 = vpack.c.bf16 %v1887, %v1886
        %v1907 = vpack.c.bf16 %v1889, %v1888
        %1908 = vst.msk [vmem:[#allocation2] sm:$0xff] %vm471, %v1890
        %1909 = vst.msk [vmem:[#allocation2 + $0x8] sm:$0xff] %vm471, %v1891
        %1910 = vst.msk [vmem:[#allocation2 + $0x10] sm:$0xff] %vm471, %v1892
        %1911 = vst.msk [vmem:[#allocation2 + $0x18] sm:$0xff] %vm471, %v1893
        %1912 = vst.msk [vmem:[#allocation2 + $0x20] sm:$0xff] %vm471, %v1894
        %1913 = vst.msk [vmem:[#allocation2 + $0x28] sm:$0xff] %vm471, %v1895
        %1914 = vst.msk [vmem:[#allocation2 + $0x30] sm:$0xff] %vm471, %v1896
        %1915 = vst.msk [vmem:[#allocation2 + $0x38] sm:$0xff] %vm471, %v1897
        %1916 = vst.msk [vmem:[#allocation2 + $0x40] sm:$0xff] %vm471, %v1898
        %1917 = vst.msk [vmem:[#allocation2 + $0x48] sm:$0xff] %vm471, %v1899
        %1918 = vst.msk [vmem:[#allocation2 + $0x50] sm:$0xff] %vm471, %v1900
        %1919 = vst.msk [vmem:[#allocation2 + $0x58] sm:$0xff] %vm471, %v1901
        %1920 = vst.msk [vmem:[#allocation2 + $0x60] sm:$0xff] %vm471, %v1902
        %1921 = vst.msk [vmem:[#allocation2 + $0x68] sm:$0xff] %vm471, %v1903
        %1922 = vst.msk [vmem:[#allocation2 + $0x70] sm:$0xff] %vm471, %v1904
        %1923 = vst.msk [vmem:[#allocation2 + $0x78] sm:$0xff] %vm471, %v1905
        %1924 = vst.msk [vmem:[#allocation2 + $0x80] sm:$0xff] %vm471, %v1906
        %1925 = vst.msk [vmem:[#allocation2 + $0x88] sm:$0xff] %vm471, %v1907
        loop: start=0, step=1, limit=3
        $region69: #{tpu_custom_call.1} parent=43 // loop_pre_header
          _
        $region70: #{tpu_custom_call.1} parent=43 // loop_header
          %s1927 = sphi 0, %s1931
          %p1928 = scmp.ge.s32.totalorder %s1927, 3
        $region71: #{tpu_custom_call.1} parent=43 // loop_header_branch
          %1930 = sbr.rel (%p1928) target = $region75
        $region72: #{tpu_custom_call.1} parent=43 // loop_body
          %v1932 = vld [vmem:[#allocation2] sm:$0xff]
          %v1933 = vld [vmem:[#allocation2 + $0x8] sm:$0xff]
          %v1934 = vld [vmem:[#allocation2 + $0x10] sm:$0xff]
          %v1935 = vld [vmem:[#allocation2 + $0x18] sm:$0xff]
          %v1936 = vld [vmem:[#allocation2 + $0x20] sm:$0xff]
          %v1937 = vld [vmem:[#allocation2 + $0x28] sm:$0xff]
          %v1938 = vld [vmem:[#allocation2 + $0x30] sm:$0xff]
          %v1939 = vld [vmem:[#allocation2 + $0x38] sm:$0xff]
          %v1940 = vld [vmem:[#allocation2 + $0x40] sm:$0xff]
          %v1941 = vld [vmem:[#allocation2 + $0x48] sm:$0xff]
          %v1942 = vld [vmem:[#allocation2 + $0x50] sm:$0xff]
          %v1943 = vld [vmem:[#allocation2 + $0x58] sm:$0xff]
          %v1944 = vld [vmem:[#allocation2 + $0x60] sm:$0xff]
          %v1945 = vld [vmem:[#allocation2 + $0x68] sm:$0xff]
          %v1946 = vld [vmem:[#allocation2 + $0x70] sm:$0xff]
          %v1947 = vld [vmem:[#allocation2 + $0x78] sm:$0xff]
          %v1948 = vld [vmem:[#allocation2 + $0x80] sm:$0xff]
          %v1949 = vld [vmem:[#allocation2 + $0x88] sm:$0xff]
          %v1951 = vshrl.u32 %v1932, 16
          %v1953 = vrot.slane %v1951, 7
          %v1954 = vshll.u32 %v1932, 16
          %v1956 = vor.u32 %v1953, %v1954
          %v1958 = vshrl.u32 %v1933, 16
          %v1960 = vrot.slane %v1958, 7
          %v1961 = vshll.u32 %v1933, 16
          %v1963 = vor.u32 %v1960, %v1961
          %v1965 = vshrl.u32 %v1934, 16
          %v1967 = vrot.slane %v1965, 7
          %v1968 = vshll.u32 %v1934, 16
          %v1970 = vor.u32 %v1967, %v1968
          %v1972 = vshrl.u32 %v1935, 16
          %v1974 = vrot.slane %v1972, 7
          %v1975 = vshll.u32 %v1935, 16
          %v1977 = vor.u32 %v1974, %v1975
          %v1979 = vshrl.u32 %v1936, 16
          %v1981 = vrot.slane %v1979, 7
          %v1982 = vshll.u32 %v1936, 16
          %v1984 = vor.u32 %v1981, %v1982
          %v1986 = vshrl.u32 %v1937, 16
          %v1988 = vrot.slane %v1986, 7
          %v1989 = vshll.u32 %v1937, 16
          %v1991 = vor.u32 %v1988, %v1989
          %v1993 = vshrl.u32 %v1938, 16
          %v1995 = vrot.slane %v1993, 7
          %v1996 = vshll.u32 %v1938, 16
          %v1998 = vor.u32 %v1995, %v1996
          %v2000 = vshrl.u32 %v1939, 16
          %v2002 = vrot.slane %v2000, 7
          %v2003 = vshll.u32 %v1939, 16
          %v2005 = vor.u32 %v2002, %v2003
          %v2007 = vshrl.u32 %v1940, 16
          %v2009 = vrot.slane %v2007, 7
          %v2010 = vshll.u32 %v1940, 16
          %v2012 = vor.u32 %v2009, %v2010
          %v2014 = vshrl.u32 %v1941, 16
          %v2016 = vrot.slane %v2014, 7
          %v2017 = vshll.u32 %v1941, 16
          %v2019 = vor.u32 %v2016, %v2017
          %v2021 = vshrl.u32 %v1942, 16
          %v2023 = vrot.slane %v2021, 7
          %v2024 = vshll.u32 %v1942, 16
          %v2026 = vor.u32 %v2023, %v2024
          %v2028 = vshrl.u32 %v1943, 16
          %v2030 = vrot.slane %v2028, 7
          %v2031 = vshll.u32 %v1943, 16
          %v2033 = vor.u32 %v2030, %v2031
          %v2035 = vshrl.u32 %v1944, 16
          %v2037 = vrot.slane %v2035, 7
          %v2038 = vshll.u32 %v1944, 16
          %v2040 = vor.u32 %v2037, %v2038
          %v2042 = vshrl.u32 %v1945, 16
          %v2044 = vrot.slane %v2042, 7
          %v2045 = vshll.u32 %v1945, 16
          %v2047 = vor.u32 %v2044, %v2045
          %v2049 = vshrl.u32 %v1946, 16
          %v2051 = vrot.slane %v2049, 7
          %v2052 = vshll.u32 %v1946, 16
          %v2054 = vor.u32 %v2051, %v2052
          %v2056 = vshrl.u32 %v1947, 16
          %v2058 = vrot.slane %v2056, 7
          %v2059 = vshll.u32 %v1947, 16
          %v2061 = vor.u32 %v2058, %v2059
          %v2063 = vshrl.u32 %v1948, 16
          %v2065 = vrot.slane %v2063, 7
          %v2066 = vshll.u32 %v1948, 16
          %v2068 = vor.u32 %v2065, %v2066
          %v2070 = vshrl.u32 %v1949, 16
          %v2072 = vrot.slane %v2070, 7
          %v2073 = vshll.u32 %v1949, 16
          %v2075 = vor.u32 %v2072, %v2073
          %vm2094 = vcmask 1040384
          %vm2095 = vsmask.f32 256
          %vm2096 = vmand %vm2094, %vm2095
          %v2097 = vsel %vm2096, 0, %v1956
          %v2098 = vsel %vm2096, 0, %v1963
          %v2099 = vsel %vm2096, 0, %v1970
          %v2100 = vsel %vm2096, 0, %v1977
          %v2101 = vsel %vm2096, 0, %v1984
          %v2102 = vsel %vm2096, 0, %v1991
          %v2103 = vsel %vm2096, 0, %v1998
          %v2104 = vsel %vm2096, 0, %v2005
          %v2105 = vsel %vm2096, 0, %v2012
          %v2106 = vsel %vm2096, 0, %v2019
          %v2107 = vsel %vm2096, 0, %v2026
          %v2108 = vsel %vm2096, 0, %v2033
          %v2109 = vsel %vm2096, 0, %v2040
          %v2110 = vsel %vm2096, 0, %v2047
          %v2111 = vsel %vm2096, 0, %v2054
          %v2112 = vsel %vm2096, 0, %v2061
          %v2113 = vsel %vm2096, 0, %v2068
          %v2114 = vsel %vm2096, 0, %v2075
          %v2115 = vrot.slane %v1954, 1
          %v2116 = vor.u32 %v1951, %v2115
          %v2117 = vrot.slane %v1961, 1
          %v2118 = vor.u32 %v1958, %v2117
          %v2119 = vrot.slane %v1968, 1
          %v2120 = vor.u32 %v1965, %v2119
          %v2121 = vrot.slane %v1975, 1
          %v2122 = vor.u32 %v1972, %v2121
          %v2123 = vrot.slane %v1982, 1
          %v2124 = vor.u32 %v1979, %v2123
          %v2125 = vrot.slane %v1989, 1
          %v2126 = vor.u32 %v1986, %v2125
          %v2127 = vrot.slane %v1996, 1
          %v2128 = vor.u32 %v1993, %v2127
          %v2129 = vrot.slane %v2003, 1
          %v2130 = vor.u32 %v2000, %v2129
          %v2131 = vrot.slane %v2010, 1
          %v2132 = vor.u32 %v2007, %v2131
          %v2133 = vrot.slane %v2017, 1
          %v2134 = vor.u32 %v2014, %v2133
          %v2135 = vrot.slane %v2024, 1
          %v2136 = vor.u32 %v2021, %v2135
          %v2137 = vrot.slane %v2031, 1
          %v2138 = vor.u32 %v2028, %v2137
          %v2139 = vrot.slane %v2038, 1
          %v2140 = vor.u32 %v2035, %v2139
          %v2141 = vrot.slane %v2045, 1
          %v2142 = vor.u32 %v2042, %v2141
          %v2143 = vrot.slane %v2052, 1
          %v2144 = vor.u32 %v2049, %v2143
          %v2145 = vrot.slane %v2059, 1
          %v2146 = vor.u32 %v2056, %v2145
          %v2147 = vrot.slane %v2066, 1
          %v2148 = vor.u32 %v2063, %v2147
          %v2149 = vrot.slane %v2073, 1
          %v2150 = vor.u32 %v2070, %v2149
          %vm2169 = vcmask 1047552
          %vm2170 = vsmask.f32 7424
          %vm2171 = vmand %vm2169, %vm2170
          %v2172 = vsel %vm2171, %v2116, 0
          %v2173 = vsel %vm2171, %v2118, 0
          %v2174 = vsel %vm2171, %v2120, 0
          %v2175 = vsel %vm2171, %v2122, 0
          %v2176 = vsel %vm2171, %v2124, 0
          %v2177 = vsel %vm2171, %v2126, 0
          %v2178 = vsel %vm2171, %v2128, 0
          %v2179 = vsel %vm2171, %v2130, 0
          %v2180 = vsel %vm2171, %v2132, 0
          %v2181 = vsel %vm2171, %v2134, 0
          %v2182 = vsel %vm2171, %v2136, 0
          %v2183 = vsel %vm2171, %v2138, 0
          %v2184 = vsel %vm2171, %v2140, 0
          %v2185 = vsel %vm2171, %v2142, 0
          %v2186 = vsel %vm2171, %v2144, 0
          %v2187 = vsel %vm2171, %v2146, 0
          %v2188 = vsel %vm2171, %v2148, 0
          %v2189 = vsel %vm2171, %v2150, 0
          %2208 = vrot.lane.b32.xlu0 %v1932, 64
          %v2209 = vpop.permute.xlu0 %2208
          %2210 = vrot.lane.b32.xlu0 %v1933, 64
          %v2211 = vpop.permute.xlu0 %2210
          %2212 = vrot.lane.b32.xlu0 %v1934, 64
          %v2213 = vpop.permute.xlu0 %2212
          %2214 = vrot.lane.b32.xlu0 %v1935, 64
          %v2215 = vpop.permute.xlu0 %2214
          %2216 = vrot.lane.b32.xlu0 %v1936, 64
          %v2217 = vpop.permute.xlu0 %2216
          %2218 = vrot.lane.b32.xlu0 %v1937, 64
          %v2219 = vpop.permute.xlu0 %2218
          %2220 = vrot.lane.b32.xlu0 %v1938, 64
          %v2221 = vpop.permute.xlu0 %2220
          %2222 = vrot.lane.b32.xlu0 %v1939, 64
          %v2223 = vpop.permute.xlu0 %2222
          %2224 = vrot.lane.b32.xlu0 %v1940, 64
          %v2225 = vpop.permute.xlu0 %2224
          %2226 = vrot.lane.b32.xlu0 %v1941, 64
          %v2227 = vpop.permute.xlu0 %2226
          %2228 = vrot.lane.b32.xlu0 %v1942, 64
          %v2229 = vpop.permute.xlu0 %2228
          %2230 = vrot.lane.b32.xlu0 %v1943, 64
          %v2231 = vpop.permute.xlu0 %2230
          %2232 = vrot.lane.b32.xlu0 %v1944, 64
          %v2233 = vpop.permute.xlu0 %2232
          %2234 = vrot.lane.b32.xlu0 %v1945, 64
          %v2235 = vpop.permute.xlu0 %2234
          %2236 = vrot.lane.b32.xlu0 %v1946, 64
          %v2237 = vpop.permute.xlu0 %2236
          %2238 = vrot.lane.b32.xlu0 %v1947, 64
          %v2239 = vpop.permute.xlu0 %2238
          %2240 = vrot.lane.b32.xlu0 %v1948, 64
          %v2241 = vpop.permute.xlu0 %2240
          %2242 = vrot.lane.b32.xlu0 %v1949, 64
          %v2243 = vpop.permute.xlu0 %2242
          %v2246 = vsel %vm471, %v2097, %v2209
          %v2250 = vsel %vm471, %v2098, %v2211
          %v2254 = vsel %vm471, %v2099, %v2213
          %v2258 = vsel %vm471, %v2100, %v2215
          %v2262 = vsel %vm471, %v2101, %v2217
          %v2266 = vsel %vm471, %v2102, %v2219
          %v2270 = vsel %vm471, %v2103, %v2221
          %v2274 = vsel %vm471, %v2104, %v2223
          %v2278 = vsel %vm471, %v2105, %v2225
          %v2282 = vsel %vm471, %v2106, %v2227
          %v2286 = vsel %vm471, %v2107, %v2229
          %v2290 = vsel %vm471, %v2108, %v2231
          %v2294 = vsel %vm471, %v2109, %v2233
          %v2298 = vsel %vm471, %v2110, %v2235
          %v2302 = vsel %vm471, %v2111, %v2237
          %v2306 = vsel %vm471, %v2112, %v2239
          %v2310 = vsel %vm471, %v2113, %v2241
          %v2314 = vsel %vm471, %v2114, %v2243
          %s2316 = scalar_lea.vmem [#allocation3], 16
          %2317 = vst [vmem:[%s2316] sm:$0xff] %v2246
          %2318 = vst.msk [vmem:[%s2316 + $0x8] sm:$0xff] %vm471, %v2172
          %2319 = vst [vmem:[%s2316 + $0x10] sm:$0xff] %v2250
          %2320 = vst.msk [vmem:[%s2316 + $0x18] sm:$0xff] %vm471, %v2173
          %2321 = vst [vmem:[%s2316 + $0x20] sm:$0xff] %v2254
          %2322 = vst.msk [vmem:[%s2316 + $0x28] sm:$0xff] %vm471, %v2174
          %2323 = vst [vmem:[%s2316 + $0x30] sm:$0xff] %v2258
          %2324 = vst.msk [vmem:[%s2316 + $0x38] sm:$0xff] %vm471, %v2175
          %2325 = vst [vmem:[%s2316 + $0x40] sm:$0xff] %v2262
          %2326 = vst.msk [vmem:[%s2316 + $0x48] sm:$0xff] %vm471, %v2176
          %2327 = vst [vmem:[%s2316 + $0x50] sm:$0xff] %v2266
          %2328 = vst.msk [vmem:[%s2316 + $0x58] sm:$0xff] %vm471, %v2177
          %2329 = vst [vmem:[%s2316 + $0x60] sm:$0xff] %v2270
          %2330 = vst.msk [vmem:[%s2316 + $0x68] sm:$0xff] %vm471, %v2178
          %2331 = vst [vmem:[%s2316 + $0x70] sm:$0xff] %v2274
          %2332 = vst.msk [vmem:[%s2316 + $0x78] sm:$0xff] %vm471, %v2179
          %2333 = vst [vmem:[%s2316 + $0x80] sm:$0xff] %v2278
          %2334 = vst.msk [vmem:[%s2316 + $0x88] sm:$0xff] %vm471, %v2180
          %2335 = vst [vmem:[%s2316 + $0x90] sm:$0xff] %v2282
          %2336 = vst.msk [vmem:[%s2316 + $0x98] sm:$0xff] %vm471, %v2181
          %2337 = vst [vmem:[%s2316 + $0xa0] sm:$0xff] %v2286
          %2338 = vst.msk [vmem:[%s2316 + $0xa8] sm:$0xff] %vm471, %v2182
          %2339 = vst [vmem:[%s2316 + $0xb0] sm:$0xff] %v2290
          %2340 = vst.msk [vmem:[%s2316 + $0xb8] sm:$0xff] %vm471, %v2183
          %2341 = vst [vmem:[%s2316 + $0xc0] sm:$0xff] %v2294
          %2342 = vst.msk [vmem:[%s2316 + $0xc8] sm:$0xff] %vm471, %v2184
          %2343 = vst [vmem:[%s2316 + $0xd0] sm:$0xff] %v2298
          %2344 = vst.msk [vmem:[%s2316 + $0xd8] sm:$0xff] %vm471, %v2185
          %2345 = vst [vmem:[%s2316 + $0xe0] sm:$0xff] %v2302
          %2346 = vst.msk [vmem:[%s2316 + $0xe8] sm:$0xff] %vm471, %v2186
          %2347 = vst [vmem:[%s2316 + $0xf0] sm:$0xff] %v2306
          %2348 = vst.msk [vmem:[%s2316 + $0xf8] sm:$0xff] %vm471, %v2187
          %2349 = vst [vmem:[%s2316 + $0x100] sm:$0xff] %v2310
          %2350 = vst.msk [vmem:[%s2316 + $0x108] sm:$0xff] %vm471, %v2188
          %2351 = vst [vmem:[%s2316 + $0x110] sm:$0xff] %v2314
          %2352 = vst.msk [vmem:[%s2316 + $0x118] sm:$0xff] %vm471, %v2189
          %s2353 = smul.u32 %s1927, 72
          %s2354 = smul.addr %s2353, 4
          %s2355 = scalar_lea.vmem [#allocation11], %s2354
          %v2356 = vld [vmem:[%s2355] sm:$0xf]
          %v2357 = vld [vmem:[%s2355 + $0x4] sm:$0xf]
          %v2358 = vld [vmem:[%s2355 + $0x8] sm:$0xf]
          %v2359 = vld [vmem:[%s2355 + $0xc] sm:$0xf]
          %v2360 = vld [vmem:[%s2355 + $0x10] sm:$0xf]
          %v2361 = vld [vmem:[%s2355 + $0x14] sm:$0xf]
          %v2362 = vld [vmem:[%s2355 + $0x18] sm:$0xf]
          %v2363 = vld [vmem:[%s2355 + $0x1c] sm:$0xf]
          %v2364 = vld [vmem:[%s2355 + $0x20] sm:$0xf]
          %v2365 = vld [vmem:[%s2355 + $0x24] sm:$0xf]
          %v2366 = vld [vmem:[%s2355 + $0x28] sm:$0xf]
          %v2367 = vld [vmem:[%s2355 + $0x2c] sm:$0xf]
          %v2368 = vld [vmem:[%s2355 + $0x30] sm:$0xf]
          %v2369 = vld [vmem:[%s2355 + $0x34] sm:$0xf]
          %v2370 = vld [vmem:[%s2355 + $0x38] sm:$0xf]
          %v2371 = vld [vmem:[%s2355 + $0x3c] sm:$0xf]
          %v2372 = vld [vmem:[%s2355 + $0x40] sm:$0xf]
          %v2373 = vld [vmem:[%s2355 + $0x44] sm:$0xf]
          %v2374 = vld [vmem:[%s2355 + $0x48] sm:$0xf]
          %v2375 = vld [vmem:[%s2355 + $0x4c] sm:$0xf]
          %v2376 = vld [vmem:[%s2355 + $0x50] sm:$0xf]
          %v2377 = vld [vmem:[%s2355 + $0x54] sm:$0xf]
          %v2378 = vld [vmem:[%s2355 + $0x58] sm:$0xf]
          %v2379 = vld [vmem:[%s2355 + $0x5c] sm:$0xf]
          %v2380 = vld [vmem:[%s2355 + $0x60] sm:$0xf]
          %v2381 = vld [vmem:[%s2355 + $0x64] sm:$0xf]
          %v2382 = vld [vmem:[%s2355 + $0x68] sm:$0xf]
          %v2383 = vld [vmem:[%s2355 + $0x6c] sm:$0xf]
          %v2384 = vld [vmem:[%s2355 + $0x70] sm:$0xf]
          %v2385 = vld [vmem:[%s2355 + $0x74] sm:$0xf]
          %v2386 = vld [vmem:[%s2355 + $0x78] sm:$0xf]
          %v2387 = vld [vmem:[%s2355 + $0x7c] sm:$0xf]
          %v2388 = vld [vmem:[%s2355 + $0x80] sm:$0xf]
          %v2389 = vld [vmem:[%s2355 + $0x84] sm:$0xf]
          %v2390 = vld [vmem:[%s2355 + $0x88] sm:$0xf]
          %v2391 = vld [vmem:[%s2355 + $0x8c] sm:$0xf]
          %v2392 = vld [vmem:[%s2355 + $0x90] sm:$0xf]
          %v2393 = vld [vmem:[%s2355 + $0x94] sm:$0xf]
          %v2394 = vld [vmem:[%s2355 + $0x98] sm:$0xf]
          %v2395 = vld [vmem:[%s2355 + $0x9c] sm:$0xf]
          %v2396 = vld [vmem:[%s2355 + $0xa0] sm:$0xf]
          %v2397 = vld [vmem:[%s2355 + $0xa4] sm:$0xf]
          %v2398 = vld [vmem:[%s2355 + $0xa8] sm:$0xf]
          %v2399 = vld [vmem:[%s2355 + $0xac] sm:$0xf]
          %v2400 = vld [vmem:[%s2355 + $0xb0] sm:$0xf]
          %v2401 = vld [vmem:[%s2355 + $0xb4] sm:$0xf]
          %v2402 = vld [vmem:[%s2355 + $0xb8] sm:$0xf]
          %v2403 = vld [vmem:[%s2355 + $0xbc] sm:$0xf]
          %v2404 = vld [vmem:[%s2355 + $0xc0] sm:$0xf]
          %v2405 = vld [vmem:[%s2355 + $0xc4] sm:$0xf]
          %v2406 = vld [vmem:[%s2355 + $0xc8] sm:$0xf]
          %v2407 = vld [vmem:[%s2355 + $0xcc] sm:$0xf]
          %v2408 = vld [vmem:[%s2355 + $0xd0] sm:$0xf]
          %v2409 = vld [vmem:[%s2355 + $0xd4] sm:$0xf]
          %v2410 = vld [vmem:[%s2355 + $0xd8] sm:$0xf]
          %v2411 = vld [vmem:[%s2355 + $0xdc] sm:$0xf]
          %v2412 = vld [vmem:[%s2355 + $0xe0] sm:$0xf]
          %v2413 = vld [vmem:[%s2355 + $0xe4] sm:$0xf]
          %v2414 = vld [vmem:[%s2355 + $0xe8] sm:$0xf]
          %v2415 = vld [vmem:[%s2355 + $0xec] sm:$0xf]
          %v2416 = vld [vmem:[%s2355 + $0xf0] sm:$0xf]
          %v2417 = vld [vmem:[%s2355 + $0xf4] sm:$0xf]
          %v2418 = vld [vmem:[%s2355 + $0xf8] sm:$0xf]
          %v2419 = vld [vmem:[%s2355 + $0xfc] sm:$0xf]
          %v2420 = vld [vmem:[%s2355 + $0x100] sm:$0xf]
          %v2421 = vld [vmem:[%s2355 + $0x104] sm:$0xf]
          %v2422 = vld [vmem:[%s2355 + $0x108] sm:$0xf]
          %v2423 = vld [vmem:[%s2355 + $0x10c] sm:$0xf]
          %v2424 = vld [vmem:[%s2355 + $0x110] sm:$0xf]
          %v2425 = vld [vmem:[%s2355 + $0x114] sm:$0xf]
          %v2426 = vld [vmem:[%s2355 + $0x118] sm:$0xf]
          %v2427 = vld [vmem:[%s2355 + $0x11c] sm:$0xf]
          %2428 = vst.msk [vmem:[#allocation4] sm:$0xff] %vm471, 0.0
          %2429 = vst.msk [vmem:[#allocation4 + $0x8] sm:$0xff] %vm471, 0.0
          %2430 = vst.msk [vmem:[#allocation4 + $0x10] sm:$0xff] %vm471, 0.0
          %2431 = vst.msk [vmem:[#allocation4 + $0x18] sm:$0xff] %vm471, 0.0
          %2432 = vst.msk [vmem:[#allocation4 + $0x20] sm:$0xff] %vm471, 0.0
          %2433 = vst.msk [vmem:[#allocation4 + $0x28] sm:$0xff] %vm471, 0.0
          %2434 = vst.msk [vmem:[#allocation4 + $0x30] sm:$0xff] %vm471, 0.0
          %2435 = vst.msk [vmem:[#allocation4 + $0x38] sm:$0xff] %vm471, 0.0
          %2436 = vst.msk [vmem:[#allocation4 + $0x40] sm:$0xff] %vm471, 0.0
          %2437 = vst.msk [vmem:[#allocation4 + $0x48] sm:$0xff] %vm471, 0.0
          %2438 = vst.msk [vmem:[#allocation4 + $0x50] sm:$0xff] %vm471, 0.0
          %2439 = vst.msk [vmem:[#allocation4 + $0x58] sm:$0xff] %vm471, 0.0
          %2440 = vst.msk [vmem:[#allocation4 + $0x60] sm:$0xff] %vm471, 0.0
          %2441 = vst.msk [vmem:[#allocation4 + $0x68] sm:$0xff] %vm471, 0.0
          %2442 = vst.msk [vmem:[#allocation4 + $0x70] sm:$0xff] %vm471, 0.0
          %2443 = vst.msk [vmem:[#allocation4 + $0x78] sm:$0xff] %vm471, 0.0
          %2444 = vst.msk [vmem:[#allocation4 + $0x80] sm:$0xff] %vm471, 0.0
          %2445 = vst.msk [vmem:[#allocation4 + $0x88] sm:$0xff] %vm471, 0.0
          %2446 = vst.msk [vmem:[#allocation4 + $0x90] sm:$0xff] %vm471, 0.0
          %2447 = vst.msk [vmem:[#allocation4 + $0x98] sm:$0xff] %vm471, 0.0
          %2448 = vst.msk [vmem:[#allocation4 + $0xa0] sm:$0xff] %vm471, 0.0
          %2449 = vst.msk [vmem:[#allocation4 + $0xa8] sm:$0xff] %vm471, 0.0
          %2450 = vst.msk [vmem:[#allocation4 + $0xb0] sm:$0xff] %vm471, 0.0
          %2451 = vst.msk [vmem:[#allocation4 + $0xb8] sm:$0xff] %vm471, 0.0
          %2452 = vst.msk [vmem:[#allocation4 + $0xc0] sm:$0xff] %vm471, 0.0
          %2453 = vst.msk [vmem:[#allocation4 + $0xc8] sm:$0xff] %vm471, 0.0
          %2454 = vst.msk [vmem:[#allocation4 + $0xd0] sm:$0xff] %vm471, 0.0
          %2455 = vst.msk [vmem:[#allocation4 + $0xd8] sm:$0xff] %vm471, 0.0
          %2456 = vst.msk [vmem:[#allocation4 + $0xe0] sm:$0xff] %vm471, 0.0
          %2457 = vst.msk [vmem:[#allocation4 + $0xe8] sm:$0xff] %vm471, 0.0
          %2458 = vst.msk [vmem:[#allocation4 + $0xf0] sm:$0xff] %vm471, 0.0
          %2459 = vst.msk [vmem:[#allocation4 + $0xf8] sm:$0xff] %vm471, 0.0
          %2460 = vst.msk [vmem:[#allocation4 + $0x100] sm:$0xff] %vm471, 0.0
          %2461 = vst.msk [vmem:[#allocation4 + $0x108] sm:$0xff] %vm471, 0.0
          %2462 = vst.msk [vmem:[#allocation4 + $0x110] sm:$0xff] %vm471, 0.0
          %2463 = vst.msk [vmem:[#allocation4 + $0x118] sm:$0xff] %vm471, 0.0
          %v2464 = vld [vmem:[#allocation3] sm:$0xff]
          %v2465 = vld [vmem:[#allocation3 + $0x8] sm:$0xff]
          %v2466 = vld [vmem:[#allocation3 + $0x10] sm:$0xff]
          %v2467 = vld [vmem:[#allocation3 + $0x18] sm:$0xff]
          %v2468 = vld [vmem:[#allocation3 + $0x20] sm:$0xff]
          %v2469 = vld [vmem:[#allocation3 + $0x28] sm:$0xff]
          %v2470 = vld [vmem:[#allocation3 + $0x30] sm:$0xff]
          %v2471 = vld [vmem:[#allocation3 + $0x38] sm:$0xff]
          %v2472 = vld [vmem:[#allocation3 + $0x40] sm:$0xff]
          %v2473 = vld [vmem:[#allocation3 + $0x48] sm:$0xff]
          %v2474 = vld [vmem:[#allocation3 + $0x50] sm:$0xff]
          %v2475 = vld [vmem:[#allocation3 + $0x58] sm:$0xff]
          %v2476 = vld [vmem:[#allocation3 + $0x60] sm:$0xff]
          %v2477 = vld [vmem:[#allocation3 + $0x68] sm:$0xff]
          %v2478 = vld [vmem:[#allocation3 + $0x70] sm:$0xff]
          %v2479 = vld [vmem:[#allocation3 + $0x78] sm:$0xff]
          %v2480 = vld [vmem:[#allocation3 + $0x80] sm:$0xff]
          %v2481 = vld [vmem:[#allocation3 + $0x88] sm:$0xff]
          %v2482 = vld [vmem:[#allocation3 + $0x90] sm:$0xff]
          %v2483 = vld [vmem:[#allocation3 + $0x98] sm:$0xff]
          %v2484 = vld [vmem:[#allocation3 + $0xa0] sm:$0xff]
          %v2485 = vld [vmem:[#allocation3 + $0xa8] sm:$0xff]
          %v2486 = vld [vmem:[#allocation3 + $0xb0] sm:$0xff]
          %v2487 = vld [vmem:[#allocation3 + $0xb8] sm:$0xff]
          %v2488 = vld [vmem:[#allocation3 + $0xc0] sm:$0xff]
          %v2489 = vld [vmem:[#allocation3 + $0xc8] sm:$0xff]
          %v2490 = vld [vmem:[#allocation3 + $0xd0] sm:$0xff]
          %v2491 = vld [vmem:[#allocation3 + $0xd8] sm:$0xff]
          %v2492 = vld [vmem:[#allocation3 + $0xe0] sm:$0xff]
          %v2493 = vld [vmem:[#allocation3 + $0xe8] sm:$0xff]
          %v2494 = vld [vmem:[#allocation3 + $0xf0] sm:$0xff]
          %v2495 = vld [vmem:[#allocation3 + $0xf8] sm:$0xff]
          %v2496 = vld [vmem:[#allocation3 + $0x100] sm:$0xff]
          %v2497 = vld [vmem:[#allocation3 + $0x108] sm:$0xff]
          %v2498 = vld [vmem:[#allocation3 + $0x110] sm:$0xff]
          %v2499 = vld [vmem:[#allocation3 + $0x118] sm:$0xff]
          %v2500 = vld [vmem:[#allocation4] sm:$0xff]
          %v2501 = vld [vmem:[#allocation4 + $0x8] sm:$0xff]
          %v2502 = vld [vmem:[#allocation4 + $0x10] sm:$0xff]
          %v2503 = vld [vmem:[#allocation4 + $0x18] sm:$0xff]
          %v2504 = vld [vmem:[#allocation4 + $0x20] sm:$0xff]
          %v2505 = vld [vmem:[#allocation4 + $0x28] sm:$0xff]
          %v2506 = vld [vmem:[#allocation4 + $0x30] sm:$0xff]
          %v2507 = vld [vmem:[#allocation4 + $0x38] sm:$0xff]
          %v2508 = vld [vmem:[#allocation4 + $0x40] sm:$0xff]
          %v2509 = vld [vmem:[#allocation4 + $0x48] sm:$0xff]
          %v2510 = vld [vmem:[#allocation4 + $0x50] sm:$0xff]
          %v2511 = vld [vmem:[#allocation4 + $0x58] sm:$0xff]
          %v2512 = vld [vmem:[#allocation4 + $0x60] sm:$0xff]
          %v2513 = vld [vmem:[#allocation4 + $0x68] sm:$0xff]
          %v2514 = vld [vmem:[#allocation4 + $0x70] sm:$0xff]
          %v2515 = vld [vmem:[#allocation4 + $0x78] sm:$0xff]
          %v2516 = vld [vmem:[#allocation4 + $0x80] sm:$0xff]
          %v2517 = vld [vmem:[#allocation4 + $0x88] sm:$0xff]
          %v2518 = vld [vmem:[#allocation4 + $0x90] sm:$0xff]
          %v2519 = vld [vmem:[#allocation4 + $0x98] sm:$0xff]
          %v2520 = vld [vmem:[#allocation4 + $0xa0] sm:$0xff]
          %v2521 = vld [vmem:[#allocation4 + $0xa8] sm:$0xff]
          %v2522 = vld [vmem:[#allocation4 + $0xb0] sm:$0xff]
          %v2523 = vld [vmem:[#allocation4 + $0xb8] sm:$0xff]
          %v2524 = vld [vmem:[#allocation4 + $0xc0] sm:$0xff]
          %v2525 = vld [vmem:[#allocation4 + $0xc8] sm:$0xff]
          %v2526 = vld [vmem:[#allocation4 + $0xd0] sm:$0xff]
          %v2527 = vld [vmem:[#allocation4 + $0xd8] sm:$0xff]
          %v2528 = vld [vmem:[#allocation4 + $0xe0] sm:$0xff]
          %v2529 = vld [vmem:[#allocation4 + $0xe8] sm:$0xff]
          %v2530 = vld [vmem:[#allocation4 + $0xf0] sm:$0xff]
          %v2531 = vld [vmem:[#allocation4 + $0xf8] sm:$0xff]
          %v2532 = vld [vmem:[#allocation4 + $0x100] sm:$0xff]
          %v2533 = vld [vmem:[#allocation4 + $0x108] sm:$0xff]
          %v2534 = vld [vmem:[#allocation4 + $0x110] sm:$0xff]
          %v2535 = vld [vmem:[#allocation4 + $0x118] sm:$0xff]
          %v2560 = vunpack.c.l.b16 %v2356
          %v2561 = vunpack.c.l.b16 %v2357
          %v2562 = vunpack.c.l.b16 %v2358
          %v2563 = vunpack.c.l.b16 %v2359
          %v2564 = vunpack.c.l.b16 %v2360
          %v2565 = vunpack.c.l.b16 %v2361
          %v2566 = vunpack.c.l.b16 %v2362
          %v2567 = vunpack.c.l.b16 %v2363
          %v2568 = vunpack.c.l.b16 %v2364
          %v2569 = vunpack.c.l.b16 %v2365
          %v2570 = vunpack.c.l.b16 %v2366
          %v2571 = vunpack.c.l.b16 %v2367
          %v2572 = vunpack.c.l.b16 %v2368
          %v2573 = vunpack.c.l.b16 %v2369
          %v2574 = vunpack.c.l.b16 %v2370
          %v2575 = vunpack.c.l.b16 %v2371
          %v2576 = vunpack.c.l.b16 %v2372
          %v2577 = vunpack.c.l.b16 %v2373
          %v2578 = vunpack.c.l.b16 %v2374
          %v2579 = vunpack.c.l.b16 %v2375
          %v2580 = vunpack.c.l.b16 %v2376
          %v2581 = vunpack.c.l.b16 %v2377
          %v2582 = vunpack.c.l.b16 %v2378
          %v2583 = vunpack.c.l.b16 %v2379
          %v2584 = vpack.c.b16 %v2561, %v2560
          %v2585 = vpack.c.b16 %v2563, %v2562
          %v2586 = vpack.c.b16 %v2565, %v2564
          %v2587 = vpack.c.b16 %v2567, %v2566
          %v2588 = vpack.c.b16 %v2569, %v2568
          %v2589 = vpack.c.b16 %v2571, %v2570
          %v2590 = vpack.c.b16 %v2573, %v2572
          %v2591 = vpack.c.b16 %v2575, %v2574
          %v2592 = vpack.c.b16 %v2577, %v2576
          %v2593 = vpack.c.b16 %v2579, %v2578
          %v2594 = vpack.c.b16 %v2581, %v2580
          %v2595 = vpack.c.b16 %v2583, %v2582
          %v2609 = vsel %vm471, %v2465, 0
          %v2612 = vsel %vm471, %v2467, 0
          %v2615 = vsel %vm471, %v2469, 0
          %v2618 = vsel %vm471, %v2471, 0
          %v2621 = vsel %vm471, %v2473, 0
          %v2624 = vsel %vm471, %v2475, 0
          %v2627 = vsel %vm471, %v2477, 0
          %v2630 = vsel %vm471, %v2479, 0
          %v2633 = vsel %vm471, %v2481, 0
          %v2636 = vsel %vm471, %v2483, 0
          %v2639 = vsel %vm471, %v2485, 0
          %v2642 = vsel %vm471, %v2487, 0
          %v2645 = vsel %vm471, %v2489, 0
          %v2648 = vsel %vm471, %v2491, 0
          %v2651 = vsel %vm471, %v2493, 0
          %v2654 = vsel %vm471, %v2495, 0
          %v2657 = vsel %vm471, %v2497, 0
          %v2660 = vsel %vm471, %v2499, 0
          %2662 = vmatprep.subr.bf16.mxu0 0
          %2663 = vmatpush1.bf16.msra.mxu0 %v2584
          %2664 = vmatprep.subr.bf16.mxu0 0
          %2665 = vmatpush1.bf16.msra.mxu0 %v2585
          %2666 = vmatprep.subr.bf16.mxu0 0
          %2667 = vmatpush1.bf16.msra.mxu0 %v2586
          %2668 = vmatprep.subr.bf16.mxu0 0
          %2669 = vmatpush1.bf16.msra.mxu0 %v2587
          %2670 = vmatprep.subr.bf16.mxu0 0
          %2671 = vmatpush1.bf16.msra.mxu0 %v2588
          %2672 = vmatprep.subr.bf16.mxu0 0
          %2673 = vmatpush1.bf16.msra.mxu0 %v2589
          %2674 = vmatprep.subr.bf16.mxu0 0
          %2675 = vmatpush1.bf16.msra.mxu0 %v2590
          %2676 = vmatprep.subr.bf16.mxu0 0
          %2677 = vmatpush1.bf16.msra.mxu0 %v2591
          %2678 = vmatprep.subr.bf16.mxu0 0
          %2679 = vmatpush1.bf16.msra.mxu0 %v2592
          %2680 = vmatprep.subr.bf16.mxu0 0
          %2681 = vmatpush1.bf16.msra.mxu0 %v2593
          %2682 = vmatprep.subr.bf16.mxu0 0
          %2683 = vmatpush1.bf16.msra.mxu0 %v2594
          %2684 = vmatprep.subr.bf16.mxu0 0
          %2685 = vmatpush1.bf16.msra.mxu0 %v2595
          %2686 = vmatprep.subr.bf16.mxu0 0
          %2687 = vmatpush1.bf16.msra.mxu0 0
          %2688 = vmatprep.subr.bf16.mxu0 0
          %2689 = vmatpush1.bf16.msra.mxu0 0
          %2690 = vmatprep.subr.bf16.mxu0 0
          %2691 = vmatpush1.bf16.msra.mxu0 0
          %2692 = vmatprep.subr.bf16.mxu0 0
          %2693 = vmatpush1.bf16.msra.mxu0 0
          %2694 = vmatprep.mubr.bf16.mxu0 %v2609
          %2695 = vmatmul.mubr.bf16.gmra.mrb[0].mxu0 %v2464
          %v2696 = vpop.f32.mrb[0].mxu0
          %v2697 = vadd.f32 0.0, %v2696
          %v2698 = vpop.f32.mrb[0].mxu0
          %v2699 = vpop.f32.mrb[0].mxu0
          %v2700 = vadd.f32 0.0, %v2699
          %v2701 = vpop.f32.mrb[0].mxu0
          %2702 = vmatprep.mubr.bf16.mxu0 %v2612
          %2703 = vmatmul.mubr.bf16.gmra.mrb[0].mxu0 %v2466
          %v2704 = vpop.f32.mrb[0].mxu0
          %v2705 = vadd.f32 0.0, %v2704
          %v2706 = vpop.f32.mrb[0].mxu0
          %v2707 = vpop.f32.mrb[0].mxu0
          %v2708 = vadd.f32 0.0, %v2707
          %v2709 = vpop.f32.mrb[0].mxu0
          %2710 = vmatprep.mubr.bf16.mxu0 %v2615
          %2711 = vmatmul.mubr.bf16.gmra.mrb[0].mxu0 %v2468
          %v2712 = vpop.f32.mrb[0].mxu0
          %v2713 = vadd.f32 0.0, %v2712
          %v2714 = vpop.f32.mrb[0].mxu0
          %v2715 = vpop.f32.mrb[0].mxu0
          %v2716 = vadd.f32 0.0, %v2715
          %v2717 = vpop.f32.mrb[0].mxu0
          %2718 = vmatprep.mubr.bf16.mxu0 %v2618
          %2719 = vmatmul.mubr.bf16.gmra.mrb[0].mxu0 %v2470
          %v2720 = vpop.f32.mrb[0].mxu0
          %v2721 = vadd.f32 0.0, %v2720
          %v2722 = vpop.f32.mrb[0].mxu0
          %v2723 = vpop.f32.mrb[0].mxu0
          %v2724 = vadd.f32 0.0, %v2723
          %v2725 = vpop.f32.mrb[0].mxu0
          %2726 = vmatprep.mubr.bf16.mxu0 %v2621
          %2727 = vmatmul.mubr.bf16.gmra.mrb[0].mxu0 %v2472
          %v2728 = vpop.f32.mrb[0].mxu0
          %v2729 = vadd.f32 0.0, %v2728
          %v2730 = vpop.f32.mrb[0].mxu0
          %v2731 = vpop.f32.mrb[0].mxu0
          %v2732 = vadd.f32 0.0, %v2731
          %v2733 = vpop.f32.mrb[0].mxu0
          %2734 = vmatprep.mubr.bf16.mxu0 %v2624
          %2735 = vmatmul.mubr.bf16.gmra.mrb[0].mxu0 %v2474
          %v2736 = vpop.f32.mrb[0].mxu0
          %v2737 = vadd.f32 0.0, %v2736
          %v2738 = vpop.f32.mrb[0].mxu0
          %v2739 = vpop.f32.mrb[0].mxu0
          %v2740 = vadd.f32 0.0, %v2739
          %v2741 = vpop.f32.mrb[0].mxu0
          %2742 = vmatprep.mubr.bf16.mxu0 %v2627
          %2743 = vmatmul.mubr.bf16.gmra.mrb[0].mxu0 %v2476
          %v2744 = vpop.f32.mrb[0].mxu0
          %v2745 = vadd.f32 0.0, %v2744
          %v2746 = vpop.f32.mrb[0].mxu0
          %v2747 = vpop.f32.mrb[0].mxu0
          %v2748 = vadd.f32 0.0, %v2747
          %v2749 = vpop.f32.mrb[0].mxu0
          %2750 = vmatprep.mubr.bf16.mxu0 %v2630
          %2751 = vmatmul.mubr.bf16.gmra.mrb[0].mxu0 %v2478
          %v2752 = vpop.f32.mrb[0].mxu0
          %v2753 = vadd.f32 0.0, %v2752
          %v2754 = vpop.f32.mrb[0].mxu0
          %v2755 = vpop.f32.mrb[0].mxu0
          %v2756 = vadd.f32 0.0, %v2755
          %v2757 = vpop.f32.mrb[0].mxu0
          %2758 = vmatprep.mubr.bf16.mxu0 %v2633
          %2759 = vmatmul.mubr.bf16.gmra.mrb[0].mxu0 %v2480
          %v2760 = vpop.f32.mrb[0].mxu0
          %v2761 = vadd.f32 0.0, %v2760
          %v2762 = vpop.f32.mrb[0].mxu0
          %v2763 = vpop.f32.mrb[0].mxu0
          %v2764 = vadd.f32 0.0, %v2763
          %v2765 = vpop.f32.mrb[0].mxu0
          %2766 = vmatprep.mubr.bf16.mxu0 %v2636
          %2767 = vmatmul.mubr.bf16.gmra.mrb[0].mxu0 %v2482
          %v2768 = vpop.f32.mrb[0].mxu0
          %v2769 = vadd.f32 0.0, %v2768
          %v2770 = vpop.f32.mrb[0].mxu0
          %v2771 = vpop.f32.mrb[0].mxu0
          %v2772 = vadd.f32 0.0, %v2771
          %v2773 = vpop.f32.mrb[0].mxu0
          %2774 = vmatprep.mubr.bf16.mxu0 %v2639
          %2775 = vmatmul.mubr.bf16.gmra.mrb[0].mxu0 %v2484
          %v2776 = vpop.f32.mrb[0].mxu0
          %v2777 = vadd.f32 0.0, %v2776
          %v2778 = vpop.f32.mrb[0].mxu0
          %v2779 = vpop.f32.mrb[0].mxu0
          %v2780 = vadd.f32 0.0, %v2779
          %v2781 = vpop.f32.mrb[0].mxu0
          %2782 = vmatprep.mubr.bf16.mxu0 %v2642
          %2783 = vmatmul.mubr.bf16.gmra.mrb[0].mxu0 %v2486
          %v2784 = vpop.f32.mrb[0].mxu0
          %v2785 = vadd.f32 0.0, %v2784
          %v2786 = vpop.f32.mrb[0].mxu0
          %v2787 = vpop.f32.mrb[0].mxu0
          %v2788 = vadd.f32 0.0, %v2787
          %v2789 = vpop.f32.mrb[0].mxu0
          %2790 = vmatprep.mubr.bf16.mxu0 %v2645
          %2791 = vmatmul.mubr.bf16.gmra.mrb[0].mxu0 %v2488
          %v2792 = vpop.f32.mrb[0].mxu0
          %v2793 = vadd.f32 0.0, %v2792
          %v2794 = vpop.f32.mrb[0].mxu0
          %v2795 = vpop.f32.mrb[0].mxu0
          %v2796 = vadd.f32 0.0, %v2795
          %v2797 = vpop.f32.mrb[0].mxu0
          %2798 = vmatprep.mubr.bf16.mxu0 %v2648
          %2799 = vmatmul.mubr.bf16.gmra.mrb[0].mxu0 %v2490
          %v2800 = vpop.f32.mrb[0].mxu0
          %v2801 = vadd.f32 0.0, %v2800
          %v2802 = vpop.f32.mrb[0].mxu0
          %v2803 = vpop.f32.mrb[0].mxu0
          %v2804 = vadd.f32 0.0, %v2803
          %v2805 = vpop.f32.mrb[0].mxu0
          %2806 = vmatprep.mubr.bf16.mxu0 %v2651
          %2807 = vmatmul.mubr.bf16.gmra.mrb[0].mxu0 %v2492
          %v2808 = vpop.f32.mrb[0].mxu0
          %v2809 = vadd.f32 0.0, %v2808
          %v2810 = vpop.f32.mrb[0].mxu0
          %v2811 = vpop.f32.mrb[0].mxu0
          %v2812 = vadd.f32 0.0, %v2811
          %v2813 = vpop.f32.mrb[0].mxu0
          %2814 = vmatprep.mubr.bf16.mxu0 %v2654
          %2815 = vmatmul.mubr.bf16.gmra.mrb[0].mxu0 %v2494
          %v2816 = vpop.f32.mrb[0].mxu0
          %v2817 = vadd.f32 0.0, %v2816
          %v2818 = vpop.f32.mrb[0].mxu0
          %v2819 = vpop.f32.mrb[0].mxu0
          %v2820 = vadd.f32 0.0, %v2819
          %v2821 = vpop.f32.mrb[0].mxu0
          %2822 = vmatprep.mubr.bf16.mxu0 %v2657
          %2823 = vmatmul.mubr.bf16.gmra.mrb[0].mxu0 %v2496
          %v2824 = vpop.f32.mrb[0].mxu0
          %v2825 = vadd.f32 0.0, %v2824
          %v2826 = vpop.f32.mrb[0].mxu0
          %v2827 = vpop.f32.mrb[0].mxu0
          %v2828 = vadd.f32 0.0, %v2827
          %v2829 = vpop.f32.mrb[0].mxu0
          %2830 = vmatprep.mubr.bf16.mxu0 %v2660
          %2831 = vmatmul.mubr.bf16.gmra.mrb[0].mxu0 %v2498
          %v2832 = vpop.f32.mrb[0].mxu0
          %v2833 = vadd.f32 0.0, %v2832
          %v2834 = vpop.f32.mrb[0].mxu0
          %v2835 = vpop.f32.mrb[0].mxu0
          %v2836 = vadd.f32 0.0, %v2835
          %v2837 = vpop.f32.mrb[0].mxu0
          %2838 = vdwg.mxu0
          %v2839 = vadd.f32 %v2500, %v2697
          %v2840 = vadd.f32 %v2501, %v2700
          %v2841 = vadd.f32 %v2502, %v2705
          %v2842 = vadd.f32 %v2503, %v2708
          %v2843 = vadd.f32 %v2504, %v2713
          %v2844 = vadd.f32 %v2505, %v2716
          %v2845 = vadd.f32 %v2506, %v2721
          %v2846 = vadd.f32 %v2507, %v2724
          %v2847 = vadd.f32 %v2508, %v2729
          %v2848 = vadd.f32 %v2509, %v2732
          %v2849 = vadd.f32 %v2510, %v2737
          %v2850 = vadd.f32 %v2511, %v2740
          %v2851 = vadd.f32 %v2512, %v2745
          %v2852 = vadd.f32 %v2513, %v2748
          %v2853 = vadd.f32 %v2514, %v2753
          %v2854 = vadd.f32 %v2515, %v2756
          %v2855 = vadd.f32 %v2516, %v2761
          %v2856 = vadd.f32 %v2517, %v2764
          %v2857 = vadd.f32 %v2518, %v2769
          %v2858 = vadd.f32 %v2519, %v2772
          %v2859 = vadd.f32 %v2520, %v2777
          %v2860 = vadd.f32 %v2521, %v2780
          %v2861 = vadd.f32 %v2522, %v2785
          %v2862 = vadd.f32 %v2523, %v2788
          %v2863 = vadd.f32 %v2524, %v2793
          %v2864 = vadd.f32 %v2525, %v2796
          %v2865 = vadd.f32 %v2526, %v2801
          %v2866 = vadd.f32 %v2527, %v2804
          %v2867 = vadd.f32 %v2528, %v2809
          %v2868 = vadd.f32 %v2529, %v2812
          %v2869 = vadd.f32 %v2530, %v2817
          %v2870 = vadd.f32 %v2531, %v2820
          %v2871 = vadd.f32 %v2532, %v2825
          %v2872 = vadd.f32 %v2533, %v2828
          %v2873 = vadd.f32 %v2534, %v2833
          %v2874 = vadd.f32 %v2535, %v2836
          %2875 = vst.msk [vmem:[#allocation4] sm:$0xff] %vm471, %v2839
          %2876 = vst.msk [vmem:[#allocation4 + $0x8] sm:$0xff] %vm471, %v2840
          %2877 = vst.msk [vmem:[#allocation4 + $0x10] sm:$0xff] %vm471, %v2841
          %2878 = vst.msk [vmem:[#allocation4 + $0x18] sm:$0xff] %vm471, %v2842
          %2879 = vst.msk [vmem:[#allocation4 + $0x20] sm:$0xff] %vm471, %v2843
          %2880 = vst.msk [vmem:[#allocation4 + $0x28] sm:$0xff] %vm471, %v2844
          %2881 = vst.msk [vmem:[#allocation4 + $0x30] sm:$0xff] %vm471, %v2845
          %2882 = vst.msk [vmem:[#allocation4 + $0x38] sm:$0xff] %vm471, %v2846
          %2883 = vst.msk [vmem:[#allocation4 + $0x40] sm:$0xff] %vm471, %v2847
          %2884 = vst.msk [vmem:[#allocation4 + $0x48] sm:$0xff] %vm471, %v2848
          %2885 = vst.msk [vmem:[#allocation4 + $0x50] sm:$0xff] %vm471, %v2849
          %2886 = vst.msk [vmem:[#allocation4 + $0x58] sm:$0xff] %vm471, %v2850
          %2887 = vst.msk [vmem:[#allocation4 + $0x60] sm:$0xff] %vm471, %v2851
          %2888 = vst.msk [vmem:[#allocation4 + $0x68] sm:$0xff] %vm471, %v2852
          %2889 = vst.msk [vmem:[#allocation4 + $0x70] sm:$0xff] %vm471, %v2853
          %2890 = vst.msk [vmem:[#allocation4 + $0x78] sm:$0xff] %vm471, %v2854
          %2891 = vst.msk [vmem:[#allocation4 + $0x80] sm:$0xff] %vm471, %v2855
          %2892 = vst.msk [vmem:[#allocation4 + $0x88] sm:$0xff] %vm471, %v2856
          %2893 = vst.msk [vmem:[#allocation4 + $0x90] sm:$0xff] %vm471, %v2857
          %2894 = vst.msk [vmem:[#allocation4 + $0x98] sm:$0xff] %vm471, %v2858
          %2895 = vst.msk [vmem:[#allocation4 + $0xa0] sm:$0xff] %vm471, %v2859
          %2896 = vst.msk [vmem:[#allocation4 + $0xa8] sm:$0xff] %vm471, %v2860
          %2897 = vst.msk [vmem:[#allocation4 + $0xb0] sm:$0xff] %vm471, %v2861
          %2898 = vst.msk [vmem:[#allocation4 + $0xb8] sm:$0xff] %vm471, %v2862
          %2899 = vst.msk [vmem:[#allocation4 + $0xc0] sm:$0xff] %vm471, %v2863
          %2900 = vst.msk [vmem:[#allocation4 + $0xc8] sm:$0xff] %vm471, %v2864
          %2901 = vst.msk [vmem:[#allocation4 + $0xd0] sm:$0xff] %vm471, %v2865
          %2902 = vst.msk [vmem:[#allocation4 + $0xd8] sm:$0xff] %vm471, %v2866
          %2903 = vst.msk [vmem:[#allocation4 + $0xe0] sm:$0xff] %vm471, %v2867
          %2904 = vst.msk [vmem:[#allocation4 + $0xe8] sm:$0xff] %vm471, %v2868
          %2905 = vst.msk [vmem:[#allocation4 + $0xf0] sm:$0xff] %vm471, %v2869
          %2906 = vst.msk [vmem:[#allocation4 + $0xf8] sm:$0xff] %vm471, %v2870
          %2907 = vst.msk [vmem:[#allocation4 + $0x100] sm:$0xff] %vm471, %v2871
          %2908 = vst.msk [vmem:[#allocation4 + $0x108] sm:$0xff] %vm471, %v2872
          %2909 = vst.msk [vmem:[#allocation4 + $0x110] sm:$0xff] %vm471, %v2873
          %2910 = vst.msk [vmem:[#allocation4 + $0x118] sm:$0xff] %vm471, %v2874
          %v2911 = vld [vmem:[%s2316] sm:$0xff]
          %v2912 = vld [vmem:[%s2316 + $0x8] sm:$0xff]
          %v2913 = vld [vmem:[%s2316 + $0x10] sm:$0xff]
          %v2914 = vld [vmem:[%s2316 + $0x18] sm:$0xff]
          %v2915 = vld [vmem:[%s2316 + $0x20] sm:$0xff]
          %v2916 = vld [vmem:[%s2316 + $0x28] sm:$0xff]
          %v2917 = vld [vmem:[%s2316 + $0x30] sm:$0xff]
          %v2918 = vld [vmem:[%s2316 + $0x38] sm:$0xff]
          %v2919 = vld [vmem:[%s2316 + $0x40] sm:$0xff]
          %v2920 = vld [vmem:[%s2316 + $0x48] sm:$0xff]
          %v2921 = vld [vmem:[%s2316 + $0x50] sm:$0xff]
          %v2922 = vld [vmem:[%s2316 + $0x58] sm:$0xff]
          %v2923 = vld [vmem:[%s2316 + $0x60] sm:$0xff]
          %v2924 = vld [vmem:[%s2316 + $0x68] sm:$0xff]
          %v2925 = vld [vmem:[%s2316 + $0x70] sm:$0xff]
          %v2926 = vld [vmem:[%s2316 + $0x78] sm:$0xff]
          %v2927 = vld [vmem:[%s2316 + $0x80] sm:$0xff]
          %v2928 = vld [vmem:[%s2316 + $0x88] sm:$0xff]
          %v2929 = vld [vmem:[%s2316 + $0x90] sm:$0xff]
          %v2930 = vld [vmem:[%s2316 + $0x98] sm:$0xff]
          %v2931 = vld [vmem:[%s2316 + $0xa0] sm:$0xff]
          %v2932 = vld [vmem:[%s2316 + $0xa8] sm:$0xff]
          %v2933 = vld [vmem:[%s2316 + $0xb0] sm:$0xff]
          %v2934 = vld [vmem:[%s2316 + $0xb8] sm:$0xff]
          %v2935 = vld [vmem:[%s2316 + $0xc0] sm:$0xff]
          %v2936 = vld [vmem:[%s2316 + $0xc8] sm:$0xff]
          %v2937 = vld [vmem:[%s2316 + $0xd0] sm:$0xff]
          %v2938 = vld [vmem:[%s2316 + $0xd8] sm:$0xff]
          %v2939 = vld [vmem:[%s2316 + $0xe0] sm:$0xff]
          %v2940 = vld [vmem:[%s2316 + $0xe8] sm:$0xff]
          %v2941 = vld [vmem:[%s2316 + $0xf0] sm:$0xff]
          %v2942 = vld [vmem:[%s2316 + $0xf8] sm:$0xff]
          %v2943 = vld [vmem:[%s2316 + $0x100] sm:$0xff]
          %v2944 = vld [vmem:[%s2316 + $0x108] sm:$0xff]
          %v2945 = vld [vmem:[%s2316 + $0x110] sm:$0xff]
          %v2946 = vld [vmem:[%s2316 + $0x118] sm:$0xff]
          %v2947 = vld [vmem:[#allocation4] sm:$0xff]
          %v2948 = vld [vmem:[#allocation4 + $0x8] sm:$0xff]
          %v2949 = vld [vmem:[#allocation4 + $0x10] sm:$0xff]
          %v2950 = vld [vmem:[#allocation4 + $0x18] sm:$0xff]
          %v2951 = vld [vmem:[#allocation4 + $0x20] sm:$0xff]
          %v2952 = vld [vmem:[#allocation4 + $0x28] sm:$0xff]
          %v2953 = vld [vmem:[#allocation4 + $0x30] sm:$0xff]
          %v2954 = vld [vmem:[#allocation4 + $0x38] sm:$0xff]
          %v2955 = vld [vmem:[#allocation4 + $0x40] sm:$0xff]
          %v2956 = vld [vmem:[#allocation4 + $0x48] sm:$0xff]
          %v2957 = vld [vmem:[#allocation4 + $0x50] sm:$0xff]
          %v2958 = vld [vmem:[#allocation4 + $0x58] sm:$0xff]
          %v2959 = vld [vmem:[#allocation4 + $0x60] sm:$0xff]
          %v2960 = vld [vmem:[#allocation4 + $0x68] sm:$0xff]
          %v2961 = vld [vmem:[#allocation4 + $0x70] sm:$0xff]
          %v2962 = vld [vmem:[#allocation4 + $0x78] sm:$0xff]
          %v2963 = vld [vmem:[#allocation4 + $0x80] sm:$0xff]
          %v2964 = vld [vmem:[#allocation4 + $0x88] sm:$0xff]
          %v2965 = vld [vmem:[#allocation4 + $0x90] sm:$0xff]
          %v2966 = vld [vmem:[#allocation4 + $0x98] sm:$0xff]
          %v2967 = vld [vmem:[#allocation4 + $0xa0] sm:$0xff]
          %v2968 = vld [vmem:[#allocation4 + $0xa8] sm:$0xff]
          %v2969 = vld [vmem:[#allocation4 + $0xb0] sm:$0xff]
          %v2970 = vld [vmem:[#allocation4 + $0xb8] sm:$0xff]
          %v2971 = vld [vmem:[#allocation4 + $0xc0] sm:$0xff]
          %v2972 = vld [vmem:[#allocation4 + $0xc8] sm:$0xff]
          %v2973 = vld [vmem:[#allocation4 + $0xd0] sm:$0xff]
          %v2974 = vld [vmem:[#allocation4 + $0xd8] sm:$0xff]
          %v2975 = vld [vmem:[#allocation4 + $0xe0] sm:$0xff]
          %v2976 = vld [vmem:[#allocation4 + $0xe8] sm:$0xff]
          %v2977 = vld [vmem:[#allocation4 + $0xf0] sm:$0xff]
          %v2978 = vld [vmem:[#allocation4 + $0xf8] sm:$0xff]
          %v2979 = vld [vmem:[#allocation4 + $0x100] sm:$0xff]
          %v2980 = vld [vmem:[#allocation4 + $0x108] sm:$0xff]
          %v2981 = vld [vmem:[#allocation4 + $0x110] sm:$0xff]
          %v2982 = vld [vmem:[#allocation4 + $0x118] sm:$0xff]
          %v3007 = vunpack.c.l.b16 %v2380
          %v3008 = vunpack.c.l.b16 %v2381
          %v3009 = vunpack.c.l.b16 %v2382
          %v3010 = vunpack.c.l.b16 %v2383
          %v3011 = vunpack.c.l.b16 %v2384
          %v3012 = vunpack.c.l.b16 %v2385
          %v3013 = vunpack.c.l.b16 %v2386
          %v3014 = vunpack.c.l.b16 %v2387
          %v3015 = vunpack.c.l.b16 %v2388
          %v3016 = vunpack.c.l.b16 %v2389
          %v3017 = vunpack.c.l.b16 %v2390
          %v3018 = vunpack.c.l.b16 %v2391
          %v3019 = vunpack.c.l.b16 %v2392
          %v3020 = vunpack.c.l.b16 %v2393
          %v3021 = vunpack.c.l.b16 %v2394
          %v3022 = vunpack.c.l.b16 %v2395
          %v3023 = vunpack.c.l.b16 %v2396
          %v3024 = vunpack.c.l.b16 %v2397
          %v3025 = vunpack.c.l.b16 %v2398
          %v3026 = vunpack.c.l.b16 %v2399
          %v3027 = vunpack.c.l.b16 %v2400
          %v3028 = vunpack.c.l.b16 %v2401
          %v3029 = vunpack.c.l.b16 %v2402
          %v3030 = vunpack.c.l.b16 %v2403
          %v3031 = vpack.c.b16 %v3008, %v3007
          %v3032 = vpack.c.b16 %v3010, %v3009
          %v3033 = vpack.c.b16 %v3012, %v3011
          %v3034 = vpack.c.b16 %v3014, %v3013
          %v3035 = vpack.c.b16 %v3016, %v3015
          %v3036 = vpack.c.b16 %v3018, %v3017
          %v3037 = vpack.c.b16 %v3020, %v3019
          %v3038 = vpack.c.b16 %v3022, %v3021
          %v3039 = vpack.c.b16 %v3024, %v3023
          %v3040 = vpack.c.b16 %v3026, %v3025
          %v3041 = vpack.c.b16 %v3028, %v3027
          %v3042 = vpack.c.b16 %v3030, %v3029
          %v3056 = vsel %vm471, %v2912, 0
          %v3059 = vsel %vm471, %v2914, 0
          %v3062 = vsel %vm471, %v2916, 0
          %v3065 = vsel %vm471, %v2918, 0
          %v3068 = vsel %vm471, %v2920, 0
          %v3071 = vsel %vm471, %v2922, 0
          %v3074 = vsel %vm471, %v2924, 0
          %v3077 = vsel %vm471, %v2926, 0
          %v3080 = vsel %vm471, %v2928, 0
          %v3083 = vsel %vm471, %v2930, 0
          %v3086 = vsel %vm471, %v2932, 0
          %v3089 = vsel %vm471, %v2934, 0
          %v3092 = vsel %vm471, %v2936, 0
          %v3095 = vsel %vm471, %v2938, 0
          %v3098 = vsel %vm471, %v2940, 0
          %v3101 = vsel %vm471, %v2942, 0
          %v3104 = vsel %vm471, %v2944, 0
          %v3107 = vsel %vm471, %v2946, 0
          %3109 = vmatprep.subr.bf16.mxu0 0
          %3110 = vmatpush1.bf16.msra.mxu0 %v3031
          %3111 = vmatprep.subr.bf16.mxu0 0
          %3112 = vmatpush1.bf16.msra.mxu0 %v3032
          %3113 = vmatprep.subr.bf16.mxu0 0
          %3114 = vmatpush1.bf16.msra.mxu0 %v3033
          %3115 = vmatprep.subr.bf16.mxu0 0
          %3116 = vmatpush1.bf16.msra.mxu0 %v3034
          %3117 = vmatprep.subr.bf16.mxu0 0
          %3118 = vmatpush1.bf16.msra.mxu0 %v3035
          %3119 = vmatprep.subr.bf16.mxu0 0
          %3120 = vmatpush1.bf16.msra.mxu0 %v3036
          %3121 = vmatprep.subr.bf16.mxu0 0
          %3122 = vmatpush1.bf16.msra.mxu0 %v3037
          %3123 = vmatprep.subr.bf16.mxu0 0
          %3124 = vmatpush1.bf16.msra.mxu0 %v3038
          %3125 = vmatprep.subr.bf16.mxu0 0
          %3126 = vmatpush1.bf16.msra.mxu0 %v3039
          %3127 = vmatprep.subr.bf16.mxu0 0
          %3128 = vmatpush1.bf16.msra.mxu0 %v3040
          %3129 = vmatprep.subr.bf16.mxu0 0
          %3130 = vmatpush1.bf16.msra.mxu0 %v3041
          %3131 = vmatprep.subr.bf16.mxu0 0
          %3132 = vmatpush1.bf16.msra.mxu0 %v3042
          %3133 = vmatprep.subr.bf16.mxu0 0
          %3134 = vmatpush1.bf16.msra.mxu0 0
          %3135 = vmatprep.subr.bf16.mxu0 0
          %3136 = vmatpush1.bf16.msra.mxu0 0
          %3137 = vmatprep.subr.bf16.mxu0 0
          %3138 = vmatpush1.bf16.msra.mxu0 0
          %3139 = vmatprep.subr.bf16.mxu0 0
          %3140 = vmatpush1.bf16.msra.mxu0 0
          %3141 = vmatprep.mubr.bf16.mxu0 %v3056
          %3142 = vmatmul.mubr.bf16.gmra.mrb[0].mxu0 %v2911
          %v3143 = vpop.f32.mrb[0].mxu0
          %v3144 = vadd.f32 0.0, %v3143
          %v3145 = vpop.f32.mrb[0].mxu0
          %v3146 = vpop.f32.mrb[0].mxu0
          %v3147 = vadd.f32 0.0, %v3146
          %v3148 = vpop.f32.mrb[0].mxu0
          %3149 = vmatprep.mubr.bf16.mxu0 %v3059
          %3150 = vmatmul.mubr.bf16.gmra.mrb[0].mxu0 %v2913
          %v3151 = vpop.f32.mrb[0].mxu0
          %v3152 = vadd.f32 0.0, %v3151
          %v3153 = vpop.f32.mrb[0].mxu0
          %v3154 = vpop.f32.mrb[0].mxu0
          %v3155 = vadd.f32 0.0, %v3154
          %v3156 = vpop.f32.mrb[0].mxu0
          %3157 = vmatprep.mubr.bf16.mxu0 %v3062
          %3158 = vmatmul.mubr.bf16.gmra.mrb[0].mxu0 %v2915
          %v3159 = vpop.f32.mrb[0].mxu0
          %v3160 = vadd.f32 0.0, %v3159
          %v3161 = vpop.f32.mrb[0].mxu0
          %v3162 = vpop.f32.mrb[0].mxu0
          %v3163 = vadd.f32 0.0, %v3162
          %v3164 = vpop.f32.mrb[0].mxu0
          %3165 = vmatprep.mubr.bf16.mxu0 %v3065
          %3166 = vmatmul.mubr.bf16.gmra.mrb[0].mxu0 %v2917
          %v3167 = vpop.f32.mrb[0].mxu0
          %v3168 = vadd.f32 0.0, %v3167
          %v3169 = vpop.f32.mrb[0].mxu0
          %v3170 = vpop.f32.mrb[0].mxu0
          %v3171 = vadd.f32 0.0, %v3170
          %v3172 = vpop.f32.mrb[0].mxu0
          %3173 = vmatprep.mubr.bf16.mxu0 %v3068
          %3174 = vmatmul.mubr.bf16.gmra.mrb[0].mxu0 %v2919
          %v3175 = vpop.f32.mrb[0].mxu0
          %v3176 = vadd.f32 0.0, %v3175
          %v3177 = vpop.f32.mrb[0].mxu0
          %v3178 = vpop.f32.mrb[0].mxu0
          %v3179 = vadd.f32 0.0, %v3178
          %v3180 = vpop.f32.mrb[0].mxu0
          %3181 = vmatprep.mubr.bf16.mxu0 %v3071
          %3182 = vmatmul.mubr.bf16.gmra.mrb[0].mxu0 %v2921
          %v3183 = vpop.f32.mrb[0].mxu0
          %v3184 = vadd.f32 0.0, %v3183
          %v3185 = vpop.f32.mrb[0].mxu0
          %v3186 = vpop.f32.mrb[0].mxu0
          %v3187 = vadd.f32 0.0, %v3186
          %v3188 = vpop.f32.mrb[0].mxu0
          %3189 = vmatprep.mubr.bf16.mxu0 %v3074
          %3190 = vmatmul.mubr.bf16.gmra.mrb[0].mxu0 %v2923
          %v3191 = vpop.f32.mrb[0].mxu0
          %v3192 = vadd.f32 0.0, %v3191
          %v3193 = vpop.f32.mrb[0].mxu0
          %v3194 = vpop.f32.mrb[0].mxu0
          %v3195 = vadd.f32 0.0, %v3194
          %v3196 = vpop.f32.mrb[0].mxu0
          %3197 = vmatprep.mubr.bf16.mxu0 %v3077
          %3198 = vmatmul.mubr.bf16.gmra.mrb[0].mxu0 %v2925
          %v3199 = vpop.f32.mrb[0].mxu0
          %v3200 = vadd.f32 0.0, %v3199
          %v3201 = vpop.f32.mrb[0].mxu0
          %v3202 = vpop.f32.mrb[0].mxu0
          %v3203 = vadd.f32 0.0, %v3202
          %v3204 = vpop.f32.mrb[0].mxu0
          %3205 = vmatprep.mubr.bf16.mxu0 %v3080
          %3206 = vmatmul.mubr.bf16.gmra.mrb[0].mxu0 %v2927
          %v3207 = vpop.f32.mrb[0].mxu0
          %v3208 = vadd.f32 0.0, %v3207
          %v3209 = vpop.f32.mrb[0].mxu0
          %v3210 = vpop.f32.mrb[0].mxu0
          %v3211 = vadd.f32 0.0, %v3210
          %v3212 = vpop.f32.mrb[0].mxu0
          %3213 = vmatprep.mubr.bf16.mxu0 %v3083
          %3214 = vmatmul.mubr.bf16.gmra.mrb[0].mxu0 %v2929
          %v3215 = vpop.f32.mrb[0].mxu0
          %v3216 = vadd.f32 0.0, %v3215
          %v3217 = vpop.f32.mrb[0].mxu0
          %v3218 = vpop.f32.mrb[0].mxu0
          %v3219 = vadd.f32 0.0, %v3218
          %v3220 = vpop.f32.mrb[0].mxu0
          %3221 = vmatprep.mubr.bf16.mxu0 %v3086
          %3222 = vmatmul.mubr.bf16.gmra.mrb[0].mxu0 %v2931
          %v3223 = vpop.f32.mrb[0].mxu0
          %v3224 = vadd.f32 0.0, %v3223
          %v3225 = vpop.f32.mrb[0].mxu0
          %v3226 = vpop.f32.mrb[0].mxu0
          %v3227 = vadd.f32 0.0, %v3226
          %v3228 = vpop.f32.mrb[0].mxu0
          %3229 = vmatprep.mubr.bf16.mxu0 %v3089
          %3230 = vmatmul.mubr.bf16.gmra.mrb[0].mxu0 %v2933
          %v3231 = vpop.f32.mrb[0].mxu0
          %v3232 = vadd.f32 0.0, %v3231
          %v3233 = vpop.f32.mrb[0].mxu0
          %v3234 = vpop.f32.mrb[0].mxu0
          %v3235 = vadd.f32 0.0, %v3234
          %v3236 = vpop.f32.mrb[0].mxu0
          %3237 = vmatprep.mubr.bf16.mxu0 %v3092
          %3238 = vmatmul.mubr.bf16.gmra.mrb[0].mxu0 %v2935
          %v3239 = vpop.f32.mrb[0].mxu0
          %v3240 = vadd.f32 0.0, %v3239
          %v3241 = vpop.f32.mrb[0].mxu0
          %v3242 = vpop.f32.mrb[0].mxu0
          %v3243 = vadd.f32 0.0, %v3242
          %v3244 = vpop.f32.mrb[0].mxu0
          %3245 = vmatprep.mubr.bf16.mxu0 %v3095
          %3246 = vmatmul.mubr.bf16.gmra.mrb[0].mxu0 %v2937
          %v3247 = vpop.f32.mrb[0].mxu0
          %v3248 = vadd.f32 0.0, %v3247
          %v3249 = vpop.f32.mrb[0].mxu0
          %v3250 = vpop.f32.mrb[0].mxu0
          %v3251 = vadd.f32 0.0, %v3250
          %v3252 = vpop.f32.mrb[0].mxu0
          %3253 = vmatprep.mubr.bf16.mxu0 %v3098
          %3254 = vmatmul.mubr.bf16.gmra.mrb[0].mxu0 %v2939
          %v3255 = vpop.f32.mrb[0].mxu0
          %v3256 = vadd.f32 0.0, %v3255
          %v3257 = vpop.f32.mrb[0].mxu0
          %v3258 = vpop.f32.mrb[0].mxu0
          %v3259 = vadd.f32 0.0, %v3258
          %v3260 = vpop.f32.mrb[0].mxu0
          %3261 = vmatprep.mubr.bf16.mxu0 %v3101
          %3262 = vmatmul.mubr.bf16.gmra.mrb[0].mxu0 %v2941
          %v3263 = vpop.f32.mrb[0].mxu0
          %v3264 = vadd.f32 0.0, %v3263
          %v3265 = vpop.f32.mrb[0].mxu0
          %v3266 = vpop.f32.mrb[0].mxu0
          %v3267 = vadd.f32 0.0, %v3266
          %v3268 = vpop.f32.mrb[0].mxu0
          %3269 = vmatprep.mubr.bf16.mxu0 %v3104
          %3270 = vmatmul.mubr.bf16.gmra.mrb[0].mxu0 %v2943
          %v3271 = vpop.f32.mrb[0].mxu0
          %v3272 = vadd.f32 0.0, %v3271
          %v3273 = vpop.f32.mrb[0].mxu0
          %v3274 = vpop.f32.mrb[0].mxu0
          %v3275 = vadd.f32 0.0, %v3274
          %v3276 = vpop.f32.mrb[0].mxu0
          %3277 = vmatprep.mubr.bf16.mxu0 %v3107
          %3278 = vmatmul.mubr.bf16.gmra.mrb[0].mxu0 %v2945
          %v3279 = vpop.f32.mrb[0].mxu0
          %v3280 = vadd.f32 0.0, %v3279
          %v3281 = vpop.f32.mrb[0].mxu0
          %v3282 = vpop.f32.mrb[0].mxu0
          %v3283 = vadd.f32 0.0, %v3282
          %v3284 = vpop.f32.mrb[0].mxu0
          %3285 = vdwg.mxu0
          %v3286 = vadd.f32 %v2947, %v3144
          %v3287 = vadd.f32 %v2948, %v3147
          %v3288 = vadd.f32 %v2949, %v3152
          %v3289 = vadd.f32 %v2950, %v3155
          %v3290 = vadd.f32 %v2951, %v3160
          %v3291 = vadd.f32 %v2952, %v3163
          %v3292 = vadd.f32 %v2953, %v3168
          %v3293 = vadd.f32 %v2954, %v3171
          %v3294 = vadd.f32 %v2955, %v3176
          %v3295 = vadd.f32 %v2956, %v3179
          %v3296 = vadd.f32 %v2957, %v3184
          %v3297 = vadd.f32 %v2958, %v3187
          %v3298 = vadd.f32 %v2959, %v3192
          %v3299 = vadd.f32 %v2960, %v3195
          %v3300 = vadd.f32 %v2961, %v3200
          %v3301 = vadd.f32 %v2962, %v3203
          %v3302 = vadd.f32 %v2963, %v3208
          %v3303 = vadd.f32 %v2964, %v3211
          %v3304 = vadd.f32 %v2965, %v3216
          %v3305 = vadd.f32 %v2966, %v3219
          %v3306 = vadd.f32 %v2967, %v3224
          %v3307 = vadd.f32 %v2968, %v3227
          %v3308 = vadd.f32 %v2969, %v3232
          %v3309 = vadd.f32 %v2970, %v3235
          %v3310 = vadd.f32 %v2971, %v3240
          %v3311 = vadd.f32 %v2972, %v3243
          %v3312 = vadd.f32 %v2973, %v3248
          %v3313 = vadd.f32 %v2974, %v3251
          %v3314 = vadd.f32 %v2975, %v3256
          %v3315 = vadd.f32 %v2976, %v3259
          %v3316 = vadd.f32 %v2977, %v3264
          %v3317 = vadd.f32 %v2978, %v3267
          %v3318 = vadd.f32 %v2979, %v3272
          %v3319 = vadd.f32 %v2980, %v3275
          %v3320 = vadd.f32 %v2981, %v3280
          %v3321 = vadd.f32 %v2982, %v3283
          %3322 = vst.msk [vmem:[#allocation4] sm:$0xff] %vm471, %v3286
          %3323 = vst.msk [vmem:[#allocation4 + $0x8] sm:$0xff] %vm471, %v3287
          %3324 = vst.msk [vmem:[#allocation4 + $0x10] sm:$0xff] %vm471, %v3288
          %3325 = vst.msk [vmem:[#allocation4 + $0x18] sm:$0xff] %vm471, %v3289
          %3326 = vst.msk [vmem:[#allocation4 + $0x20] sm:$0xff] %vm471, %v3290
          %3327 = vst.msk [vmem:[#allocation4 + $0x28] sm:$0xff] %vm471, %v3291
          %3328 = vst.msk [vmem:[#allocation4 + $0x30] sm:$0xff] %vm471, %v3292
          %3329 = vst.msk [vmem:[#allocation4 + $0x38] sm:$0xff] %vm471, %v3293
          %3330 = vst.msk [vmem:[#allocation4 + $0x40] sm:$0xff] %vm471, %v3294
          %3331 = vst.msk [vmem:[#allocation4 + $0x48] sm:$0xff] %vm471, %v3295
          %3332 = vst.msk [vmem:[#allocation4 + $0x50] sm:$0xff] %vm471, %v3296
          %3333 = vst.msk [vmem:[#allocation4 + $0x58] sm:$0xff] %vm471, %v3297
          %3334 = vst.msk [vmem:[#allocation4 + $0x60] sm:$0xff] %vm471, %v3298
          %3335 = vst.msk [vmem:[#allocation4 + $0x68] sm:$0xff] %vm471, %v3299
          %3336 = vst.msk [vmem:[#allocation4 + $0x70] sm:$0xff] %vm471, %v3300
          %3337 = vst.msk [vmem:[#allocation4 + $0x78] sm:$0xff] %vm471, %v3301
          %3338 = vst.msk [vmem:[#allocation4 + $0x80] sm:$0xff] %vm471, %v3302
          %3339 = vst.msk [vmem:[#allocation4 + $0x88] sm:$0xff] %vm471, %v3303
          %3340 = vst.msk [vmem:[#allocation4 + $0x90] sm:$0xff] %vm471, %v3304
          %3341 = vst.msk [vmem:[#allocation4 + $0x98] sm:$0xff] %vm471, %v3305
          %3342 = vst.msk [vmem:[#allocation4 + $0xa0] sm:$0xff] %vm471, %v3306
          %3343 = vst.msk [vmem:[#allocation4 + $0xa8] sm:$0xff] %vm471, %v3307
          %3344 = vst.msk [vmem:[#allocation4 + $0xb0] sm:$0xff] %vm471, %v3308
          %3345 = vst.msk [vmem:[#allocation4 + $0xb8] sm:$0xff] %vm471, %v3309
          %3346 = vst.msk [vmem:[#allocation4 + $0xc0] sm:$0xff] %vm471, %v3310
          %3347 = vst.msk [vmem:[#allocation4 + $0xc8] sm:$0xff] %vm471, %v3311
          %3348 = vst.msk [vmem:[#allocation4 + $0xd0] sm:$0xff] %vm471, %v3312
          %3349 = vst.msk [vmem:[#allocation4 + $0xd8] sm:$0xff] %vm471, %v3313
          %3350 = vst.msk [vmem:[#allocation4 + $0xe0] sm:$0xff] %vm471, %v3314
          %3351 = vst.msk [vmem:[#allocation4 + $0xe8] sm:$0xff] %vm471, %v3315
          %3352 = vst.msk [vmem:[#allocation4 + $0xf0] sm:$0xff] %vm471, %v3316
          %3353 = vst.msk [vmem:[#allocation4 + $0xf8] sm:$0xff] %vm471, %v3317
          %3354 = vst.msk [vmem:[#allocation4 + $0x100] sm:$0xff] %vm471, %v3318
          %3355 = vst.msk [vmem:[#allocation4 + $0x108] sm:$0xff] %vm471, %v3319
          %3356 = vst.msk [vmem:[#allocation4 + $0x110] sm:$0xff] %vm471, %v3320
          %3357 = vst.msk [vmem:[#allocation4 + $0x118] sm:$0xff] %vm471, %v3321
          %s3358 = scalar_lea.vmem [#allocation3], 32
          %v3359 = vld [vmem:[%s3358] sm:$0xff]
          %v3360 = vld [vmem:[%s3358 + $0x8] sm:$0xff]
          %v3361 = vld [vmem:[%s3358 + $0x10] sm:$0xff]
          %v3362 = vld [vmem:[%s3358 + $0x18] sm:$0xff]
          %v3363 = vld [vmem:[%s3358 + $0x20] sm:$0xff]
          %v3364 = vld [vmem:[%s3358 + $0x28] sm:$0xff]
          %v3365 = vld [vmem:[%s3358 + $0x30] sm:$0xff]
          %v3366 = vld [vmem:[%s3358 + $0x38] sm:$0xff]
          %v3367 = vld [vmem:[%s3358 + $0x40] sm:$0xff]
          %v3368 = vld [vmem:[%s3358 + $0x48] sm:$0xff]
          %v3369 = vld [vmem:[%s3358 + $0x50] sm:$0xff]
          %v3370 = vld [vmem:[%s3358 + $0x58] sm:$0xff]
          %v3371 = vld [vmem:[%s3358 + $0x60] sm:$0xff]
          %v3372 = vld [vmem:[%s3358 + $0x68] sm:$0xff]
          %v3373 = vld [vmem:[%s3358 + $0x70] sm:$0xff]
          %v3374 = vld [vmem:[%s3358 + $0x78] sm:$0xff]
          %v3375 = vld [vmem:[%s3358 + $0x80] sm:$0xff]
          %v3376 = vld [vmem:[%s3358 + $0x88] sm:$0xff]
          %v3377 = vld [vmem:[%s3358 + $0x90] sm:$0xff]
          %v3378 = vld [vmem:[%s3358 + $0x98] sm:$0xff]
          %v3379 = vld [vmem:[%s3358 + $0xa0] sm:$0xff]
          %v3380 = vld [vmem:[%s3358 + $0xa8] sm:$0xff]
          %v3381 = vld [vmem:[%s3358 + $0xb0] sm:$0xff]
          %v3382 = vld [vmem:[%s3358 + $0xb8] sm:$0xff]
          %v3383 = vld [vmem:[%s3358 + $0xc0] sm:$0xff]
          %v3384 = vld [vmem:[%s3358 + $0xc8] sm:$0xff]
          %v3385 = vld [vmem:[%s3358 + $0xd0] sm:$0xff]
          %v3386 = vld [vmem:[%s3358 + $0xd8] sm:$0xff]
          %v3387 = vld [vmem:[%s3358 + $0xe0] sm:$0xff]
          %v3388 = vld [vmem:[%s3358 + $0xe8] sm:$0xff]
          %v3389 = vld [vmem:[%s3358 + $0xf0] sm:$0xff]
          %v3390 = vld [vmem:[%s3358 + $0xf8] sm:$0xff]
          %v3391 = vld [vmem:[%s3358 + $0x100] sm:$0xff]
          %v3392 = vld [vmem:[%s3358 + $0x108] sm:$0xff]
          %v3393 = vld [vmem:[%s3358 + $0x110] sm:$0xff]
          %v3394 = vld [vmem:[%s3358 + $0x118] sm:$0xff]
          %v3395 = vld [vmem:[#allocation4] sm:$0xff]
          %v3396 = vld [vmem:[#allocation4 + $0x8] sm:$0xff]
          %v3397 = vld [vmem:[#allocation4 + $0x10] sm:$0xff]
          %v3398 = vld [vmem:[#allocation4 + $0x18] sm:$0xff]
          %v3399 = vld [vmem:[#allocation4 + $0x20] sm:$0xff]
          %v3400 = vld [vmem:[#allocation4 + $0x28] sm:$0xff]
          %v3401 = vld [vmem:[#allocation4 + $0x30] sm:$0xff]
          %v3402 = vld [vmem:[#allocation4 + $0x38] sm:$0xff]
          %v3403 = vld [vmem:[#allocation4 + $0x40] sm:$0xff]
          %v3404 = vld [vmem:[#allocation4 + $0x48] sm:$0xff]
          %v3405 = vld [vmem:[#allocation4 + $0x50] sm:$0xff]
          %v3406 = vld [vmem:[#allocation4 + $0x58] sm:$0xff]
          %v3407 = vld [vmem:[#allocation4 + $0x60] sm:$0xff]
          %v3408 = vld [vmem:[#allocation4 + $0x68] sm:$0xff]
          %v3409 = vld [vmem:[#allocation4 + $0x70] sm:$0xff]
          %v3410 = vld [vmem:[#allocation4 + $0x78] sm:$0xff]
          %v3411 = vld [vmem:[#allocation4 + $0x80] sm:$0xff]
          %v3412 = vld [vmem:[#allocation4 + $0x88] sm:$0xff]
          %v3413 = vld [vmem:[#allocation4 + $0x90] sm:$0xff]
          %v3414 = vld [vmem:[#allocation4 + $0x98] sm:$0xff]
          %v3415 = vld [vmem:[#allocation4 + $0xa0] sm:$0xff]
          %v3416 = vld [vmem:[#allocation4 + $0xa8] sm:$0xff]
          %v3417 = vld [vmem:[#allocation4 + $0xb0] sm:$0xff]
          %v3418 = vld [vmem:[#allocation4 + $0xb8] sm:$0xff]
          %v3419 = vld [vmem:[#allocation4 + $0xc0] sm:$0xff]
          %v3420 = vld [vmem:[#allocation4 + $0xc8] sm:$0xff]
          %v3421 = vld [vmem:[#allocation4 + $0xd0] sm:$0xff]
          %v3422 = vld [vmem:[#allocation4 + $0xd8] sm:$0xff]
          %v3423 = vld [vmem:[#allocation4 + $0xe0] sm:$0xff]
          %v3424 = vld [vmem:[#allocation4 + $0xe8] sm:$0xff]
          %v3425 = vld [vmem:[#allocation4 + $0xf0] sm:$0xff]
          %v3426 = vld [vmem:[#allocation4 + $0xf8] sm:$0xff]
          %v3427 = vld [vmem:[#allocation4 + $0x100] sm:$0xff]
          %v3428 = vld [vmem:[#allocation4 + $0x108] sm:$0xff]
          %v3429 = vld [vmem:[#allocation4 + $0x110] sm:$0xff]
          %v3430 = vld [vmem:[#allocation4 + $0x118] sm:$0xff]
          %v3455 = vunpack.c.l.b16 %v2404
          %v3456 = vunpack.c.l.b16 %v2405
          %v3457 = vunpack.c.l.b16 %v2406
          %v3458 = vunpack.c.l.b16 %v2407
          %v3459 = vunpack.c.l.b16 %v2408
          %v3460 = vunpack.c.l.b16 %v2409
          %v3461 = vunpack.c.l.b16 %v2410
          %v3462 = vunpack.c.l.b16 %v2411
          %v3463 = vunpack.c.l.b16 %v2412
          %v3464 = vunpack.c.l.b16 %v2413
          %v3465 = vunpack.c.l.b16 %v2414
          %v3466 = vunpack.c.l.b16 %v2415
          %v3467 = vunpack.c.l.b16 %v2416
          %v3468 = vunpack.c.l.b16 %v2417
          %v3469 = vunpack.c.l.b16 %v2418
          %v3470 = vunpack.c.l.b16 %v2419
          %v3471 = vunpack.c.l.b16 %v2420
          %v3472 = vunpack.c.l.b16 %v2421
          %v3473 = vunpack.c.l.b16 %v2422
          %v3474 = vunpack.c.l.b16 %v2423
          %v3475 = vunpack.c.l.b16 %v2424
          %v3476 = vunpack.c.l.b16 %v2425
          %v3477 = vunpack.c.l.b16 %v2426
          %v3478 = vunpack.c.l.b16 %v2427
          %v3479 = vpack.c.b16 %v3456, %v3455
          %v3480 = vpack.c.b16 %v3458, %v3457
          %v3481 = vpack.c.b16 %v3460, %v3459
          %v3482 = vpack.c.b16 %v3462, %v3461
          %v3483 = vpack.c.b16 %v3464, %v3463
          %v3484 = vpack.c.b16 %v3466, %v3465
          %v3485 = vpack.c.b16 %v3468, %v3467
          %v3486 = vpack.c.b16 %v3470, %v3469
          %v3487 = vpack.c.b16 %v3472, %v3471
          %v3488 = vpack.c.b16 %v3474, %v3473
          %v3489 = vpack.c.b16 %v3476, %v3475
          %v3490 = vpack.c.b16 %v3478, %v3477
          %v3504 = vsel %vm471, %v3360, 0
          %v3507 = vsel %vm471, %v3362, 0
          %v3510 = vsel %vm471, %v3364, 0
          %v3513 = vsel %vm471, %v3366, 0
          %v3516 = vsel %vm471, %v3368, 0
          %v3519 = vsel %vm471, %v3370, 0
          %v3522 = vsel %vm471, %v3372, 0
          %v3525 = vsel %vm471, %v3374, 0
          %v3528 = vsel %vm471, %v3376, 0
          %v3531 = vsel %vm471, %v3378, 0
          %v3534 = vsel %vm471, %v3380, 0
          %v3537 = vsel %vm471, %v3382, 0
          %v3540 = vsel %vm471, %v3384, 0
          %v3543 = vsel %vm471, %v3386, 0
          %v3546 = vsel %vm471, %v3388, 0
          %v3549 = vsel %vm471, %v3390, 0
          %v3552 = vsel %vm471, %v3392, 0
          %v3555 = vsel %vm471, %v3394, 0
          %3557 = vmatprep.subr.bf16.mxu0 0
          %3558 = vmatpush1.bf16.msra.mxu0 %v3479
          %3559 = vmatprep.subr.bf16.mxu0 0
          %3560 = vmatpush1.bf16.msra.mxu0 %v3480
          %3561 = vmatprep.subr.bf16.mxu0 0
          %3562 = vmatpush1.bf16.msra.mxu0 %v3481
          %3563 = vmatprep.subr.bf16.mxu0 0
          %3564 = vmatpush1.bf16.msra.mxu0 %v3482
          %3565 = vmatprep.subr.bf16.mxu0 0
          %3566 = vmatpush1.bf16.msra.mxu0 %v3483
          %3567 = vmatprep.subr.bf16.mxu0 0
          %3568 = vmatpush1.bf16.msra.mxu0 %v3484
          %3569 = vmatprep.subr.bf16.mxu0 0
          %3570 = vmatpush1.bf16.msra.mxu0 %v3485
          %3571 = vmatprep.subr.bf16.mxu0 0
          %3572 = vmatpush1.bf16.msra.mxu0 %v3486
          %3573 = vmatprep.subr.bf16.mxu0 0
          %3574 = vmatpush1.bf16.msra.mxu0 %v3487
          %3575 = vmatprep.subr.bf16.mxu0 0
          %3576 = vmatpush1.bf16.msra.mxu0 %v3488
          %3577 = vmatprep.subr.bf16.mxu0 0
          %3578 = vmatpush1.bf16.msra.mxu0 %v3489
          %3579 = vmatprep.subr.bf16.mxu0 0
          %3580 = vmatpush1.bf16.msra.mxu0 %v3490
          %3581 = vmatprep.subr.bf16.mxu0 0
          %3582 = vmatpush1.bf16.msra.mxu0 0
          %3583 = vmatprep.subr.bf16.mxu0 0
          %3584 = vmatpush1.bf16.msra.mxu0 0
          %3585 = vmatprep.subr.bf16.mxu0 0
          %3586 = vmatpush1.bf16.msra.mxu0 0
          %3587 = vmatprep.subr.bf16.mxu0 0
          %3588 = vmatpush1.bf16.msra.mxu0 0
          %3589 = vmatprep.mubr.bf16.mxu0 %v3504
          %3590 = vmatmul.mubr.bf16.gmra.mrb[0].mxu0 %v3359
          %v3591 = vpop.f32.mrb[0].mxu0
          %v3592 = vadd.f32 0.0, %v3591
          %v3593 = vpop.f32.mrb[0].mxu0
          %v3594 = vpop.f32.mrb[0].mxu0
          %v3595 = vadd.f32 0.0, %v3594
          %v3596 = vpop.f32.mrb[0].mxu0
          %3597 = vmatprep.mubr.bf16.mxu0 %v3507
          %3598 = vmatmul.mubr.bf16.gmra.mrb[0].mxu0 %v3361
          %v3599 = vpop.f32.mrb[0].mxu0
          %v3600 = vadd.f32 0.0, %v3599
          %v3601 = vpop.f32.mrb[0].mxu0
          %v3602 = vpop.f32.mrb[0].mxu0
          %v3603 = vadd.f32 0.0, %v3602
          %v3604 = vpop.f32.mrb[0].mxu0
          %3605 = vmatprep.mubr.bf16.mxu0 %v3510
          %3606 = vmatmul.mubr.bf16.gmra.mrb[0].mxu0 %v3363
          %v3607 = vpop.f32.mrb[0].mxu0
          %v3608 = vadd.f32 0.0, %v3607
          %v3609 = vpop.f32.mrb[0].mxu0
          %v3610 = vpop.f32.mrb[0].mxu0
          %v3611 = vadd.f32 0.0, %v3610
          %v3612 = vpop.f32.mrb[0].mxu0
          %3613 = vmatprep.mubr.bf16.mxu0 %v3513
          %3614 = vmatmul.mubr.bf16.gmra.mrb[0].mxu0 %v3365
          %v3615 = vpop.f32.mrb[0].mxu0
          %v3616 = vadd.f32 0.0, %v3615
          %v3617 = vpop.f32.mrb[0].mxu0
          %v3618 = vpop.f32.mrb[0].mxu0
          %v3619 = vadd.f32 0.0, %v3618
          %v3620 = vpop.f32.mrb[0].mxu0
          %3621 = vmatprep.mubr.bf16.mxu0 %v3516
          %3622 = vmatmul.mubr.bf16.gmra.mrb[0].mxu0 %v3367
          %v3623 = vpop.f32.mrb[0].mxu0
          %v3624 = vadd.f32 0.0, %v3623
          %v3625 = vpop.f32.mrb[0].mxu0
          %v3626 = vpop.f32.mrb[0].mxu0
          %v3627 = vadd.f32 0.0, %v3626
          %v3628 = vpop.f32.mrb[0].mxu0
          %3629 = vmatprep.mubr.bf16.mxu0 %v3519
          %3630 = vmatmul.mubr.bf16.gmra.mrb[0].mxu0 %v3369
          %v3631 = vpop.f32.mrb[0].mxu0
          %v3632 = vadd.f32 0.0, %v3631
          %v3633 = vpop.f32.mrb[0].mxu0
          %v3634 = vpop.f32.mrb[0].mxu0
          %v3635 = vadd.f32 0.0, %v3634
          %v3636 = vpop.f32.mrb[0].mxu0
          %3637 = vmatprep.mubr.bf16.mxu0 %v3522
          %3638 = vmatmul.mubr.bf16.gmra.mrb[0].mxu0 %v3371
          %v3639 = vpop.f32.mrb[0].mxu0
          %v3640 = vadd.f32 0.0, %v3639
          %v3641 = vpop.f32.mrb[0].mxu0
          %v3642 = vpop.f32.mrb[0].mxu0
          %v3643 = vadd.f32 0.0, %v3642
          %v3644 = vpop.f32.mrb[0].mxu0
          %3645 = vmatprep.mubr.bf16.mxu0 %v3525
          %3646 = vmatmul.mubr.bf16.gmra.mrb[0].mxu0 %v3373
          %v3647 = vpop.f32.mrb[0].mxu0
          %v3648 = vadd.f32 0.0, %v3647
          %v3649 = vpop.f32.mrb[0].mxu0
          %v3650 = vpop.f32.mrb[0].mxu0
          %v3651 = vadd.f32 0.0, %v3650
          %v3652 = vpop.f32.mrb[0].mxu0
          %3653 = vmatprep.mubr.bf16.mxu0 %v3528
          %3654 = vmatmul.mubr.bf16.gmra.mrb[0].mxu0 %v3375
          %v3655 = vpop.f32.mrb[0].mxu0
          %v3656 = vadd.f32 0.0, %v3655
          %v3657 = vpop.f32.mrb[0].mxu0
          %v3658 = vpop.f32.mrb[0].mxu0
          %v3659 = vadd.f32 0.0, %v3658
          %v3660 = vpop.f32.mrb[0].mxu0
          %3661 = vmatprep.mubr.bf16.mxu0 %v3531
          %3662 = vmatmul.mubr.bf16.gmra.mrb[0].mxu0 %v3377
          %v3663 = vpop.f32.mrb[0].mxu0
          %v3664 = vadd.f32 0.0, %v3663
          %v3665 = vpop.f32.mrb[0].mxu0
          %v3666 = vpop.f32.mrb[0].mxu0
          %v3667 = vadd.f32 0.0, %v3666
          %v3668 = vpop.f32.mrb[0].mxu0
          %3669 = vmatprep.mubr.bf16.mxu0 %v3534
          %3670 = vmatmul.mubr.bf16.gmra.mrb[0].mxu0 %v3379
          %v3671 = vpop.f32.mrb[0].mxu0
          %v3672 = vadd.f32 0.0, %v3671
          %v3673 = vpop.f32.mrb[0].mxu0
          %v3674 = vpop.f32.mrb[0].mxu0
          %v3675 = vadd.f32 0.0, %v3674
          %v3676 = vpop.f32.mrb[0].mxu0
          %3677 = vmatprep.mubr.bf16.mxu0 %v3537
          %3678 = vmatmul.mubr.bf16.gmra.mrb[0].mxu0 %v3381
          %v3679 = vpop.f32.mrb[0].mxu0
          %v3680 = vadd.f32 0.0, %v3679
          %v3681 = vpop.f32.mrb[0].mxu0
          %v3682 = vpop.f32.mrb[0].mxu0
          %v3683 = vadd.f32 0.0, %v3682
          %v3684 = vpop.f32.mrb[0].mxu0
          %3685 = vmatprep.mubr.bf16.mxu0 %v3540
          %3686 = vmatmul.mubr.bf16.gmra.mrb[0].mxu0 %v3383
          %v3687 = vpop.f32.mrb[0].mxu0
          %v3688 = vadd.f32 0.0, %v3687
          %v3689 = vpop.f32.mrb[0].mxu0
          %v3690 = vpop.f32.mrb[0].mxu0
          %v3691 = vadd.f32 0.0, %v3690
          %v3692 = vpop.f32.mrb[0].mxu0
          %3693 = vmatprep.mubr.bf16.mxu0 %v3543
          %3694 = vmatmul.mubr.bf16.gmra.mrb[0].mxu0 %v3385
          %v3695 = vpop.f32.mrb[0].mxu0
          %v3696 = vadd.f32 0.0, %v3695
          %v3697 = vpop.f32.mrb[0].mxu0
          %v3698 = vpop.f32.mrb[0].mxu0
          %v3699 = vadd.f32 0.0, %v3698
          %v3700 = vpop.f32.mrb[0].mxu0
          %3701 = vmatprep.mubr.bf16.mxu0 %v3546
          %3702 = vmatmul.mubr.bf16.gmra.mrb[0].mxu0 %v3387
          %v3703 = vpop.f32.mrb[0].mxu0
          %v3704 = vadd.f32 0.0, %v3703
          %v3705 = vpop.f32.mrb[0].mxu0
          %v3706 = vpop.f32.mrb[0].mxu0
          %v3707 = vadd.f32 0.0, %v3706
          %v3708 = vpop.f32.mrb[0].mxu0
          %3709 = vmatprep.mubr.bf16.mxu0 %v3549
          %3710 = vmatmul.mubr.bf16.gmra.mrb[0].mxu0 %v3389
          %v3711 = vpop.f32.mrb[0].mxu0
          %v3712 = vadd.f32 0.0, %v3711
          %v3713 = vpop.f32.mrb[0].mxu0
          %v3714 = vpop.f32.mrb[0].mxu0
          %v3715 = vadd.f32 0.0, %v3714
          %v3716 = vpop.f32.mrb[0].mxu0
          %3717 = vmatprep.mubr.bf16.mxu0 %v3552
          %3718 = vmatmul.mubr.bf16.gmra.mrb[0].mxu0 %v3391
          %v3719 = vpop.f32.mrb[0].mxu0
          %v3720 = vadd.f32 0.0, %v3719
          %v3721 = vpop.f32.mrb[0].mxu0
          %v3722 = vpop.f32.mrb[0].mxu0
          %v3723 = vadd.f32 0.0, %v3722
          %v3724 = vpop.f32.mrb[0].mxu0
          %3725 = vmatprep.mubr.bf16.mxu0 %v3555
          %3726 = vmatmul.mubr.bf16.gmra.mrb[0].mxu0 %v3393
          %v3727 = vpop.f32.mrb[0].mxu0
          %v3728 = vadd.f32 0.0, %v3727
          %v3729 = vpop.f32.mrb[0].mxu0
          %v3730 = vpop.f32.mrb[0].mxu0
          %v3731 = vadd.f32 0.0, %v3730
          %v3732 = vpop.f32.mrb[0].mxu0
          %3733 = vdwg.mxu0
          %v3734 = vadd.f32 %v3395, %v3592
          %v3735 = vadd.f32 %v3396, %v3595
          %v3736 = vadd.f32 %v3397, %v3600
          %v3737 = vadd.f32 %v3398, %v3603
          %v3738 = vadd.f32 %v3399, %v3608
          %v3739 = vadd.f32 %v3400, %v3611
          %v3740 = vadd.f32 %v3401, %v3616
          %v3741 = vadd.f32 %v3402, %v3619
          %v3742 = vadd.f32 %v3403, %v3624
          %v3743 = vadd.f32 %v3404, %v3627
          %v3744 = vadd.f32 %v3405, %v3632
          %v3745 = vadd.f32 %v3406, %v3635
          %v3746 = vadd.f32 %v3407, %v3640
          %v3747 = vadd.f32 %v3408, %v3643
          %v3748 = vadd.f32 %v3409, %v3648
          %v3749 = vadd.f32 %v3410, %v3651
          %v3750 = vadd.f32 %v3411, %v3656
          %v3751 = vadd.f32 %v3412, %v3659
          %v3752 = vadd.f32 %v3413, %v3664
          %v3753 = vadd.f32 %v3414, %v3667
          %v3754 = vadd.f32 %v3415, %v3672
          %v3755 = vadd.f32 %v3416, %v3675
          %v3756 = vadd.f32 %v3417, %v3680
          %v3757 = vadd.f32 %v3418, %v3683
          %v3758 = vadd.f32 %v3419, %v3688
          %v3759 = vadd.f32 %v3420, %v3691
          %v3760 = vadd.f32 %v3421, %v3696
          %v3761 = vadd.f32 %v3422, %v3699
          %v3762 = vadd.f32 %v3423, %v3704
          %v3763 = vadd.f32 %v3424, %v3707
          %v3764 = vadd.f32 %v3425, %v3712
          %v3765 = vadd.f32 %v3426, %v3715
          %v3766 = vadd.f32 %v3427, %v3720
          %v3767 = vadd.f32 %v3428, %v3723
          %v3768 = vadd.f32 %v3429, %v3728
          %v3769 = vadd.f32 %v3430, %v3731
          %3770 = vst.msk [vmem:[#allocation4] sm:$0xff] %vm471, %v3734
          %3771 = vst.msk [vmem:[#allocation4 + $0x8] sm:$0xff] %vm471, %v3735
          %3772 = vst.msk [vmem:[#allocation4 + $0x10] sm:$0xff] %vm471, %v3736
          %3773 = vst.msk [vmem:[#allocation4 + $0x18] sm:$0xff] %vm471, %v3737
          %3774 = vst.msk [vmem:[#allocation4 + $0x20] sm:$0xff] %vm471, %v3738
          %3775 = vst.msk [vmem:[#allocation4 + $0x28] sm:$0xff] %vm471, %v3739
          %3776 = vst.msk [vmem:[#allocation4 + $0x30] sm:$0xff] %vm471, %v3740
          %3777 = vst.msk [vmem:[#allocation4 + $0x38] sm:$0xff] %vm471, %v3741
          %3778 = vst.msk [vmem:[#allocation4 + $0x40] sm:$0xff] %vm471, %v3742
          %3779 = vst.msk [vmem:[#allocation4 + $0x48] sm:$0xff] %vm471, %v3743
          %3780 = vst.msk [vmem:[#allocation4 + $0x50] sm:$0xff] %vm471, %v3744
          %3781 = vst.msk [vmem:[#allocation4 + $0x58] sm:$0xff] %vm471, %v3745
          %3782 = vst.msk [vmem:[#allocation4 + $0x60] sm:$0xff] %vm471, %v3746
          %3783 = vst.msk [vmem:[#allocation4 + $0x68] sm:$0xff] %vm471, %v3747
          %3784 = vst.msk [vmem:[#allocation4 + $0x70] sm:$0xff] %vm471, %v3748
          %3785 = vst.msk [vmem:[#allocation4 + $0x78] sm:$0xff] %vm471, %v3749
          %3786 = vst.msk [vmem:[#allocation4 + $0x80] sm:$0xff] %vm471, %v3750
          %3787 = vst.msk [vmem:[#allocation4 + $0x88] sm:$0xff] %vm471, %v3751
          %3788 = vst.msk [vmem:[#allocation4 + $0x90] sm:$0xff] %vm471, %v3752
          %3789 = vst.msk [vmem:[#allocation4 + $0x98] sm:$0xff] %vm471, %v3753
          %3790 = vst.msk [vmem:[#allocation4 + $0xa0] sm:$0xff] %vm471, %v3754
          %3791 = vst.msk [vmem:[#allocation4 + $0xa8] sm:$0xff] %vm471, %v3755
          %3792 = vst.msk [vmem:[#allocation4 + $0xb0] sm:$0xff] %vm471, %v3756
          %3793 = vst.msk [vmem:[#allocation4 + $0xb8] sm:$0xff] %vm471, %v3757
          %3794 = vst.msk [vmem:[#allocation4 + $0xc0] sm:$0xff] %vm471, %v3758
          %3795 = vst.msk [vmem:[#allocation4 + $0xc8] sm:$0xff] %vm471, %v3759
          %3796 = vst.msk [vmem:[#allocation4 + $0xd0] sm:$0xff] %vm471, %v3760
          %3797 = vst.msk [vmem:[#allocation4 + $0xd8] sm:$0xff] %vm471, %v3761
          %3798 = vst.msk [vmem:[#allocation4 + $0xe0] sm:$0xff] %vm471, %v3762
          %3799 = vst.msk [vmem:[#allocation4 + $0xe8] sm:$0xff] %vm471, %v3763
          %3800 = vst.msk [vmem:[#allocation4 + $0xf0] sm:$0xff] %vm471, %v3764
          %3801 = vst.msk [vmem:[#allocation4 + $0xf8] sm:$0xff] %vm471, %v3765
          %3802 = vst.msk [vmem:[#allocation4 + $0x100] sm:$0xff] %vm471, %v3766
          %3803 = vst.msk [vmem:[#allocation4 + $0x108] sm:$0xff] %vm471, %v3767
          %3804 = vst.msk [vmem:[#allocation4 + $0x110] sm:$0xff] %vm471, %v3768
          %3805 = vst.msk [vmem:[#allocation4 + $0x118] sm:$0xff] %vm471, %v3769
          %s3806 = smul.u32 %s1927, 2
          %s3807 = scalar_lea.vmem [#allocation13], %s3806
          %v3808 = vld [vmem:[%s3807] sm:$0x3]
          %v3809 = vld [vmem:[#allocation4] sm:$0xff]
          %v3810 = vld [vmem:[#allocation4 + $0x8] sm:$0xff]
          %v3811 = vld [vmem:[#allocation4 + $0x10] sm:$0xff]
          %v3812 = vld [vmem:[#allocation4 + $0x18] sm:$0xff]
          %v3813 = vld [vmem:[#allocation4 + $0x20] sm:$0xff]
          %v3814 = vld [vmem:[#allocation4 + $0x28] sm:$0xff]
          %v3815 = vld [vmem:[#allocation4 + $0x30] sm:$0xff]
          %v3816 = vld [vmem:[#allocation4 + $0x38] sm:$0xff]
          %v3817 = vld [vmem:[#allocation4 + $0x40] sm:$0xff]
          %v3818 = vld [vmem:[#allocation4 + $0x48] sm:$0xff]
          %v3819 = vld [vmem:[#allocation4 + $0x50] sm:$0xff]
          %v3820 = vld [vmem:[#allocation4 + $0x58] sm:$0xff]
          %v3821 = vld [vmem:[#allocation4 + $0x60] sm:$0xff]
          %v3822 = vld [vmem:[#allocation4 + $0x68] sm:$0xff]
          %v3823 = vld [vmem:[#allocation4 + $0x70] sm:$0xff]
          %v3824 = vld [vmem:[#allocation4 + $0x78] sm:$0xff]
          %v3825 = vld [vmem:[#allocation4 + $0x80] sm:$0xff]
          %v3826 = vld [vmem:[#allocation4 + $0x88] sm:$0xff]
          %v3827 = vld [vmem:[#allocation4 + $0x90] sm:$0xff]
          %v3828 = vld [vmem:[#allocation4 + $0x98] sm:$0xff]
          %v3829 = vld [vmem:[#allocation4 + $0xa0] sm:$0xff]
          %v3830 = vld [vmem:[#allocation4 + $0xa8] sm:$0xff]
          %v3831 = vld [vmem:[#allocation4 + $0xb0] sm:$0xff]
          %v3832 = vld [vmem:[#allocation4 + $0xb8] sm:$0xff]
          %v3833 = vld [vmem:[#allocation4 + $0xc0] sm:$0xff]
          %v3834 = vld [vmem:[#allocation4 + $0xc8] sm:$0xff]
          %v3835 = vld [vmem:[#allocation4 + $0xd0] sm:$0xff]
          %v3836 = vld [vmem:[#allocation4 + $0xd8] sm:$0xff]
          %v3837 = vld [vmem:[#allocation4 + $0xe0] sm:$0xff]
          %v3838 = vld [vmem:[#allocation4 + $0xe8] sm:$0xff]
          %v3839 = vld [vmem:[#allocation4 + $0xf0] sm:$0xff]
          %v3840 = vld [vmem:[#allocation4 + $0xf8] sm:$0xff]
          %v3841 = vld [vmem:[#allocation4 + $0x100] sm:$0xff]
          %v3842 = vld [vmem:[#allocation4 + $0x108] sm:$0xff]
          %v3843 = vld [vmem:[#allocation4 + $0x110] sm:$0xff]
          %v3844 = vld [vmem:[#allocation4 + $0x118] sm:$0xff]
          %v3845 = vlaneseq
          %v3846 = vshrl.u32 %v3845, 7
          %v3847 = vsub.s32 0, %v3846
          %v3848 = vrot.slane %v3808, %v3847
          %v3849 = vmul.f32 %v3809, %v3848
          %v3850 = vmul.f32 %v3810, %v3848
          %v3851 = vmul.f32 %v3811, %v3848
          %v3852 = vmul.f32 %v3812, %v3848
          %v3853 = vmul.f32 %v3813, %v3848
          %v3854 = vmul.f32 %v3814, %v3848
          %v3855 = vmul.f32 %v3815, %v3848
          %v3856 = vmul.f32 %v3816, %v3848
          %v3857 = vmul.f32 %v3817, %v3848
          %v3858 = vmul.f32 %v3818, %v3848
          %v3859 = vmul.f32 %v3819, %v3848
          %v3860 = vmul.f32 %v3820, %v3848
          %v3861 = vmul.f32 %v3821, %v3848
          %v3862 = vmul.f32 %v3822, %v3848
          %v3863 = vmul.f32 %v3823, %v3848
          %v3864 = vmul.f32 %v3824, %v3848
          %v3865 = vmul.f32 %v3825, %v3848
          %v3866 = vmul.f32 %v3826, %v3848
          %v3867 = vmul.f32 %v3827, %v3848
          %v3868 = vmul.f32 %v3828, %v3848
          %v3869 = vmul.f32 %v3829, %v3848
          %v3870 = vmul.f32 %v3830, %v3848
          %v3871 = vmul.f32 %v3831, %v3848
          %v3872 = vmul.f32 %v3832, %v3848
          %v3873 = vmul.f32 %v3833, %v3848
          %v3874 = vmul.f32 %v3834, %v3848
          %v3875 = vmul.f32 %v3835, %v3848
          %v3876 = vmul.f32 %v3836, %v3848
          %v3877 = vmul.f32 %v3837, %v3848
          %v3878 = vmul.f32 %v3838, %v3848
          %v3879 = vmul.f32 %v3839, %v3848
          %v3880 = vmul.f32 %v3840, %v3848
          %v3881 = vmul.f32 %v3841, %v3848
          %v3882 = vmul.f32 %v3842, %v3848
          %v3883 = vmul.f32 %v3843, %v3848
          %v3884 = vmul.f32 %v3844, %v3848
          %v3885 = vlaneseq
          %v3886 = vshrl.u32 %v3885, 7
          %v3887 = vsub.s32 1, %v3886
          %v3888 = vrot.slane %v3808, %v3887
          %v3889 = vadd.f32 %v3849, %v3888
          %v3890 = vadd.f32 %v3850, %v3888
          %v3891 = vadd.f32 %v3851, %v3888
          %v3892 = vadd.f32 %v3852, %v3888
          %v3893 = vadd.f32 %v3853, %v3888
          %v3894 = vadd.f32 %v3854, %v3888
          %v3895 = vadd.f32 %v3855, %v3888
          %v3896 = vadd.f32 %v3856, %v3888
          %v3897 = vadd.f32 %v3857, %v3888
          %v3898 = vadd.f32 %v3858, %v3888
          %v3899 = vadd.f32 %v3859, %v3888
          %v3900 = vadd.f32 %v3860, %v3888
          %v3901 = vadd.f32 %v3861, %v3888
          %v3902 = vadd.f32 %v3862, %v3888
          %v3903 = vadd.f32 %v3863, %v3888
          %v3904 = vadd.f32 %v3864, %v3888
          %v3905 = vadd.f32 %v3865, %v3888
          %v3906 = vadd.f32 %v3866, %v3888
          %v3907 = vadd.f32 %v3867, %v3888
          %v3908 = vadd.f32 %v3868, %v3888
          %v3909 = vadd.f32 %v3869, %v3888
          %v3910 = vadd.f32 %v3870, %v3888
          %v3911 = vadd.f32 %v3871, %v3888
          %v3912 = vadd.f32 %v3872, %v3888
          %v3913 = vadd.f32 %v3873, %v3888
          %v3914 = vadd.f32 %v3874, %v3888
          %v3915 = vadd.f32 %v3875, %v3888
          %v3916 = vadd.f32 %v3876, %v3888
          %v3917 = vadd.f32 %v3877, %v3888
          %v3918 = vadd.f32 %v3878, %v3888
          %v3919 = vadd.f32 %v3879, %v3888
          %v3920 = vadd.f32 %v3880, %v3888
          %v3921 = vadd.f32 %v3881, %v3888
          %v3922 = vadd.f32 %v3882, %v3888
          %v3923 = vadd.f32 %v3883, %v3888
          %v3924 = vadd.f32 %v3884, %v3888
          %v3925 = vmax.f32 %v3889, 0.0
          %v3926 = vmax.f32 %v3890, 0.0
          %v3927 = vmax.f32 %v3891, 0.0
          %v3928 = vmax.f32 %v3892, 0.0
          %v3929 = vmax.f32 %v3893, 0.0
          %v3930 = vmax.f32 %v3894, 0.0
          %v3931 = vmax.f32 %v3895, 0.0
          %v3932 = vmax.f32 %v3896, 0.0
          %v3933 = vmax.f32 %v3897, 0.0
          %v3934 = vmax.f32 %v3898, 0.0
          %v3935 = vmax.f32 %v3899, 0.0
          %v3936 = vmax.f32 %v3900, 0.0
          %v3937 = vmax.f32 %v3901, 0.0
          %v3938 = vmax.f32 %v3902, 0.0
          %v3939 = vmax.f32 %v3903, 0.0
          %v3940 = vmax.f32 %v3904, 0.0
          %v3941 = vmax.f32 %v3905, 0.0
          %v3942 = vmax.f32 %v3906, 0.0
          %v3943 = vmax.f32 %v3907, 0.0
          %v3944 = vmax.f32 %v3908, 0.0
          %v3945 = vmax.f32 %v3909, 0.0
          %v3946 = vmax.f32 %v3910, 0.0
          %v3947 = vmax.f32 %v3911, 0.0
          %v3948 = vmax.f32 %v3912, 0.0
          %v3949 = vmax.f32 %v3913, 0.0
          %v3950 = vmax.f32 %v3914, 0.0
          %v3951 = vmax.f32 %v3915, 0.0
          %v3952 = vmax.f32 %v3916, 0.0
          %v3953 = vmax.f32 %v3917, 0.0
          %v3954 = vmax.f32 %v3918, 0.0
          %v3955 = vmax.f32 %v3919, 0.0
          %v3956 = vmax.f32 %v3920, 0.0
          %v3957 = vmax.f32 %v3921, 0.0
          %v3958 = vmax.f32 %v3922, 0.0
          %v3959 = vmax.f32 %v3923, 0.0
          %v3960 = vmax.f32 %v3924, 0.0
          %v3961 = vmul.f32 %v3925, %v452
          %v3962 = vmul.f32 %v3926, %v452
          %v3963 = vmul.f32 %v3927, %v453
          %v3964 = vmul.f32 %v3928, %v453
          %v3965 = vmul.f32 %v3929, %v454
          %v3966 = vmul.f32 %v3930, %v454
          %v3967 = vmul.f32 %v3931, %v455
          %v3968 = vmul.f32 %v3932, %v455
          %v3969 = vmul.f32 %v3933, %v456
          %v3970 = vmul.f32 %v3934, %v456
          %v3971 = vmul.f32 %v3935, %v457
          %v3972 = vmul.f32 %v3936, %v457
          %v3973 = vmul.f32 %v3937, %v458
          %v3974 = vmul.f32 %v3938, %v458
          %v3975 = vmul.f32 %v3939, %v459
          %v3976 = vmul.f32 %v3940, %v459
          %v3977 = vmul.f32 %v3941, %v460
          %v3978 = vmul.f32 %v3942, %v460
          %v3979 = vmul.f32 %v3943, %v461
          %v3980 = vmul.f32 %v3944, %v461
          %v3981 = vmul.f32 %v3945, %v462
          %v3982 = vmul.f32 %v3946, %v462
          %v3983 = vmul.f32 %v3947, %v463
          %v3984 = vmul.f32 %v3948, %v463
          %v3985 = vmul.f32 %v3949, %v464
          %v3986 = vmul.f32 %v3950, %v464
          %v3987 = vmul.f32 %v3951, %v465
          %v3988 = vmul.f32 %v3952, %v465
          %v3989 = vmul.f32 %v3953, %v466
          %v3990 = vmul.f32 %v3954, %v466
          %v3991 = vmul.f32 %v3955, %v467
          %v3992 = vmul.f32 %v3956, %v467
          %v3993 = vmul.f32 %v3957, %v468
          %v3994 = vmul.f32 %v3958, %v468
          %v3995 = vmul.f32 %v3959, %v469
          %v3996 = vmul.f32 %v3960, %v469
          %v3997 = vpack.c.bf16 %v3962, %v3961
          %v3998 = vpack.c.bf16 %v3964, %v3963
          %v3999 = vpack.c.bf16 %v3966, %v3965
          %v4000 = vpack.c.bf16 %v3968, %v3967
          %v4001 = vpack.c.bf16 %v3970, %v3969
          %v4002 = vpack.c.bf16 %v3972, %v3971
          %v4003 = vpack.c.bf16 %v3974, %v3973
          %v4004 = vpack.c.bf16 %v3976, %v3975
          %v4005 = vpack.c.bf16 %v3978, %v3977
          %v4006 = vpack.c.bf16 %v3980, %v3979
          %v4007 = vpack.c.bf16 %v3982, %v3981
          %v4008 = vpack.c.bf16 %v3984, %v3983
          %v4009 = vpack.c.bf16 %v3986, %v3985
          %v4010 = vpack.c.bf16 %v3988, %v3987
          %v4011 = vpack.c.bf16 %v3990, %v3989
          %v4012 = vpack.c.bf16 %v3992, %v3991
          %v4013 = vpack.c.bf16 %v3994, %v3993
          %v4014 = vpack.c.bf16 %v3996, %v3995
          %4015 = vst.msk [vmem:[#allocation2] sm:$0xff] %vm471, %v3997
          %4016 = vst.msk [vmem:[#allocation2 + $0x8] sm:$0xff] %vm471, %v3998
          %4017 = vst.msk [vmem:[#allocation2 + $0x10] sm:$0xff] %vm471, %v3999
          %4018 = vst.msk [vmem:[#allocation2 + $0x18] sm:$0xff] %vm471, %v4000
          %4019 = vst.msk [vmem:[#allocation2 + $0x20] sm:$0xff] %vm471, %v4001
          %4020 = vst.msk [vmem:[#allocation2 + $0x28] sm:$0xff] %vm471, %v4002
          %4021 = vst.msk [vmem:[#allocation2 + $0x30] sm:$0xff] %vm471, %v4003
          %4022 = vst.msk [vmem:[#allocation2 + $0x38] sm:$0xff] %vm471, %v4004
          %4023 = vst.msk [vmem:[#allocation2 + $0x40] sm:$0xff] %vm471, %v4005
          %4024 = vst.msk [vmem:[#allocation2 + $0x48] sm:$0xff] %vm471, %v4006
          %4025 = vst.msk [vmem:[#allocation2 + $0x50] sm:$0xff] %vm471, %v4007
          %4026 = vst.msk [vmem:[#allocation2 + $0x58] sm:$0xff] %vm471, %v4008
          %4027 = vst.msk [vmem:[#allocation2 + $0x60] sm:$0xff] %vm471, %v4009
          %4028 = vst.msk [vmem:[#allocation2 + $0x68] sm:$0xff] %vm471, %v4010
          %4029 = vst.msk [vmem:[#allocation2 + $0x70] sm:$0xff] %vm471, %v4011
          %4030 = vst.msk [vmem:[#allocation2 + $0x78] sm:$0xff] %vm471, %v4012
          %4031 = vst.msk [vmem:[#allocation2 + $0x80] sm:$0xff] %vm471, %v4013
          %4032 = vst.msk [vmem:[#allocation2 + $0x88] sm:$0xff] %vm471, %v4014
        $region73: #{tpu_custom_call.1} parent=43 // loop_footer
          %s1931 = sadd.s32 1, %s1927
        $region74: #{tpu_custom_call.1} parent=43 // loop_footer_branch
          %1926 = sbr.rel target = $region70
        $region75: #{tpu_custom_call.1} parent=43 // loop_exit
          _
        %v4033 = vld [vmem:[#allocation14] sm:$0x7]
        %v4034 = vld [vmem:[#allocation14 + $0x4] sm:$0x7]
        %v4035 = vld [vmem:[#allocation14 + $0x8] sm:$0x7]
        %v4036 = vld [vmem:[#allocation2 + $0x20] sm:$0xff]
        %v4037 = vld [vmem:[#allocation2 + $0x28] sm:$0xff]
        %v4038 = vld [vmem:[#allocation2 + $0x30] sm:$0xff]
        %v4039 = vld [vmem:[#allocation2 + $0x38] sm:$0xff]
        %v4040 = vld [vmem:[#allocation2 + $0x40] sm:$0xff]
        %v4041 = vld [vmem:[#allocation2 + $0x48] sm:$0xff]
        %v4042 = vld [vmem:[#allocation2 + $0x50] sm:$0xff]
        %v4043 = vld [vmem:[#allocation2 + $0x58] sm:$0xff]
        %v4044 = vld [vmem:[#allocation2 + $0x60] sm:$0xff]
        %v4045 = vld [vmem:[#allocation2 + $0x68] sm:$0xff]
        %v4047 = vshrl.u32 %v4036, 16
        %v4049 = vrot.slane %v4047, 7
        %v4050 = vshll.u32 %v4036, 16
        %v4052 = vor.u32 %v4049, %v4050
        %v4054 = vshrl.u32 %v4037, 16
        %v4056 = vrot.slane %v4054, 7
        %v4057 = vshll.u32 %v4037, 16
        %v4059 = vor.u32 %v4056, %v4057
        %v4061 = vshrl.u32 %v4038, 16
        %v4063 = vrot.slane %v4061, 7
        %v4064 = vshll.u32 %v4038, 16
        %v4066 = vor.u32 %v4063, %v4064
        %v4068 = vshrl.u32 %v4039, 16
        %v4070 = vrot.slane %v4068, 7
        %v4071 = vshll.u32 %v4039, 16
        %v4073 = vor.u32 %v4070, %v4071
        %v4075 = vshrl.u32 %v4040, 16
        %v4077 = vrot.slane %v4075, 7
        %v4078 = vshll.u32 %v4040, 16
        %v4080 = vor.u32 %v4077, %v4078
        %v4082 = vshrl.u32 %v4041, 16
        %v4084 = vrot.slane %v4082, 7
        %v4085 = vshll.u32 %v4041, 16
        %v4087 = vor.u32 %v4084, %v4085
        %v4089 = vshrl.u32 %v4042, 16
        %v4091 = vrot.slane %v4089, 7
        %v4092 = vshll.u32 %v4042, 16
        %v4094 = vor.u32 %v4091, %v4092
        %v4096 = vshrl.u32 %v4043, 16
        %v4098 = vrot.slane %v4096, 7
        %v4099 = vshll.u32 %v4043, 16
        %v4101 = vor.u32 %v4098, %v4099
        %v4103 = vshrl.u32 %v4044, 16
        %v4105 = vrot.slane %v4103, 7
        %v4106 = vshll.u32 %v4044, 16
        %v4108 = vor.u32 %v4105, %v4106
        %v4110 = vshrl.u32 %v4045, 16
        %v4112 = vrot.slane %v4110, 7
        %v4113 = vshll.u32 %v4045, 16
        %v4115 = vor.u32 %v4112, %v4113
        %vm4136 = vcmask 1040384
        %vm4137 = vsmask.f32 256
        %vm4138 = vmand %vm4136, %vm4137
        %v4139 = vsel %vm4138, 0, %v4052
        %v4140 = vsel %vm4138, 0, %v4059
        %v4141 = vsel %vm4138, 0, %v4066
        %v4142 = vsel %vm4138, 0, %v4073
        %v4143 = vsel %vm4138, 0, %v4080
        %v4144 = vsel %vm4138, 0, %v4087
        %v4145 = vsel %vm4138, 0, %v4094
        %v4146 = vsel %vm4138, 0, %v4101
        %v4147 = vsel %vm4138, 0, %v4108
        %v4148 = vsel %vm4138, 0, %v4115
        %v4149 = vsel %vm4138, %v4049, 0
        %v4150 = vsel %vm4138, %v4056, 0
        %v4151 = vsel %vm4138, %v4063, 0
        %v4152 = vsel %vm4138, %v4070, 0
        %v4153 = vsel %vm4138, %v4077, 0
        %v4154 = vsel %vm4138, %v4084, 0
        %v4155 = vsel %vm4138, %v4091, 0
        %v4156 = vsel %vm4138, %v4098, 0
        %v4157 = vsel %vm4138, %v4105, 0
        %v4158 = vsel %vm4138, %v4112, 0
        %v4159 = vunpack.c.l.bf16 %v4139
        %v4160 = vunpack.c.h.bf16 %v4139
        %v4161 = vunpack.c.l.bf16 %v4140
        %v4162 = vunpack.c.h.bf16 %v4140
        %v4163 = vunpack.c.l.bf16 %v4141
        %v4164 = vunpack.c.h.bf16 %v4141
        %v4165 = vunpack.c.l.bf16 %v4142
        %v4166 = vunpack.c.h.bf16 %v4142
        %v4167 = vunpack.c.l.bf16 %v4143
        %v4168 = vunpack.c.h.bf16 %v4143
        %v4169 = vunpack.c.l.bf16 %v4144
        %v4170 = vunpack.c.h.bf16 %v4144
        %v4171 = vunpack.c.l.bf16 %v4145
        %v4172 = vunpack.c.h.bf16 %v4145
        %v4173 = vunpack.c.l.bf16 %v4146
        %v4174 = vunpack.c.h.bf16 %v4146
        %v4175 = vlaneseq
        %v4176 = vshrl.u32 %v4175, 7
        %v4177 = vsub.s32 0, %v4176
        %v4178 = vrot.slane %v4033, %v4177
        %v4179 = vmul.f32 %v4159, %v4178
        %v4180 = vmul.f32 %v4160, %v4178
        %v4181 = vmul.f32 %v4161, %v4178
        %v4182 = vmul.f32 %v4162, %v4178
        %v4183 = vmul.f32 %v4163, %v4178
        %v4184 = vmul.f32 %v4164, %v4178
        %v4185 = vmul.f32 %v4165, %v4178
        %v4186 = vmul.f32 %v4166, %v4178
        %v4187 = vmul.f32 %v4167, %v4178
        %v4188 = vmul.f32 %v4168, %v4178
        %v4189 = vmul.f32 %v4169, %v4178
        %v4190 = vmul.f32 %v4170, %v4178
        %v4191 = vmul.f32 %v4171, %v4178
        %v4192 = vmul.f32 %v4172, %v4178
        %v4193 = vmul.f32 %v4173, %v4178
        %v4194 = vmul.f32 %v4174, %v4178
        %v4195 = vsel %vm471, %v4179, 0.0
        %4196 = vadd.xlane.f32.xlu0 %v4195
        %v4197 = vpop.xlane.xlu0 %4196
        %v4198 = vsel %vm471, %v4180, 0.0
        %4199 = vadd.xlane.f32.xlu0 %v4198
        %v4200 = vpop.xlane.xlu0 %4199
        %v4201 = vsel %vm471, %v4181, 0.0
        %4202 = vadd.xlane.f32.xlu0 %v4201
        %v4203 = vpop.xlane.xlu0 %4202
        %v4204 = vsel %vm471, %v4182, 0.0
        %4205 = vadd.xlane.f32.xlu0 %v4204
        %v4206 = vpop.xlane.xlu0 %4205
        %v4207 = vsel %vm471, %v4183, 0.0
        %4208 = vadd.xlane.f32.xlu0 %v4207
        %v4209 = vpop.xlane.xlu0 %4208
        %v4210 = vsel %vm471, %v4184, 0.0
        %4211 = vadd.xlane.f32.xlu0 %v4210
        %v4212 = vpop.xlane.xlu0 %4211
        %v4213 = vsel %vm471, %v4185, 0.0
        %4214 = vadd.xlane.f32.xlu0 %v4213
        %v4215 = vpop.xlane.xlu0 %4214
        %v4216 = vsel %vm471, %v4186, 0.0
        %4217 = vadd.xlane.f32.xlu0 %v4216
        %v4218 = vpop.xlane.xlu0 %4217
        %v4219 = vsel %vm471, %v4187, 0.0
        %4220 = vadd.xlane.f32.xlu0 %v4219
        %v4221 = vpop.xlane.xlu0 %4220
        %v4222 = vsel %vm471, %v4188, 0.0
        %4223 = vadd.xlane.f32.xlu0 %v4222
        %v4224 = vpop.xlane.xlu0 %4223
        %v4225 = vsel %vm471, %v4189, 0.0
        %4226 = vadd.xlane.f32.xlu0 %v4225
        %v4227 = vpop.xlane.xlu0 %4226
        %v4228 = vsel %vm471, %v4190, 0.0
        %4229 = vadd.xlane.f32.xlu0 %v4228
        %v4230 = vpop.xlane.xlu0 %4229
        %v4231 = vsel %vm471, %v4191, 0.0
        %4232 = vadd.xlane.f32.xlu0 %v4231
        %v4233 = vpop.xlane.xlu0 %4232
        %v4234 = vsel %vm471, %v4192, 0.0
        %4235 = vadd.xlane.f32.xlu0 %v4234
        %v4236 = vpop.xlane.xlu0 %4235
        %v4237 = vsel %vm471, %v4193, 0.0
        %4238 = vadd.xlane.f32.xlu0 %v4237
        %v4239 = vpop.xlane.xlu0 %4238
        %v4240 = vsel %vm471, %v4194, 0.0
        %4241 = vadd.xlane.f32.xlu0 %v4240
        %v4242 = vpop.xlane.xlu0 %4241
        %v4243 = vadd.f32 %v4197, 0.0
        %v4244 = vadd.f32 %v4200, 0.0
        %v4245 = vadd.f32 %v4203, 0.0
        %v4246 = vadd.f32 %v4206, 0.0
        %v4247 = vadd.f32 %v4209, 0.0
        %v4248 = vadd.f32 %v4212, 0.0
        %v4249 = vadd.f32 %v4215, 0.0
        %v4250 = vadd.f32 %v4218, 0.0
        %v4251 = vadd.f32 %v4221, 0.0
        %v4252 = vadd.f32 %v4224, 0.0
        %v4253 = vadd.f32 %v4227, 0.0
        %v4254 = vadd.f32 %v4230, 0.0
        %v4255 = vadd.f32 %v4233, 0.0
        %v4256 = vadd.f32 %v4236, 0.0
        %v4257 = vadd.f32 %v4239, 0.0
        %v4258 = vadd.f32 %v4242, 0.0
        %v4259 = vunpack.c.l.bf16 %v4149
        %v4260 = vunpack.c.l.bf16 %v4150
        %v4261 = vunpack.c.l.bf16 %v4151
        %v4262 = vunpack.c.l.bf16 %v4152
        %v4263 = vunpack.c.l.bf16 %v4153
        %v4264 = vunpack.c.l.bf16 %v4154
        %v4265 = vunpack.c.l.bf16 %v4155
        %v4266 = vunpack.c.l.bf16 %v4156
        %v4267 = vlaneseq
        %v4268 = vshrl.u32 %v4267, 7
        %v4269 = vsub.s32 1, %v4268
        %v4270 = vrot.slane %v4033, %v4269
        %v4271 = vmul.f32 %v4159, %v4270
        %v4272 = vmul.f32 %v4160, %v4270
        %v4273 = vmul.f32 %v4259, %v4270
        %v4274 = vmul.f32 %v4161, %v4270
        %v4275 = vmul.f32 %v4162, %v4270
        %v4276 = vmul.f32 %v4260, %v4270
        %v4277 = vmul.f32 %v4163, %v4270
        %v4278 = vmul.f32 %v4164, %v4270
        %v4279 = vmul.f32 %v4261, %v4270
        %v4280 = vmul.f32 %v4165, %v4270
        %v4281 = vmul.f32 %v4166, %v4270
        %v4282 = vmul.f32 %v4262, %v4270
        %v4283 = vmul.f32 %v4167, %v4270
        %v4284 = vmul.f32 %v4168, %v4270
        %v4285 = vmul.f32 %v4263, %v4270
        %v4286 = vmul.f32 %v4169, %v4270
        %v4287 = vmul.f32 %v4170, %v4270
        %v4288 = vmul.f32 %v4264, %v4270
        %v4289 = vmul.f32 %v4171, %v4270
        %v4290 = vmul.f32 %v4172, %v4270
        %v4291 = vmul.f32 %v4265, %v4270
        %v4292 = vmul.f32 %v4173, %v4270
        %v4293 = vmul.f32 %v4174, %v4270
        %v4294 = vmul.f32 %v4266, %v4270
        %vm4295 = vcmask 523265
        %v4296 = vsel %vm4295, %v4271, 0.0
        %4297 = vadd.xlane.f32.xlu0 %v4296
        %v4298 = vpop.xlane.xlu0 %4297
        %v4299 = vsel %vm471, %v4272, 0.0
        %4300 = vadd.xlane.f32.xlu0 %v4299
        %v4301 = vpop.xlane.xlu0 %4300
        %vm4302 = vcmask 516096
        %v4303 = vsel %vm4302, %v4273, 0.0
        %4304 = vadd.xlane.f32.xlu0 %v4303
        %v4305 = vpop.xlane.xlu0 %4304
        %v4306 = vsel %vm4295, %v4274, 0.0
        %4307 = vadd.xlane.f32.xlu0 %v4306
        %v4308 = vpop.xlane.xlu0 %4307
        %v4309 = vsel %vm471, %v4275, 0.0
        %4310 = vadd.xlane.f32.xlu0 %v4309
        %v4311 = vpop.xlane.xlu0 %4310
        %v4312 = vsel %vm4302, %v4276, 0.0
        %4313 = vadd.xlane.f32.xlu0 %v4312
        %v4314 = vpop.xlane.xlu0 %4313
        %v4315 = vsel %vm4295, %v4277, 0.0
        %4316 = vadd.xlane.f32.xlu0 %v4315
        %v4317 = vpop.xlane.xlu0 %4316
        %v4318 = vsel %vm471, %v4278, 0.0
        %4319 = vadd.xlane.f32.xlu0 %v4318
        %v4320 = vpop.xlane.xlu0 %4319
        %v4321 = vsel %vm4302, %v4279, 0.0
        %4322 = vadd.xlane.f32.xlu0 %v4321
        %v4323 = vpop.xlane.xlu0 %4322
        %v4324 = vsel %vm4295, %v4280, 0.0
        %4325 = vadd.xlane.f32.xlu0 %v4324
        %v4326 = vpop.xlane.xlu0 %4325
        %v4327 = vsel %vm471, %v4281, 0.0
        %4328 = vadd.xlane.f32.xlu0 %v4327
        %v4329 = vpop.xlane.xlu0 %4328
        %v4330 = vsel %vm4302, %v4282, 0.0
        %4331 = vadd.xlane.f32.xlu0 %v4330
        %v4332 = vpop.xlane.xlu0 %4331
        %v4333 = vsel %vm4295, %v4283, 0.0
        %4334 = vadd.xlane.f32.xlu0 %v4333
        %v4335 = vpop.xlane.xlu0 %4334
        %v4336 = vsel %vm471, %v4284, 0.0
        %4337 = vadd.xlane.f32.xlu0 %v4336
        %v4338 = vpop.xlane.xlu0 %4337
        %v4339 = vsel %vm4302, %v4285, 0.0
        %4340 = vadd.xlane.f32.xlu0 %v4339
        %v4341 = vpop.xlane.xlu0 %4340
        %v4342 = vsel %vm4295, %v4286, 0.0
        %4343 = vadd.xlane.f32.xlu0 %v4342
        %v4344 = vpop.xlane.xlu0 %4343
        %v4345 = vsel %vm471, %v4287, 0.0
        %4346 = vadd.xlane.f32.xlu0 %v4345
        %v4347 = vpop.xlane.xlu0 %4346
        %v4348 = vsel %vm4302, %v4288, 0.0
        %4349 = vadd.xlane.f32.xlu0 %v4348
        %v4350 = vpop.xlane.xlu0 %4349
        %v4351 = vsel %vm4295, %v4289, 0.0
        %4352 = vadd.xlane.f32.xlu0 %v4351
        %v4353 = vpop.xlane.xlu0 %4352
        %v4354 = vsel %vm471, %v4290, 0.0
        %4355 = vadd.xlane.f32.xlu0 %v4354
        %v4356 = vpop.xlane.xlu0 %4355
        %v4357 = vsel %vm4302, %v4291, 0.0
        %4358 = vadd.xlane.f32.xlu0 %v4357
        %v4359 = vpop.xlane.xlu0 %4358
        %v4360 = vsel %vm4295, %v4292, 0.0
        %4361 = vadd.xlane.f32.xlu0 %v4360
        %v4362 = vpop.xlane.xlu0 %4361
        %v4363 = vsel %vm471, %v4293, 0.0
        %4364 = vadd.xlane.f32.xlu0 %v4363
        %v4365 = vpop.xlane.xlu0 %4364
        %v4366 = vsel %vm4302, %v4294, 0.0
        %4367 = vadd.xlane.f32.xlu0 %v4366
        %v4368 = vpop.xlane.xlu0 %4367
        %vm4393 = vcmask 1046528
        %v4394 = vrot.slane %v4298, 1
        %v4395 = vrot.slane %v4301, 1
        %v4396 = vsel %vm4393, %v4394, %v4395
        %v4397 = vrot.slane %v4305, 1
        %v4398 = vsel %vm4393, %v4395, %v4397
        %v4399 = vrot.slane %v4308, 1
        %v4400 = vrot.slane %v4311, 1
        %v4401 = vsel %vm4393, %v4399, %v4400
        %v4402 = vrot.slane %v4314, 1
        %v4403 = vsel %vm4393, %v4400, %v4402
        %v4404 = vrot.slane %v4317, 1
        %v4405 = vrot.slane %v4320, 1
        %v4406 = vsel %vm4393, %v4404, %v4405
        %v4407 = vrot.slane %v4323, 1
        %v4408 = vsel %vm4393, %v4405, %v4407
        %v4409 = vrot.slane %v4326, 1
        %v4410 = vrot.slane %v4329, 1
        %v4411 = vsel %vm4393, %v4409, %v4410
        %v4412 = vrot.slane %v4332, 1
        %v4413 = vsel %vm4393, %v4410, %v4412
        %v4414 = vrot.slane %v4335, 1
        %v4415 = vrot.slane %v4338, 1
        %v4416 = vsel %vm4393, %v4414, %v4415
        %v4417 = vrot.slane %v4341, 1
        %v4418 = vsel %vm4393, %v4415, %v4417
        %v4419 = vrot.slane %v4344, 1
        %v4420 = vrot.slane %v4347, 1
        %v4421 = vsel %vm4393, %v4419, %v4420
        %v4422 = vrot.slane %v4350, 1
        %v4423 = vsel %vm4393, %v4420, %v4422
        %v4424 = vrot.slane %v4353, 1
        %v4425 = vrot.slane %v4356, 1
        %v4426 = vsel %vm4393, %v4424, %v4425
        %v4427 = vrot.slane %v4359, 1
        %v4428 = vsel %vm4393, %v4425, %v4427
        %v4429 = vrot.slane %v4362, 1
        %v4430 = vrot.slane %v4365, 1
        %v4431 = vsel %vm4393, %v4429, %v4430
        %v4432 = vrot.slane %v4368, 1
        %v4433 = vsel %vm4393, %v4430, %v4432
        %v4450 = vadd.f32 %v4243, %v4396
        %v4451 = vadd.f32 %v4244, %v4398
        %v4452 = vadd.f32 %v4245, %v4401
        %v4453 = vadd.f32 %v4246, %v4403
        %v4454 = vadd.f32 %v4247, %v4406
        %v4455 = vadd.f32 %v4248, %v4408
        %v4456 = vadd.f32 %v4249, %v4411
        %v4457 = vadd.f32 %v4250, %v4413
        %v4458 = vadd.f32 %v4251, %v4416
        %v4459 = vadd.f32 %v4252, %v4418
        %v4460 = vadd.f32 %v4253, %v4421
        %v4461 = vadd.f32 %v4254, %v4423
        %v4462 = vadd.f32 %v4255, %v4426
        %v4463 = vadd.f32 %v4256, %v4428
        %v4464 = vadd.f32 %v4257, %v4431
        %v4465 = vadd.f32 %v4258, %v4433
        %v4466 = vlaneseq
        %v4467 = vshrl.u32 %v4466, 7
        %v4468 = vsub.s32 2, %v4467
        %v4469 = vrot.slane %v4033, %v4468
        %v4470 = vmul.f32 %v4159, %v4469
        %v4471 = vmul.f32 %v4160, %v4469
        %v4472 = vmul.f32 %v4259, %v4469
        %v4473 = vmul.f32 %v4161, %v4469
        %v4474 = vmul.f32 %v4162, %v4469
        %v4475 = vmul.f32 %v4260, %v4469
        %v4476 = vmul.f32 %v4163, %v4469
        %v4477 = vmul.f32 %v4164, %v4469
        %v4478 = vmul.f32 %v4261, %v4469
        %v4479 = vmul.f32 %v4165, %v4469
        %v4480 = vmul.f32 %v4166, %v4469
        %v4481 = vmul.f32 %v4262, %v4469
        %v4482 = vmul.f32 %v4167, %v4469
        %v4483 = vmul.f32 %v4168, %v4469
        %v4484 = vmul.f32 %v4263, %v4469
        %v4485 = vmul.f32 %v4169, %v4469
        %v4486 = vmul.f32 %v4170, %v4469
        %v4487 = vmul.f32 %v4264, %v4469
        %v4488 = vmul.f32 %v4171, %v4469
        %v4489 = vmul.f32 %v4172, %v4469
        %v4490 = vmul.f32 %v4265, %v4469
        %v4491 = vmul.f32 %v4173, %v4469
        %v4492 = vmul.f32 %v4174, %v4469
        %v4493 = vmul.f32 %v4266, %v4469
        %vm4494 = vcmask 523266
        %v4495 = vsel %vm4494, %v4470, 0.0
        %4496 = vadd.xlane.f32.xlu0 %v4495
        %v4497 = vpop.xlane.xlu0 %4496
        %v4498 = vsel %vm471, %v4471, 0.0
        %4499 = vadd.xlane.f32.xlu0 %v4498
        %v4500 = vpop.xlane.xlu0 %4499
        %vm4501 = vcmask 517120
        %v4502 = vsel %vm4501, %v4472, 0.0
        %4503 = vadd.xlane.f32.xlu0 %v4502
        %v4504 = vpop.xlane.xlu0 %4503
        %v4505 = vsel %vm4494, %v4473, 0.0
        %4506 = vadd.xlane.f32.xlu0 %v4505
        %v4507 = vpop.xlane.xlu0 %4506
        %v4508 = vsel %vm471, %v4474, 0.0
        %4509 = vadd.xlane.f32.xlu0 %v4508
        %v4510 = vpop.xlane.xlu0 %4509
        %v4511 = vsel %vm4501, %v4475, 0.0
        %4512 = vadd.xlane.f32.xlu0 %v4511
        %v4513 = vpop.xlane.xlu0 %4512
        %v4514 = vsel %vm4494, %v4476, 0.0
        %4515 = vadd.xlane.f32.xlu0 %v4514
        %v4516 = vpop.xlane.xlu0 %4515
        %v4517 = vsel %vm471, %v4477, 0.0
        %4518 = vadd.xlane.f32.xlu0 %v4517
        %v4519 = vpop.xlane.xlu0 %4518
        %v4520 = vsel %vm4501, %v4478, 0.0
        %4521 = vadd.xlane.f32.xlu0 %v4520
        %v4522 = vpop.xlane.xlu0 %4521
        %v4523 = vsel %vm4494, %v4479, 0.0
        %4524 = vadd.xlane.f32.xlu0 %v4523
        %v4525 = vpop.xlane.xlu0 %4524
        %v4526 = vsel %vm471, %v4480, 0.0
        %4527 = vadd.xlane.f32.xlu0 %v4526
        %v4528 = vpop.xlane.xlu0 %4527
        %v4529 = vsel %vm4501, %v4481, 0.0
        %4530 = vadd.xlane.f32.xlu0 %v4529
        %v4531 = vpop.xlane.xlu0 %4530
        %v4532 = vsel %vm4494, %v4482, 0.0
        %4533 = vadd.xlane.f32.xlu0 %v4532
        %v4534 = vpop.xlane.xlu0 %4533
        %v4535 = vsel %vm471, %v4483, 0.0
        %4536 = vadd.xlane.f32.xlu0 %v4535
        %v4537 = vpop.xlane.xlu0 %4536
        %v4538 = vsel %vm4501, %v4484, 0.0
        %4539 = vadd.xlane.f32.xlu0 %v4538
        %v4540 = vpop.xlane.xlu0 %4539
        %v4541 = vsel %vm4494, %v4485, 0.0
        %4542 = vadd.xlane.f32.xlu0 %v4541
        %v4543 = vpop.xlane.xlu0 %4542
        %v4544 = vsel %vm471, %v4486, 0.0
        %4545 = vadd.xlane.f32.xlu0 %v4544
        %v4546 = vpop.xlane.xlu0 %4545
        %v4547 = vsel %vm4501, %v4487, 0.0
        %4548 = vadd.xlane.f32.xlu0 %v4547
        %v4549 = vpop.xlane.xlu0 %4548
        %v4550 = vsel %vm4494, %v4488, 0.0
        %4551 = vadd.xlane.f32.xlu0 %v4550
        %v4552 = vpop.xlane.xlu0 %4551
        %v4553 = vsel %vm471, %v4489, 0.0
        %4554 = vadd.xlane.f32.xlu0 %v4553
        %v4555 = vpop.xlane.xlu0 %4554
        %v4556 = vsel %vm4501, %v4490, 0.0
        %4557 = vadd.xlane.f32.xlu0 %v4556
        %v4558 = vpop.xlane.xlu0 %4557
        %v4559 = vsel %vm4494, %v4491, 0.0
        %4560 = vadd.xlane.f32.xlu0 %v4559
        %v4561 = vpop.xlane.xlu0 %4560
        %v4562 = vsel %vm471, %v4492, 0.0
        %4563 = vadd.xlane.f32.xlu0 %v4562
        %v4564 = vpop.xlane.xlu0 %4563
        %v4565 = vsel %vm4501, %v4493, 0.0
        %4566 = vadd.xlane.f32.xlu0 %v4565
        %v4567 = vpop.xlane.xlu0 %4566
        %vm4592 = vcmask 1045504
        %v4593 = vrot.slane %v4497, 2
        %v4594 = vrot.slane %v4500, 2
        %v4595 = vsel %vm4592, %v4593, %v4594
        %v4596 = vrot.slane %v4504, 2
        %v4597 = vsel %vm4592, %v4594, %v4596
        %v4598 = vrot.slane %v4507, 2
        %v4599 = vrot.slane %v4510, 2
        %v4600 = vsel %vm4592, %v4598, %v4599
        %v4601 = vrot.slane %v4513, 2
        %v4602 = vsel %vm4592, %v4599, %v4601
        %v4603 = vrot.slane %v4516, 2
        %v4604 = vrot.slane %v4519, 2
        %v4605 = vsel %vm4592, %v4603, %v4604
        %v4606 = vrot.slane %v4522, 2
        %v4607 = vsel %vm4592, %v4604, %v4606
        %v4608 = vrot.slane %v4525, 2
        %v4609 = vrot.slane %v4528, 2
        %v4610 = vsel %vm4592, %v4608, %v4609
        %v4611 = vrot.slane %v4531, 2
        %v4612 = vsel %vm4592, %v4609, %v4611
        %v4613 = vrot.slane %v4534, 2
        %v4614 = vrot.slane %v4537, 2
        %v4615 = vsel %vm4592, %v4613, %v4614
        %v4616 = vrot.slane %v4540, 2
        %v4617 = vsel %vm4592, %v4614, %v4616
        %v4618 = vrot.slane %v4543, 2
        %v4619 = vrot.slane %v4546, 2
        %v4620 = vsel %vm4592, %v4618, %v4619
        %v4621 = vrot.slane %v4549, 2
        %v4622 = vsel %vm4592, %v4619, %v4621
        %v4623 = vrot.slane %v4552, 2
        %v4624 = vrot.slane %v4555, 2
        %v4625 = vsel %vm4592, %v4623, %v4624
        %v4626 = vrot.slane %v4558, 2
        %v4627 = vsel %vm4592, %v4624, %v4626
        %v4628 = vrot.slane %v4561, 2
        %v4629 = vrot.slane %v4564, 2
        %v4630 = vsel %vm4592, %v4628, %v4629
        %v4631 = vrot.slane %v4567, 2
        %v4632 = vsel %vm4592, %v4629, %v4631
        %v4649 = vadd.f32 %v4450, %v4595
        %v4650 = vadd.f32 %v4451, %v4597
        %v4651 = vadd.f32 %v4452, %v4600
        %v4652 = vadd.f32 %v4453, %v4602
        %v4653 = vadd.f32 %v4454, %v4605
        %v4654 = vadd.f32 %v4455, %v4607
        %v4655 = vadd.f32 %v4456, %v4610
        %v4656 = vadd.f32 %v4457, %v4612
        %v4657 = vadd.f32 %v4458, %v4615
        %v4658 = vadd.f32 %v4459, %v4617
        %v4659 = vadd.f32 %v4460, %v4620
        %v4660 = vadd.f32 %v4461, %v4622
        %v4661 = vadd.f32 %v4462, %v4625
        %v4662 = vadd.f32 %v4463, %v4627
        %v4663 = vadd.f32 %v4464, %v4630
        %v4664 = vadd.f32 %v4465, %v4632
        %v4665 = vunpack.c.l.bf16 %v4147
        %v4666 = vunpack.c.h.bf16 %v4147
        %v4667 = vlaneseq
        %v4668 = vshrl.u32 %v4667, 7
        %v4669 = vsub.s32 0, %v4668
        %v4670 = vrot.slane %v4034, %v4669
        %v4671 = vmul.f32 %v4161, %v4670
        %v4672 = vmul.f32 %v4162, %v4670
        %v4673 = vmul.f32 %v4163, %v4670
        %v4674 = vmul.f32 %v4164, %v4670
        %v4675 = vmul.f32 %v4165, %v4670
        %v4676 = vmul.f32 %v4166, %v4670
        %v4677 = vmul.f32 %v4167, %v4670
        %v4678 = vmul.f32 %v4168, %v4670
        %v4679 = vmul.f32 %v4169, %v4670
        %v4680 = vmul.f32 %v4170, %v4670
        %v4681 = vmul.f32 %v4171, %v4670
        %v4682 = vmul.f32 %v4172, %v4670
        %v4683 = vmul.f32 %v4173, %v4670
        %v4684 = vmul.f32 %v4174, %v4670
        %v4685 = vmul.f32 %v4665, %v4670
        %v4686 = vmul.f32 %v4666, %v4670
        %v4687 = vsel %vm471, %v4671, 0.0
        %4688 = vadd.xlane.f32.xlu0 %v4687
        %v4689 = vpop.xlane.xlu0 %4688
        %v4690 = vsel %vm471, %v4672, 0.0
        %4691 = vadd.xlane.f32.xlu0 %v4690
        %v4692 = vpop.xlane.xlu0 %4691
        %v4693 = vsel %vm471, %v4673, 0.0
        %4694 = vadd.xlane.f32.xlu0 %v4693
        %v4695 = vpop.xlane.xlu0 %4694
        %v4696 = vsel %vm471, %v4674, 0.0
        %4697 = vadd.xlane.f32.xlu0 %v4696
        %v4698 = vpop.xlane.xlu0 %4697
        %v4699 = vsel %vm471, %v4675, 0.0
        %4700 = vadd.xlane.f32.xlu0 %v4699
        %v4701 = vpop.xlane.xlu0 %4700
        %v4702 = vsel %vm471, %v4676, 0.0
        %4703 = vadd.xlane.f32.xlu0 %v4702
        %v4704 = vpop.xlane.xlu0 %4703
        %v4705 = vsel %vm471, %v4677, 0.0
        %4706 = vadd.xlane.f32.xlu0 %v4705
        %v4707 = vpop.xlane.xlu0 %4706
        %v4708 = vsel %vm471, %v4678, 0.0
        %4709 = vadd.xlane.f32.xlu0 %v4708
        %v4710 = vpop.xlane.xlu0 %4709
        %v4711 = vsel %vm471, %v4679, 0.0
        %4712 = vadd.xlane.f32.xlu0 %v4711
        %v4713 = vpop.xlane.xlu0 %4712
        %v4714 = vsel %vm471, %v4680, 0.0
        %4715 = vadd.xlane.f32.xlu0 %v4714
        %v4716 = vpop.xlane.xlu0 %4715
        %v4717 = vsel %vm471, %v4681, 0.0
        %4718 = vadd.xlane.f32.xlu0 %v4717
        %v4719 = vpop.xlane.xlu0 %4718
        %v4720 = vsel %vm471, %v4682, 0.0
        %4721 = vadd.xlane.f32.xlu0 %v4720
        %v4722 = vpop.xlane.xlu0 %4721
        %v4723 = vsel %vm471, %v4683, 0.0
        %4724 = vadd.xlane.f32.xlu0 %v4723
        %v4725 = vpop.xlane.xlu0 %4724
        %v4726 = vsel %vm471, %v4684, 0.0
        %4727 = vadd.xlane.f32.xlu0 %v4726
        %v4728 = vpop.xlane.xlu0 %4727
        %v4729 = vsel %vm471, %v4685, 0.0
        %4730 = vadd.xlane.f32.xlu0 %v4729
        %v4731 = vpop.xlane.xlu0 %4730
        %v4732 = vsel %vm471, %v4686, 0.0
        %4733 = vadd.xlane.f32.xlu0 %v4732
        %v4734 = vpop.xlane.xlu0 %4733
        %v4735 = vadd.f32 %v4649, %v4689
        %v4736 = vadd.f32 %v4650, %v4692
        %v4737 = vadd.f32 %v4651, %v4695
        %v4738 = vadd.f32 %v4652, %v4698
        %v4739 = vadd.f32 %v4653, %v4701
        %v4740 = vadd.f32 %v4654, %v4704
        %v4741 = vadd.f32 %v4655, %v4707
        %v4742 = vadd.f32 %v4656, %v4710
        %v4743 = vadd.f32 %v4657, %v4713
        %v4744 = vadd.f32 %v4658, %v4716
        %v4745 = vadd.f32 %v4659, %v4719
        %v4746 = vadd.f32 %v4660, %v4722
        %v4747 = vadd.f32 %v4661, %v4725
        %v4748 = vadd.f32 %v4662, %v4728
        %v4749 = vadd.f32 %v4663, %v4731
        %v4750 = vadd.f32 %v4664, %v4734
        %v4751 = vunpack.c.l.bf16 %v4157
        %v4752 = vlaneseq
        %v4753 = vshrl.u32 %v4752, 7
        %v4754 = vsub.s32 1, %v4753
        %v4755 = vrot.slane %v4034, %v4754
        %v4756 = vmul.f32 %v4161, %v4755
        %v4757 = vmul.f32 %v4162, %v4755
        %v4758 = vmul.f32 %v4260, %v4755
        %v4759 = vmul.f32 %v4163, %v4755
        %v4760 = vmul.f32 %v4164, %v4755
        %v4761 = vmul.f32 %v4261, %v4755
        %v4762 = vmul.f32 %v4165, %v4755
        %v4763 = vmul.f32 %v4166, %v4755
        %v4764 = vmul.f32 %v4262, %v4755
        %v4765 = vmul.f32 %v4167, %v4755
        %v4766 = vmul.f32 %v4168, %v4755
        %v4767 = vmul.f32 %v4263, %v4755
        %v4768 = vmul.f32 %v4169, %v4755
        %v4769 = vmul.f32 %v4170, %v4755
        %v4770 = vmul.f32 %v4264, %v4755
        %v4771 = vmul.f32 %v4171, %v4755
        %v4772 = vmul.f32 %v4172, %v4755
        %v4773 = vmul.f32 %v4265, %v4755
        %v4774 = vmul.f32 %v4173, %v4755
        %v4775 = vmul.f32 %v4174, %v4755
        %v4776 = vmul.f32 %v4266, %v4755
        %v4777 = vmul.f32 %v4665, %v4755
        %v4778 = vmul.f32 %v4666, %v4755
        %v4779 = vmul.f32 %v4751, %v4755
        %v4780 = vsel %vm4295, %v4756, 0.0
        %4781 = vadd.xlane.f32.xlu0 %v4780
        %v4782 = vpop.xlane.xlu0 %4781
        %v4783 = vsel %vm471, %v4757, 0.0
        %4784 = vadd.xlane.f32.xlu0 %v4783
        %v4785 = vpop.xlane.xlu0 %4784
        %v4786 = vsel %vm4302, %v4758, 0.0
        %4787 = vadd.xlane.f32.xlu0 %v4786
        %v4788 = vpop.xlane.xlu0 %4787
        %v4789 = vsel %vm4295, %v4759, 0.0
        %4790 = vadd.xlane.f32.xlu0 %v4789
        %v4791 = vpop.xlane.xlu0 %4790
        %v4792 = vsel %vm471, %v4760, 0.0
        %4793 = vadd.xlane.f32.xlu0 %v4792
        %v4794 = vpop.xlane.xlu0 %4793
        %v4795 = vsel %vm4302, %v4761, 0.0
        %4796 = vadd.xlane.f32.xlu0 %v4795
        %v4797 = vpop.xlane.xlu0 %4796
        %v4798 = vsel %vm4295, %v4762, 0.0
        %4799 = vadd.xlane.f32.xlu0 %v4798
        %v4800 = vpop.xlane.xlu0 %4799
        %v4801 = vsel %vm471, %v4763, 0.0
        %4802 = vadd.xlane.f32.xlu0 %v4801
        %v4803 = vpop.xlane.xlu0 %4802
        %v4804 = vsel %vm4302, %v4764, 0.0
        %4805 = vadd.xlane.f32.xlu0 %v4804
        %v4806 = vpop.xlane.xlu0 %4805
        %v4807 = vsel %vm4295, %v4765, 0.0
        %4808 = vadd.xlane.f32.xlu0 %v4807
        %v4809 = vpop.xlane.xlu0 %4808
        %v4810 = vsel %vm471, %v4766, 0.0
        %4811 = vadd.xlane.f32.xlu0 %v4810
        %v4812 = vpop.xlane.xlu0 %4811
        %v4813 = vsel %vm4302, %v4767, 0.0
        %4814 = vadd.xlane.f32.xlu0 %v4813
        %v4815 = vpop.xlane.xlu0 %4814
        %v4816 = vsel %vm4295, %v4768, 0.0
        %4817 = vadd.xlane.f32.xlu0 %v4816
        %v4818 = vpop.xlane.xlu0 %4817
        %v4819 = vsel %vm471, %v4769, 0.0
        %4820 = vadd.xlane.f32.xlu0 %v4819
        %v4821 = vpop.xlane.xlu0 %4820
        %v4822 = vsel %vm4302, %v4770, 0.0
        %4823 = vadd.xlane.f32.xlu0 %v4822
        %v4824 = vpop.xlane.xlu0 %4823
        %v4825 = vsel %vm4295, %v4771, 0.0
        %4826 = vadd.xlane.f32.xlu0 %v4825
        %v4827 = vpop.xlane.xlu0 %4826
        %v4828 = vsel %vm471, %v4772, 0.0
        %4829 = vadd.xlane.f32.xlu0 %v4828
        %v4830 = vpop.xlane.xlu0 %4829
        %v4831 = vsel %vm4302, %v4773, 0.0
        %4832 = vadd.xlane.f32.xlu0 %v4831
        %v4833 = vpop.xlane.xlu0 %4832
        %v4834 = vsel %vm4295, %v4774, 0.0
        %4835 = vadd.xlane.f32.xlu0 %v4834
        %v4836 = vpop.xlane.xlu0 %4835
        %v4837 = vsel %vm471, %v4775, 0.0
        %4838 = vadd.xlane.f32.xlu0 %v4837
        %v4839 = vpop.xlane.xlu0 %4838
        %v4840 = vsel %vm4302, %v4776, 0.0
        %4841 = vadd.xlane.f32.xlu0 %v4840
        %v4842 = vpop.xlane.xlu0 %4841
        %v4843 = vsel %vm4295, %v4777, 0.0
        %4844 = vadd.xlane.f32.xlu0 %v4843
        %v4845 = vpop.xlane.xlu0 %4844
        %v4846 = vsel %vm471, %v4778, 0.0
        %4847 = vadd.xlane.f32.xlu0 %v4846
        %v4848 = vpop.xlane.xlu0 %4847
        %v4849 = vsel %vm4302, %v4779, 0.0
        %4850 = vadd.xlane.f32.xlu0 %v4849
        %v4851 = vpop.xlane.xlu0 %4850
        %v4876 = vrot.slane %v4782, 1
        %v4877 = vrot.slane %v4785, 1
        %v4878 = vsel %vm4393, %v4876, %v4877
        %v4879 = vrot.slane %v4788, 1
        %v4880 = vsel %vm4393, %v4877, %v4879
        %v4881 = vrot.slane %v4791, 1
        %v4882 = vrot.slane %v4794, 1
        %v4883 = vsel %vm4393, %v4881, %v4882
        %v4884 = vrot.slane %v4797, 1
        %v4885 = vsel %vm4393, %v4882, %v4884
        %v4886 = vrot.slane %v4800, 1
        %v4887 = vrot.slane %v4803, 1
        %v4888 = vsel %vm4393, %v4886, %v4887
        %v4889 = vrot.slane %v4806, 1
        %v4890 = vsel %vm4393, %v4887, %v4889
        %v4891 = vrot.slane %v4809, 1
        %v4892 = vrot.slane %v4812, 1
        %v4893 = vsel %vm4393, %v4891, %v4892
        %v4894 = vrot.slane %v4815, 1
        %v4895 = vsel %vm4393, %v4892, %v4894
        %v4896 = vrot.slane %v4818, 1
        %v4897 = vrot.slane %v4821, 1
        %v4898 = vsel %vm4393, %v4896, %v4897
        %v4899 = vrot.slane %v4824, 1
        %v4900 = vsel %vm4393, %v4897, %v4899
        %v4901 = vrot.slane %v4827, 1
        %v4902 = vrot.slane %v4830, 1
        %v4903 = vsel %vm4393, %v4901, %v4902
        %v4904 = vrot.slane %v4833, 1
        %v4905 = vsel %vm4393, %v4902, %v4904
        %v4906 = vrot.slane %v4836, 1
        %v4907 = vrot.slane %v4839, 1
        %v4908 = vsel %vm4393, %v4906, %v4907
        %v4909 = vrot.slane %v4842, 1
        %v4910 = vsel %vm4393, %v4907, %v4909
        %v4911 = vrot.slane %v4845, 1
        %v4912 = vrot.slane %v4848, 1
        %v4913 = vsel %vm4393, %v4911, %v4912
        %v4914 = vrot.slane %v4851, 1
        %v4915 = vsel %vm4393, %v4912, %v4914
        %v4932 = vadd.f32 %v4735, %v4878
        %v4933 = vadd.f32 %v4736, %v4880
        %v4934 = vadd.f32 %v4737, %v4883
        %v4935 = vadd.f32 %v4738, %v4885
        %v4936 = vadd.f32 %v4739, %v4888
        %v4937 = vadd.f32 %v4740, %v4890
        %v4938 = vadd.f32 %v4741, %v4893
        %v4939 = vadd.f32 %v4742, %v4895
        %v4940 = vadd.f32 %v4743, %v4898
        %v4941 = vadd.f32 %v4744, %v4900
        %v4942 = vadd.f32 %v4745, %v4903
        %v4943 = vadd.f32 %v4746, %v4905
        %v4944 = vadd.f32 %v4747, %v4908
        %v4945 = vadd.f32 %v4748, %v4910
        %v4946 = vadd.f32 %v4749, %v4913
        %v4947 = vadd.f32 %v4750, %v4915
        %v4948 = vlaneseq
        %v4949 = vshrl.u32 %v4948, 7
        %v4950 = vsub.s32 2, %v4949
        %v4951 = vrot.slane %v4034, %v4950
        %v4952 = vmul.f32 %v4161, %v4951
        %v4953 = vmul.f32 %v4162, %v4951
        %v4954 = vmul.f32 %v4260, %v4951
        %v4955 = vmul.f32 %v4163, %v4951
        %v4956 = vmul.f32 %v4164, %v4951
        %v4957 = vmul.f32 %v4261, %v4951
        %v4958 = vmul.f32 %v4165, %v4951
        %v4959 = vmul.f32 %v4166, %v4951
        %v4960 = vmul.f32 %v4262, %v4951
        %v4961 = vmul.f32 %v4167, %v4951
        %v4962 = vmul.f32 %v4168, %v4951
        %v4963 = vmul.f32 %v4263, %v4951
        %v4964 = vmul.f32 %v4169, %v4951
        %v4965 = vmul.f32 %v4170, %v4951
        %v4966 = vmul.f32 %v4264, %v4951
        %v4967 = vmul.f32 %v4171, %v4951
        %v4968 = vmul.f32 %v4172, %v4951
        %v4969 = vmul.f32 %v4265, %v4951
        %v4970 = vmul.f32 %v4173, %v4951
        %v4971 = vmul.f32 %v4174, %v4951
        %v4972 = vmul.f32 %v4266, %v4951
        %v4973 = vmul.f32 %v4665, %v4951
        %v4974 = vmul.f32 %v4666, %v4951
        %v4975 = vmul.f32 %v4751, %v4951
        %v4976 = vsel %vm4494, %v4952, 0.0
        %4977 = vadd.xlane.f32.xlu0 %v4976
        %v4978 = vpop.xlane.xlu0 %4977
        %v4979 = vsel %vm471, %v4953, 0.0
        %4980 = vadd.xlane.f32.xlu0 %v4979
        %v4981 = vpop.xlane.xlu0 %4980
        %v4982 = vsel %vm4501, %v4954, 0.0
        %4983 = vadd.xlane.f32.xlu0 %v4982
        %v4984 = vpop.xlane.xlu0 %4983
        %v4985 = vsel %vm4494, %v4955, 0.0
        %4986 = vadd.xlane.f32.xlu0 %v4985
        %v4987 = vpop.xlane.xlu0 %4986
        %v4988 = vsel %vm471, %v4956, 0.0
        %4989 = vadd.xlane.f32.xlu0 %v4988
        %v4990 = vpop.xlane.xlu0 %4989
        %v4991 = vsel %vm4501, %v4957, 0.0
        %4992 = vadd.xlane.f32.xlu0 %v4991
        %v4993 = vpop.xlane.xlu0 %4992
        %v4994 = vsel %vm4494, %v4958, 0.0
        %4995 = vadd.xlane.f32.xlu0 %v4994
        %v4996 = vpop.xlane.xlu0 %4995
        %v4997 = vsel %vm471, %v4959, 0.0
        %4998 = vadd.xlane.f32.xlu0 %v4997
        %v4999 = vpop.xlane.xlu0 %4998
        %v5000 = vsel %vm4501, %v4960, 0.0
        %5001 = vadd.xlane.f32.xlu0 %v5000
        %v5002 = vpop.xlane.xlu0 %5001
        %v5003 = vsel %vm4494, %v4961, 0.0
        %5004 = vadd.xlane.f32.xlu0 %v5003
        %v5005 = vpop.xlane.xlu0 %5004
        %v5006 = vsel %vm471, %v4962, 0.0
        %5007 = vadd.xlane.f32.xlu0 %v5006
        %v5008 = vpop.xlane.xlu0 %5007
        %v5009 = vsel %vm4501, %v4963, 0.0
        %5010 = vadd.xlane.f32.xlu0 %v5009
        %v5011 = vpop.xlane.xlu0 %5010
        %v5012 = vsel %vm4494, %v4964, 0.0
        %5013 = vadd.xlane.f32.xlu0 %v5012
        %v5014 = vpop.xlane.xlu0 %5013
        %v5015 = vsel %vm471, %v4965, 0.0
        %5016 = vadd.xlane.f32.xlu0 %v5015
        %v5017 = vpop.xlane.xlu0 %5016
        %v5018 = vsel %vm4501, %v4966, 0.0
        %5019 = vadd.xlane.f32.xlu0 %v5018
        %v5020 = vpop.xlane.xlu0 %5019
        %v5021 = vsel %vm4494, %v4967, 0.0
        %5022 = vadd.xlane.f32.xlu0 %v5021
        %v5023 = vpop.xlane.xlu0 %5022
        %v5024 = vsel %vm471, %v4968, 0.0
        %5025 = vadd.xlane.f32.xlu0 %v5024
        %v5026 = vpop.xlane.xlu0 %5025
        %v5027 = vsel %vm4501, %v4969, 0.0
        %5028 = vadd.xlane.f32.xlu0 %v5027
        %v5029 = vpop.xlane.xlu0 %5028
        %v5030 = vsel %vm4494, %v4970, 0.0
        %5031 = vadd.xlane.f32.xlu0 %v5030
        %v5032 = vpop.xlane.xlu0 %5031
        %v5033 = vsel %vm471, %v4971, 0.0
        %5034 = vadd.xlane.f32.xlu0 %v5033
        %v5035 = vpop.xlane.xlu0 %5034
        %v5036 = vsel %vm4501, %v4972, 0.0
        %5037 = vadd.xlane.f32.xlu0 %v5036
        %v5038 = vpop.xlane.xlu0 %5037
        %v5039 = vsel %vm4494, %v4973, 0.0
        %5040 = vadd.xlane.f32.xlu0 %v5039
        %v5041 = vpop.xlane.xlu0 %5040
        %v5042 = vsel %vm471, %v4974, 0.0
        %5043 = vadd.xlane.f32.xlu0 %v5042
        %v5044 = vpop.xlane.xlu0 %5043
        %v5045 = vsel %vm4501, %v4975, 0.0
        %5046 = vadd.xlane.f32.xlu0 %v5045
        %v5047 = vpop.xlane.xlu0 %5046
        %v5072 = vrot.slane %v4978, 2
        %v5073 = vrot.slane %v4981, 2
        %v5074 = vsel %vm4592, %v5072, %v5073
        %v5075 = vrot.slane %v4984, 2
        %v5076 = vsel %vm4592, %v5073, %v5075
        %v5077 = vrot.slane %v4987, 2
        %v5078 = vrot.slane %v4990, 2
        %v5079 = vsel %vm4592, %v5077, %v5078
        %v5080 = vrot.slane %v4993, 2
        %v5081 = vsel %vm4592, %v5078, %v5080
        %v5082 = vrot.slane %v4996, 2
        %v5083 = vrot.slane %v4999, 2
        %v5084 = vsel %vm4592, %v5082, %v5083
        %v5085 = vrot.slane %v5002, 2
        %v5086 = vsel %vm4592, %v5083, %v5085
        %v5087 = vrot.slane %v5005, 2
        %v5088 = vrot.slane %v5008, 2
        %v5089 = vsel %vm4592, %v5087, %v5088
        %v5090 = vrot.slane %v5011, 2
        %v5091 = vsel %vm4592, %v5088, %v5090
        %v5092 = vrot.slane %v5014, 2
        %v5093 = vrot.slane %v5017, 2
        %v5094 = vsel %vm4592, %v5092, %v5093
        %v5095 = vrot.slane %v5020, 2
        %v5096 = vsel %vm4592, %v5093, %v5095
        %v5097 = vrot.slane %v5023, 2
        %v5098 = vrot.slane %v5026, 2
        %v5099 = vsel %vm4592, %v5097, %v5098
        %v5100 = vrot.slane %v5029, 2
        %v5101 = vsel %vm4592, %v5098, %v5100
        %v5102 = vrot.slane %v5032, 2
        %v5103 = vrot.slane %v5035, 2
        %v5104 = vsel %vm4592, %v5102, %v5103
        %v5105 = vrot.slane %v5038, 2
        %v5106 = vsel %vm4592, %v5103, %v5105
        %v5107 = vrot.slane %v5041, 2
        %v5108 = vrot.slane %v5044, 2
        %v5109 = vsel %vm4592, %v5107, %v5108
        %v5110 = vrot.slane %v5047, 2
        %v5111 = vsel %vm4592, %v5108, %v5110
        %v5128 = vadd.f32 %v4932, %v5074
        %v5129 = vadd.f32 %v4933, %v5076
        %v5130 = vadd.f32 %v4934, %v5079
        %v5131 = vadd.f32 %v4935, %v5081
        %v5132 = vadd.f32 %v4936, %v5084
        %v5133 = vadd.f32 %v4937, %v5086
        %v5134 = vadd.f32 %v4938, %v5089
        %v5135 = vadd.f32 %v4939, %v5091
        %v5136 = vadd.f32 %v4940, %v5094
        %v5137 = vadd.f32 %v4941, %v5096
        %v5138 = vadd.f32 %v4942, %v5099
        %v5139 = vadd.f32 %v4943, %v5101
        %v5140 = vadd.f32 %v4944, %v5104
        %v5141 = vadd.f32 %v4945, %v5106
        %v5142 = vadd.f32 %v4946, %v5109
        %v5143 = vadd.f32 %v4947, %v5111
        %v5144 = vunpack.c.l.bf16 %v4148
        %v5145 = vunpack.c.h.bf16 %v4148
        %v5146 = vlaneseq
        %v5147 = vshrl.u32 %v5146, 7
        %v5148 = vsub.s32 0, %v5147
        %v5149 = vrot.slane %v4035, %v5148
        %v5150 = vmul.f32 %v4163, %v5149
        %v5151 = vmul.f32 %v4164, %v5149
        %v5152 = vmul.f32 %v4165, %v5149
        %v5153 = vmul.f32 %v4166, %v5149
        %v5154 = vmul.f32 %v4167, %v5149
        %v5155 = vmul.f32 %v4168, %v5149
        %v5156 = vmul.f32 %v4169, %v5149
        %v5157 = vmul.f32 %v4170, %v5149
        %v5158 = vmul.f32 %v4171, %v5149
        %v5159 = vmul.f32 %v4172, %v5149
        %v5160 = vmul.f32 %v4173, %v5149
        %v5161 = vmul.f32 %v4174, %v5149
        %v5162 = vmul.f32 %v4665, %v5149
        %v5163 = vmul.f32 %v4666, %v5149
        %v5164 = vmul.f32 %v5144, %v5149
        %v5165 = vmul.f32 %v5145, %v5149
        %v5166 = vsel %vm471, %v5150, 0.0
        %5167 = vadd.xlane.f32.xlu0 %v5166
        %v5168 = vpop.xlane.xlu0 %5167
        %v5169 = vsel %vm471, %v5151, 0.0
        %5170 = vadd.xlane.f32.xlu0 %v5169
        %v5171 = vpop.xlane.xlu0 %5170
        %v5172 = vsel %vm471, %v5152, 0.0
        %5173 = vadd.xlane.f32.xlu0 %v5172
        %v5174 = vpop.xlane.xlu0 %5173
        %v5175 = vsel %vm471, %v5153, 0.0
        %5176 = vadd.xlane.f32.xlu0 %v5175
        %v5177 = vpop.xlane.xlu0 %5176
        %v5178 = vsel %vm471, %v5154, 0.0
        %5179 = vadd.xlane.f32.xlu0 %v5178
        %v5180 = vpop.xlane.xlu0 %5179
        %v5181 = vsel %vm471, %v5155, 0.0
        %5182 = vadd.xlane.f32.xlu0 %v5181
        %v5183 = vpop.xlane.xlu0 %5182
        %v5184 = vsel %vm471, %v5156, 0.0
        %5185 = vadd.xlane.f32.xlu0 %v5184
        %v5186 = vpop.xlane.xlu0 %5185
        %v5187 = vsel %vm471, %v5157, 0.0
        %5188 = vadd.xlane.f32.xlu0 %v5187
        %v5189 = vpop.xlane.xlu0 %5188
        %v5190 = vsel %vm471, %v5158, 0.0
        %5191 = vadd.xlane.f32.xlu0 %v5190
        %v5192 = vpop.xlane.xlu0 %5191
        %v5193 = vsel %vm471, %v5159, 0.0
        %5194 = vadd.xlane.f32.xlu0 %v5193
        %v5195 = vpop.xlane.xlu0 %5194
        %v5196 = vsel %vm471, %v5160, 0.0
        %5197 = vadd.xlane.f32.xlu0 %v5196
        %v5198 = vpop.xlane.xlu0 %5197
        %v5199 = vsel %vm471, %v5161, 0.0
        %5200 = vadd.xlane.f32.xlu0 %v5199
        %v5201 = vpop.xlane.xlu0 %5200
        %v5202 = vsel %vm471, %v5162, 0.0
        %5203 = vadd.xlane.f32.xlu0 %v5202
        %v5204 = vpop.xlane.xlu0 %5203
        %v5205 = vsel %vm471, %v5163, 0.0
        %5206 = vadd.xlane.f32.xlu0 %v5205
        %v5207 = vpop.xlane.xlu0 %5206
        %v5208 = vsel %vm471, %v5164, 0.0
        %5209 = vadd.xlane.f32.xlu0 %v5208
        %v5210 = vpop.xlane.xlu0 %5209
        %v5211 = vsel %vm471, %v5165, 0.0
        %5212 = vadd.xlane.f32.xlu0 %v5211
        %v5213 = vpop.xlane.xlu0 %5212
        %v5214 = vadd.f32 %v5128, %v5168
        %v5215 = vadd.f32 %v5129, %v5171
        %v5216 = vadd.f32 %v5130, %v5174
        %v5217 = vadd.f32 %v5131, %v5177
        %v5218 = vadd.f32 %v5132, %v5180
        %v5219 = vadd.f32 %v5133, %v5183
        %v5220 = vadd.f32 %v5134, %v5186
        %v5221 = vadd.f32 %v5135, %v5189
        %v5222 = vadd.f32 %v5136, %v5192
        %v5223 = vadd.f32 %v5137, %v5195
        %v5224 = vadd.f32 %v5138, %v5198
        %v5225 = vadd.f32 %v5139, %v5201
        %v5226 = vadd.f32 %v5140, %v5204
        %v5227 = vadd.f32 %v5141, %v5207
        %v5228 = vadd.f32 %v5142, %v5210
        %v5229 = vadd.f32 %v5143, %v5213
        %v5230 = vunpack.c.l.bf16 %v4158
        %v5231 = vlaneseq
        %v5232 = vshrl.u32 %v5231, 7
        %v5233 = vsub.s32 1, %v5232
        %v5234 = vrot.slane %v4035, %v5233
        %v5235 = vmul.f32 %v4163, %v5234
        %v5236 = vmul.f32 %v4164, %v5234
        %v5237 = vmul.f32 %v4261, %v5234
        %v5238 = vmul.f32 %v4165, %v5234
        %v5239 = vmul.f32 %v4166, %v5234
        %v5240 = vmul.f32 %v4262, %v5234
        %v5241 = vmul.f32 %v4167, %v5234
        %v5242 = vmul.f32 %v4168, %v5234
        %v5243 = vmul.f32 %v4263, %v5234
        %v5244 = vmul.f32 %v4169, %v5234
        %v5245 = vmul.f32 %v4170, %v5234
        %v5246 = vmul.f32 %v4264, %v5234
        %v5247 = vmul.f32 %v4171, %v5234
        %v5248 = vmul.f32 %v4172, %v5234
        %v5249 = vmul.f32 %v4265, %v5234
        %v5250 = vmul.f32 %v4173, %v5234
        %v5251 = vmul.f32 %v4174, %v5234
        %v5252 = vmul.f32 %v4266, %v5234
        %v5253 = vmul.f32 %v4665, %v5234
        %v5254 = vmul.f32 %v4666, %v5234
        %v5255 = vmul.f32 %v4751, %v5234
        %v5256 = vmul.f32 %v5144, %v5234
        %v5257 = vmul.f32 %v5145, %v5234
        %v5258 = vmul.f32 %v5230, %v5234
        %v5259 = vsel %vm4295, %v5235, 0.0
        %5260 = vadd.xlane.f32.xlu0 %v5259
        %v5261 = vpop.xlane.xlu0 %5260
        %v5262 = vsel %vm471, %v5236, 0.0
        %5263 = vadd.xlane.f32.xlu0 %v5262
        %v5264 = vpop.xlane.xlu0 %5263
        %v5265 = vsel %vm4302, %v5237, 0.0
        %5266 = vadd.xlane.f32.xlu0 %v5265
        %v5267 = vpop.xlane.xlu0 %5266
        %v5268 = vsel %vm4295, %v5238, 0.0
        %5269 = vadd.xlane.f32.xlu0 %v5268
        %v5270 = vpop.xlane.xlu0 %5269
        %v5271 = vsel %vm471, %v5239, 0.0
        %5272 = vadd.xlane.f32.xlu0 %v5271
        %v5273 = vpop.xlane.xlu0 %5272
        %v5274 = vsel %vm4302, %v5240, 0.0
        %5275 = vadd.xlane.f32.xlu0 %v5274
        %v5276 = vpop.xlane.xlu0 %5275
        %v5277 = vsel %vm4295, %v5241, 0.0
        %5278 = vadd.xlane.f32.xlu0 %v5277
        %v5279 = vpop.xlane.xlu0 %5278
        %v5280 = vsel %vm471, %v5242, 0.0
        %5281 = vadd.xlane.f32.xlu0 %v5280
        %v5282 = vpop.xlane.xlu0 %5281
        %v5283 = vsel %vm4302, %v5243, 0.0
        %5284 = vadd.xlane.f32.xlu0 %v5283
        %v5285 = vpop.xlane.xlu0 %5284
        %v5286 = vsel %vm4295, %v5244, 0.0
        %5287 = vadd.xlane.f32.xlu0 %v5286
        %v5288 = vpop.xlane.xlu0 %5287
        %v5289 = vsel %vm471, %v5245, 0.0
        %5290 = vadd.xlane.f32.xlu0 %v5289
        %v5291 = vpop.xlane.xlu0 %5290
        %v5292 = vsel %vm4302, %v5246, 0.0
        %5293 = vadd.xlane.f32.xlu0 %v5292
        %v5294 = vpop.xlane.xlu0 %5293
        %v5295 = vsel %vm4295, %v5247, 0.0
        %5296 = vadd.xlane.f32.xlu0 %v5295
        %v5297 = vpop.xlane.xlu0 %5296
        %v5298 = vsel %vm471, %v5248, 0.0
        %5299 = vadd.xlane.f32.xlu0 %v5298
        %v5300 = vpop.xlane.xlu0 %5299
        %v5301 = vsel %vm4302, %v5249, 0.0
        %5302 = vadd.xlane.f32.xlu0 %v5301
        %v5303 = vpop.xlane.xlu0 %5302
        %v5304 = vsel %vm4295, %v5250, 0.0
        %5305 = vadd.xlane.f32.xlu0 %v5304
        %v5306 = vpop.xlane.xlu0 %5305
        %v5307 = vsel %vm471, %v5251, 0.0
        %5308 = vadd.xlane.f32.xlu0 %v5307
        %v5309 = vpop.xlane.xlu0 %5308
        %v5310 = vsel %vm4302, %v5252, 0.0
        %5311 = vadd.xlane.f32.xlu0 %v5310
        %v5312 = vpop.xlane.xlu0 %5311
        %v5313 = vsel %vm4295, %v5253, 0.0
        %5314 = vadd.xlane.f32.xlu0 %v5313
        %v5315 = vpop.xlane.xlu0 %5314
        %v5316 = vsel %vm471, %v5254, 0.0
        %5317 = vadd.xlane.f32.xlu0 %v5316
        %v5318 = vpop.xlane.xlu0 %5317
        %v5319 = vsel %vm4302, %v5255, 0.0
        %5320 = vadd.xlane.f32.xlu0 %v5319
        %v5321 = vpop.xlane.xlu0 %5320
        %v5322 = vsel %vm4295, %v5256, 0.0
        %5323 = vadd.xlane.f32.xlu0 %v5322
        %v5324 = vpop.xlane.xlu0 %5323
        %v5325 = vsel %vm471, %v5257, 0.0
        %5326 = vadd.xlane.f32.xlu0 %v5325
        %v5327 = vpop.xlane.xlu0 %5326
        %v5328 = vsel %vm4302, %v5258, 0.0
        %5329 = vadd.xlane.f32.xlu0 %v5328
        %v5330 = vpop.xlane.xlu0 %5329
        %v5355 = vrot.slane %v5261, 1
        %v5356 = vrot.slane %v5264, 1
        %v5357 = vsel %vm4393, %v5355, %v5356
        %v5358 = vrot.slane %v5267, 1
        %v5359 = vsel %vm4393, %v5356, %v5358
        %v5360 = vrot.slane %v5270, 1
        %v5361 = vrot.slane %v5273, 1
        %v5362 = vsel %vm4393, %v5360, %v5361
        %v5363 = vrot.slane %v5276, 1
        %v5364 = vsel %vm4393, %v5361, %v5363
        %v5365 = vrot.slane %v5279, 1
        %v5366 = vrot.slane %v5282, 1
        %v5367 = vsel %vm4393, %v5365, %v5366
        %v5368 = vrot.slane %v5285, 1
        %v5369 = vsel %vm4393, %v5366, %v5368
        %v5370 = vrot.slane %v5288, 1
        %v5371 = vrot.slane %v5291, 1
        %v5372 = vsel %vm4393, %v5370, %v5371
        %v5373 = vrot.slane %v5294, 1
        %v5374 = vsel %vm4393, %v5371, %v5373
        %v5375 = vrot.slane %v5297, 1
        %v5376 = vrot.slane %v5300, 1
        %v5377 = vsel %vm4393, %v5375, %v5376
        %v5378 = vrot.slane %v5303, 1
        %v5379 = vsel %vm4393, %v5376, %v5378
        %v5380 = vrot.slane %v5306, 1
        %v5381 = vrot.slane %v5309, 1
        %v5382 = vsel %vm4393, %v5380, %v5381
        %v5383 = vrot.slane %v5312, 1
        %v5384 = vsel %vm4393, %v5381, %v5383
        %v5385 = vrot.slane %v5315, 1
        %v5386 = vrot.slane %v5318, 1
        %v5387 = vsel %vm4393, %v5385, %v5386
        %v5388 = vrot.slane %v5321, 1
        %v5389 = vsel %vm4393, %v5386, %v5388
        %v5390 = vrot.slane %v5324, 1
        %v5391 = vrot.slane %v5327, 1
        %v5392 = vsel %vm4393, %v5390, %v5391
        %v5393 = vrot.slane %v5330, 1
        %v5394 = vsel %vm4393, %v5391, %v5393
        %v5411 = vadd.f32 %v5214, %v5357
        %v5412 = vadd.f32 %v5215, %v5359
        %v5413 = vadd.f32 %v5216, %v5362
        %v5414 = vadd.f32 %v5217, %v5364
        %v5415 = vadd.f32 %v5218, %v5367
        %v5416 = vadd.f32 %v5219, %v5369
        %v5417 = vadd.f32 %v5220, %v5372
        %v5418 = vadd.f32 %v5221, %v5374
        %v5419 = vadd.f32 %v5222, %v5377
        %v5420 = vadd.f32 %v5223, %v5379
        %v5421 = vadd.f32 %v5224, %v5382
        %v5422 = vadd.f32 %v5225, %v5384
        %v5423 = vadd.f32 %v5226, %v5387
        %v5424 = vadd.f32 %v5227, %v5389
        %v5425 = vadd.f32 %v5228, %v5392
        %v5426 = vadd.f32 %v5229, %v5394
        %v5427 = vlaneseq
        %v5428 = vshrl.u32 %v5427, 7
        %v5429 = vsub.s32 2, %v5428
        %v5430 = vrot.slane %v4035, %v5429
        %v5431 = vmul.f32 %v4163, %v5430
        %v5432 = vmul.f32 %v4164, %v5430
        %v5433 = vmul.f32 %v4261, %v5430
        %v5434 = vmul.f32 %v4165, %v5430
        %v5435 = vmul.f32 %v4166, %v5430
        %v5436 = vmul.f32 %v4262, %v5430
        %v5437 = vmul.f32 %v4167, %v5430
        %v5438 = vmul.f32 %v4168, %v5430
        %v5439 = vmul.f32 %v4263, %v5430
        %v5440 = vmul.f32 %v4169, %v5430
        %v5441 = vmul.f32 %v4170, %v5430
        %v5442 = vmul.f32 %v4264, %v5430
        %v5443 = vmul.f32 %v4171, %v5430
        %v5444 = vmul.f32 %v4172, %v5430
        %v5445 = vmul.f32 %v4265, %v5430
        %v5446 = vmul.f32 %v4173, %v5430
        %v5447 = vmul.f32 %v4174, %v5430
        %v5448 = vmul.f32 %v4266, %v5430
        %v5449 = vmul.f32 %v4665, %v5430
        %v5450 = vmul.f32 %v4666, %v5430
        %v5451 = vmul.f32 %v4751, %v5430
        %v5452 = vmul.f32 %v5144, %v5430
        %v5453 = vmul.f32 %v5145, %v5430
        %v5454 = vmul.f32 %v5230, %v5430
        %v5455 = vsel %vm4494, %v5431, 0.0
        %5456 = vadd.xlane.f32.xlu0 %v5455
        %v5457 = vpop.xlane.xlu0 %5456
        %v5458 = vsel %vm471, %v5432, 0.0
        %5459 = vadd.xlane.f32.xlu0 %v5458
        %v5460 = vpop.xlane.xlu0 %5459
        %v5461 = vsel %vm4501, %v5433, 0.0
        %5462 = vadd.xlane.f32.xlu0 %v5461
        %v5463 = vpop.xlane.xlu0 %5462
        %v5464 = vsel %vm4494, %v5434, 0.0
        %5465 = vadd.xlane.f32.xlu0 %v5464
        %v5466 = vpop.xlane.xlu0 %5465
        %v5467 = vsel %vm471, %v5435, 0.0
        %5468 = vadd.xlane.f32.xlu0 %v5467
        %v5469 = vpop.xlane.xlu0 %5468
        %v5470 = vsel %vm4501, %v5436, 0.0
        %5471 = vadd.xlane.f32.xlu0 %v5470
        %v5472 = vpop.xlane.xlu0 %5471
        %v5473 = vsel %vm4494, %v5437, 0.0
        %5474 = vadd.xlane.f32.xlu0 %v5473
        %v5475 = vpop.xlane.xlu0 %5474
        %v5476 = vsel %vm471, %v5438, 0.0
        %5477 = vadd.xlane.f32.xlu0 %v5476
        %v5478 = vpop.xlane.xlu0 %5477
        %v5479 = vsel %vm4501, %v5439, 0.0
        %5480 = vadd.xlane.f32.xlu0 %v5479
        %v5481 = vpop.xlane.xlu0 %5480
        %v5482 = vsel %vm4494, %v5440, 0.0
        %5483 = vadd.xlane.f32.xlu0 %v5482
        %v5484 = vpop.xlane.xlu0 %5483
        %v5485 = vsel %vm471, %v5441, 0.0
        %5486 = vadd.xlane.f32.xlu0 %v5485
        %v5487 = vpop.xlane.xlu0 %5486
        %v5488 = vsel %vm4501, %v5442, 0.0
        %5489 = vadd.xlane.f32.xlu0 %v5488
        %v5490 = vpop.xlane.xlu0 %5489
        %v5491 = vsel %vm4494, %v5443, 0.0
        %5492 = vadd.xlane.f32.xlu0 %v5491
        %v5493 = vpop.xlane.xlu0 %5492
        %v5494 = vsel %vm471, %v5444, 0.0
        %5495 = vadd.xlane.f32.xlu0 %v5494
        %v5496 = vpop.xlane.xlu0 %5495
        %v5497 = vsel %vm4501, %v5445, 0.0
        %5498 = vadd.xlane.f32.xlu0 %v5497
        %v5499 = vpop.xlane.xlu0 %5498
        %v5500 = vsel %vm4494, %v5446, 0.0
        %5501 = vadd.xlane.f32.xlu0 %v5500
        %v5502 = vpop.xlane.xlu0 %5501
        %v5503 = vsel %vm471, %v5447, 0.0
        %5504 = vadd.xlane.f32.xlu0 %v5503
        %v5505 = vpop.xlane.xlu0 %5504
        %v5506 = vsel %vm4501, %v5448, 0.0
        %5507 = vadd.xlane.f32.xlu0 %v5506
        %v5508 = vpop.xlane.xlu0 %5507
        %v5509 = vsel %vm4494, %v5449, 0.0
        %5510 = vadd.xlane.f32.xlu0 %v5509
        %v5511 = vpop.xlane.xlu0 %5510
        %v5512 = vsel %vm471, %v5450, 0.0
        %5513 = vadd.xlane.f32.xlu0 %v5512
        %v5514 = vpop.xlane.xlu0 %5513
        %v5515 = vsel %vm4501, %v5451, 0.0
        %5516 = vadd.xlane.f32.xlu0 %v5515
        %v5517 = vpop.xlane.xlu0 %5516
        %v5518 = vsel %vm4494, %v5452, 0.0
        %5519 = vadd.xlane.f32.xlu0 %v5518
        %v5520 = vpop.xlane.xlu0 %5519
        %v5521 = vsel %vm471, %v5453, 0.0
        %5522 = vadd.xlane.f32.xlu0 %v5521
        %v5523 = vpop.xlane.xlu0 %5522
        %v5524 = vsel %vm4501, %v5454, 0.0
        %5525 = vadd.xlane.f32.xlu0 %v5524
        %v5526 = vpop.xlane.xlu0 %5525
        %v5551 = vrot.slane %v5457, 2
        %v5552 = vrot.slane %v5460, 2
        %v5553 = vsel %vm4592, %v5551, %v5552
        %v5554 = vrot.slane %v5463, 2
        %v5555 = vsel %vm4592, %v5552, %v5554
        %v5556 = vrot.slane %v5466, 2
        %v5557 = vrot.slane %v5469, 2
        %v5558 = vsel %vm4592, %v5556, %v5557
        %v5559 = vrot.slane %v5472, 2
        %v5560 = vsel %vm4592, %v5557, %v5559
        %v5561 = vrot.slane %v5475, 2
        %v5562 = vrot.slane %v5478, 2
        %v5563 = vsel %vm4592, %v5561, %v5562
        %v5564 = vrot.slane %v5481, 2
        %v5565 = vsel %vm4592, %v5562, %v5564
        %v5566 = vrot.slane %v5484, 2
        %v5567 = vrot.slane %v5487, 2
        %v5568 = vsel %vm4592, %v5566, %v5567
        %v5569 = vrot.slane %v5490, 2
        %v5570 = vsel %vm4592, %v5567, %v5569
        %v5571 = vrot.slane %v5493, 2
        %v5572 = vrot.slane %v5496, 2
        %v5573 = vsel %vm4592, %v5571, %v5572
        %v5574 = vrot.slane %v5499, 2
        %v5575 = vsel %vm4592, %v5572, %v5574
        %v5576 = vrot.slane %v5502, 2
        %v5577 = vrot.slane %v5505, 2
        %v5578 = vsel %vm4592, %v5576, %v5577
        %v5579 = vrot.slane %v5508, 2
        %v5580 = vsel %vm4592, %v5577, %v5579
        %v5581 = vrot.slane %v5511, 2
        %v5582 = vrot.slane %v5514, 2
        %v5583 = vsel %vm4592, %v5581, %v5582
        %v5584 = vrot.slane %v5517, 2
        %v5585 = vsel %vm4592, %v5582, %v5584
        %v5586 = vrot.slane %v5520, 2
        %v5587 = vrot.slane %v5523, 2
        %v5588 = vsel %vm4592, %v5586, %v5587
        %v5589 = vrot.slane %v5526, 2
        %v5590 = vsel %vm4592, %v5587, %v5589
        %v5607 = vadd.f32 %v5411, %v5553
        %v5608 = vadd.f32 %v5412, %v5555
        %v5609 = vadd.f32 %v5413, %v5558
        %v5610 = vadd.f32 %v5414, %v5560
        %v5611 = vadd.f32 %v5415, %v5563
        %v5612 = vadd.f32 %v5416, %v5565
        %v5613 = vadd.f32 %v5417, %v5568
        %v5614 = vadd.f32 %v5418, %v5570
        %v5615 = vadd.f32 %v5419, %v5573
        %v5616 = vadd.f32 %v5420, %v5575
        %v5617 = vadd.f32 %v5421, %v5578
        %v5618 = vadd.f32 %v5422, %v5580
        %v5619 = vadd.f32 %v5423, %v5583
        %v5620 = vadd.f32 %v5424, %v5585
        %v5621 = vadd.f32 %v5425, %v5588
        %v5622 = vadd.f32 %v5426, %v5590
        %5639 = vset.pattern.permute.xlu0 0
        %5640 = vperm.xlu0 %5639, %v5607
        %v5641 = vpop.permute.xlu0 %5640
        %5642 = vset.pattern.permute.xlu0 0
        %5643 = vperm.xlu0 %5642, %v5608
        %v5644 = vpop.permute.xlu0 %5643
        %5645 = vset.pattern.permute.xlu0 0
        %5646 = vperm.xlu0 %5645, %v5609
        %v5647 = vpop.permute.xlu0 %5646
        %5648 = vset.pattern.permute.xlu0 0
        %5649 = vperm.xlu0 %5648, %v5610
        %v5650 = vpop.permute.xlu0 %5649
        %5651 = vset.pattern.permute.xlu0 0
        %5652 = vperm.xlu0 %5651, %v5611
        %v5653 = vpop.permute.xlu0 %5652
        %5654 = vset.pattern.permute.xlu0 0
        %5655 = vperm.xlu0 %5654, %v5612
        %v5656 = vpop.permute.xlu0 %5655
        %5657 = vset.pattern.permute.xlu0 0
        %5658 = vperm.xlu0 %5657, %v5613
        %v5659 = vpop.permute.xlu0 %5658
        %5660 = vset.pattern.permute.xlu0 0
        %5661 = vperm.xlu0 %5660, %v5614
        %v5662 = vpop.permute.xlu0 %5661
        %5663 = vset.pattern.permute.xlu0 0
        %5664 = vperm.xlu0 %5663, %v5615
        %v5665 = vpop.permute.xlu0 %5664
        %5666 = vset.pattern.permute.xlu0 0
        %5667 = vperm.xlu0 %5666, %v5616
        %v5668 = vpop.permute.xlu0 %5667
        %5669 = vset.pattern.permute.xlu0 0
        %5670 = vperm.xlu0 %5669, %v5617
        %v5671 = vpop.permute.xlu0 %5670
        %5672 = vset.pattern.permute.xlu0 0
        %5673 = vperm.xlu0 %5672, %v5618
        %v5674 = vpop.permute.xlu0 %5673
        %5675 = vset.pattern.permute.xlu0 0
        %5676 = vperm.xlu0 %5675, %v5619
        %v5677 = vpop.permute.xlu0 %5676
        %5678 = vset.pattern.permute.xlu0 0
        %5679 = vperm.xlu0 %5678, %v5620
        %v5680 = vpop.permute.xlu0 %5679
        %5681 = vset.pattern.permute.xlu0 0
        %5682 = vperm.xlu0 %5681, %v5621
        %v5683 = vpop.permute.xlu0 %5682
        %5684 = vset.pattern.permute.xlu0 0
        %5685 = vperm.xlu0 %5684, %v5622
        %v5686 = vpop.permute.xlu0 %5685
        %v5687 = vlaneseq
        %v5688 = vand.u32 %v5687, 127
        %v5689 = vlaneseq
        %v5690 = vshrl.u32 %v5689, 7
        %v5691 = vsub.s32 %v5688, %v5690
        %v5692 = vrot.slane %v5641, %v5691
        %v5693 = vadd.s32 %v5688, 4294967288
        %v5694 = vlaneseq
        %v5695 = vshrl.u32 %v5694, 7
        %v5696 = vsub.s32 %v5693, %v5695
        %v5697 = vrot.slane %v5644, %v5696
        %vm5698 = vcmask 130112
        %v5699 = vsel %vm5698, %v5697, %v5692
        %v5700 = vlaneseq
        %v5701 = vshrl.u32 %v5700, 7
        %v5702 = vsub.s32 %v5688, %v5701
        %v5703 = vrot.slane %v5647, %v5702
        %v5704 = vlaneseq
        %v5705 = vshrl.u32 %v5704, 7
        %v5706 = vsub.s32 %v5693, %v5705
        %v5707 = vrot.slane %v5650, %v5706
        %v5708 = vsel %vm5698, %v5707, %v5703
        %v5709 = vlaneseq
        %v5710 = vshrl.u32 %v5709, 7
        %v5711 = vsub.s32 %v5688, %v5710
        %v5712 = vrot.slane %v5653, %v5711
        %v5713 = vlaneseq
        %v5714 = vshrl.u32 %v5713, 7
        %v5715 = vsub.s32 %v5693, %v5714
        %v5716 = vrot.slane %v5656, %v5715
        %v5717 = vsel %vm5698, %v5716, %v5712
        %v5718 = vlaneseq
        %v5719 = vshrl.u32 %v5718, 7
        %v5720 = vsub.s32 %v5688, %v5719
        %v5721 = vrot.slane %v5659, %v5720
        %v5722 = vlaneseq
        %v5723 = vshrl.u32 %v5722, 7
        %v5724 = vsub.s32 %v5693, %v5723
        %v5725 = vrot.slane %v5662, %v5724
        %v5726 = vsel %vm5698, %v5725, %v5721
        %v5727 = vlaneseq
        %v5728 = vshrl.u32 %v5727, 7
        %v5729 = vsub.s32 %v5688, %v5728
        %v5730 = vrot.slane %v5665, %v5729
        %v5731 = vlaneseq
        %v5732 = vshrl.u32 %v5731, 7
        %v5733 = vsub.s32 %v5693, %v5732
        %v5734 = vrot.slane %v5668, %v5733
        %v5735 = vsel %vm5698, %v5734, %v5730
        %v5736 = vlaneseq
        %v5737 = vshrl.u32 %v5736, 7
        %v5738 = vsub.s32 %v5688, %v5737
        %v5739 = vrot.slane %v5671, %v5738
        %v5740 = vlaneseq
        %v5741 = vshrl.u32 %v5740, 7
        %v5742 = vsub.s32 %v5693, %v5741
        %v5743 = vrot.slane %v5674, %v5742
        %v5744 = vsel %vm5698, %v5743, %v5739
        %v5745 = vlaneseq
        %v5746 = vshrl.u32 %v5745, 7
        %v5747 = vsub.s32 %v5688, %v5746
        %v5748 = vrot.slane %v5677, %v5747
        %v5749 = vlaneseq
        %v5750 = vshrl.u32 %v5749, 7
        %v5751 = vsub.s32 %v5693, %v5750
        %v5752 = vrot.slane %v5680, %v5751
        %v5753 = vsel %vm5698, %v5752, %v5748
        %v5754 = vlaneseq
        %v5755 = vshrl.u32 %v5754, 7
        %v5756 = vsub.s32 %v5688, %v5755
        %v5757 = vrot.slane %v5683, %v5756
        %v5758 = vlaneseq
        %v5759 = vshrl.u32 %v5758, 7
        %v5760 = vsub.s32 %v5693, %v5759
        %v5761 = vrot.slane %v5686, %v5760
        %v5762 = vsel %vm5698, %v5761, %v5757
        %vm5763 = vcmask 1046534
        %v5764 = vsel %vm5763, %v5708, %v5699
        %vm5765 = vcmask 1047559
        %v5766 = vsel %vm5765, %v5717, %v5764
        %vm5767 = vcmask 1041409
        %v5768 = vsel %vm5767, %v5735, %v5726
        %vm5769 = vcmask 1042434
        %v5770 = vsel %vm5769, %v5744, %v5768
        %vm5771 = vcmask 1043459
        %v5772 = vsel %vm5771, %v5753, %v5770
        %vm5773 = vcmask 1044484
        %v5774 = vsel %vm5773, %v5762, %v5772
        %v5777 = vsub.f32 %v358, %v5766
        %v5778 = vsub.f32 %v359, %v5774
        %vm5779 = vcmask 130053
        %5780 = vst.msk [vmem:[%s354 - $0x5] sm:$0xe0] %vm5779, %v5777
        %vm5781 = vcmask 126976
        %5782 = vst.msk [vmem:[%s354 + $0x3] sm:$0x1f] %vm5781, %v5778
        %s5783 = sand.u32 %s179, 1
        %s5784 = scalar_lea.sflag [#allocation7], %s5783
        %s5785 = sand.u32 %s179, 1
        %s5786 = smul.addr %s5785, 8
        %s5787 = scalar_lea.vmem [#allocation16], %s5786
        // Predicated region
        $region76: #{tpu_custom_call.1} parent=43 // pred_check
          %p5788 = pneg %p189
        $region77: #{tpu_custom_call.1} parent=43 // pred_check_branch
          %5790 = sbr.rel (%p5788) target = $region79
        $region78: #{tpu_custom_call.1} parent=43 // pred_region
          %s5792 = ssub.s32 128, 128
          %5793 = vsyncadd %s5784, %s5792
          %s5794 = smul.addr %s30, 2
          %s5795 = sadd.s32 %s31, %s5794
          %s5796 = smul.addr %s5795, 128
          %s5797 = scalar_lea.hbm %s6, %s5796
          %s5799 = sshll.u32 %s5787, 4
          %s5800 = int_to_ptr.vmem [resolvable:$true] %s5799
          %5802 = dma.vmem_to_hbm [thread:$0]  %s5800, 128, %s5797, %s5784
        $region79: #{tpu_custom_call.1} parent=43 // pred_fallthru
          _
      $region44: #{tpu_custom_call.1} parent=5 // pred_fallthru
        _
      %p5803 = scmp.le.s32.totalorder 2, %s21
      // Predicated region
      $region80: #{tpu_custom_call.1} parent=5 // pred_check
        %p5804 = pneg %p5803
      $region81: #{tpu_custom_call.1} parent=5 // pred_check_branch
        %5806 = sbr.rel (%p5804) target = $region83
      $region82: #{tpu_custom_call.1} parent=5 // pred_region
        %s5807 = ssub.s32 %s21, 2
        // Predicated region
        $region84: #{tpu_custom_call.1} parent=82 // pred_check
          %p5808 = pneg %p195
        $region85: #{tpu_custom_call.1} parent=82 // pred_check_branch
          %5810 = sbr.rel (%p5808) target = $region87
        $region86: #{tpu_custom_call.1} parent=82 // pred_region
          %s5811 = sand.u32 %s180, 1
          %s5812 = scalar_lea.sflag [#allocation7], %s5811
          %s5813 = sand.u32 %s180, 1
          %s5814 = smul.addr %s5813, 8
          %s5815 = scalar_lea.vmem [#allocation16], %s5814
          %5816 = dma.done %s5812, 128
        $region87: #{tpu_custom_call.1} parent=82 // pred_fallthru
          _
      $region83: #{tpu_custom_call.1} parent=5 // pred_fallthru
        _
    $region6: #{tpu_custom_call.1} parent=1 // loop_footer
      %s25 = sadd.s32 1, %s21
    $region7: #{tpu_custom_call.1} parent=1 // loop_footer_branch
      %20 = sbr.rel target = $region3
    $region8: #{tpu_custom_call.1} parent=1 // loop_exit
      _
    %5817 = vsyncpa [#allocation6], 1
    %s5818 = scalar_lea.sflag [#allocation6], 1
    %5819 = vsyncpa %s5818, 1
    %5820 = vsyncpa [#allocation9], 1
    %5821 = vsyncpa [#allocation12], 1
    %5822 = vsyncpa [#allocation15], 1
    %5823 = vsyncpa [#allocation7], 1
    %s5824 = scalar_lea.sflag [#allocation7], 1
    %5825 = vsyncpa %s5824, 1

</llo_original>
